<compile_context>
chip_gen: v5e
topology: v5e:2x2
jax: 0.10.0
libtpu: 0.0.40
codegen_flags: <defaults>
</compile_context>

<pallas_src>
import jax
import jax.numpy as jnp
from jax import lax
from jax.experimental import pallas as pl
from jax.experimental.pallas import tpu as pltpu


def _round_up(x, m):
    return ((x + m - 1) // m) * m


# ---------------------------------------------------------------------------
# Pallas kernels
# ---------------------------------------------------------------------------

def _conv_relu_pool_kernel(p_ref, w_ref, b_ref, o_ref):
    """Fused conv-as-matmul + bias + ReLU + 2x2 maxpool (one MXU matmul).

    p_ref: (4, TR, K) bf16 pool-grouped im2col patches (axis 0 = the 4 conv
           pixels of each 2x2 pool window, rows = pooled output pixels).
    w_ref: (K, C) bf16,  b_ref: (1, C) f32,  o_ref: (TR, C) bf16 pooled act.
    """
    four, tr, k = p_ref.shape
    c = w_ref.shape[1]
    p = p_ref[...].reshape(four * tr, k)                      # layout-preserving merge
    m = jnp.dot(p, w_ref[...], preferred_element_type=jnp.float32)
    m = m.reshape(four, tr, c).max(axis=0)                    # fold the 2x2 maxpool
    # relu(max_d(x_d @ W) + b) == maxpool(relu(conv + b))  (shared bias, monotone relu)
    o_ref[...] = jnp.maximum(m + b_ref[...], 0.0).astype(o_ref.dtype)


def _conv23_mlp_kernel(p2_ref, w2_ref, b2_ref, w3_ref, b3_ref,
                       w4_ref, b4_ref, w5_ref, b5_ref, w6_ref, b6_ref, o_ref):
    """conv2+pool + conv3+pool + fc1/relu + fc2/relu + fc3 for one batch tile.

    p2_ref: (4, TB*16, K2) bf16 pool-grouped conv2 im2col patches
            (rows ordered (image, pooled_y, pooled_x) over the 4x4 pooled map).
    w2_ref: (K2, 64) bf16, b2_ref: (1, 64) f32.
    w3_ref: (9, 64, 128) bf16 conv3 taps ordered (ky*3+kx, cin, cout),
            b3_ref: (1, 128) f32.
    w4..w6 / b4..b6: fc1/fc2/fc3 weights (bf16) and biases (f32), fc3 padded
            to 128 output lanes.  o_ref: (1, TB, 128) f32 logits.
    """
    four, rows, k2 = p2_ref.shape
    tb = rows // 16
    c2 = w2_ref.shape[1]

    # ---- conv2 + bias + relu + 2x2 maxpool (single MXU matmul, max over 4) ----
    p = p2_ref[...].reshape(four * rows, k2)
    m = jnp.dot(p, w2_ref[...], preferred_element_type=jnp.float32)
    m = m.reshape(four, rows, c2).max(axis=0)
    h2 = jnp.maximum(m + b2_ref[...], 0.0).astype(jnp.bfloat16)      # (TB*16, 64)
    h2 = h2.reshape(tb, 16, c2)                                       # (TB, 4*4, 64)

    # ---- conv3 (k3 s2 p1 on the 4x4 map) + bias + relu + 2x2 maxpool ----------
    # Output is 2x2 -> pooled to 1x1, so the pool is a max over the 4 output
    # pixels; each pixel is a sum of valid tap matmuls on the VMEM-resident map.
    pos = [h2[:, idx, :] for idx in range(16)]                        # each (TB, 64)
    taps = [w3_ref[t] for t in range(9)]                              # each (64, 128)
    pooled = None
    for yo in range(2):
        for xo in range(2):
            acc = None
            for ky in range(3):
                for kx in range(3):
                    r = 2 * yo + ky - 1
                    c = 2 * xo + kx - 1
                    if 0 <= r < 4 and 0 <= c < 4:                     # padding = zeros
                        d = jnp.dot(pos[4 * r + c], taps[ky * 3 + kx],
                                    preferred_element_type=jnp.float32)
                        acc = d if acc is None else acc + d
            pooled = acc if pooled is None else jnp.maximum(pooled, acc)
    h3 = jnp.maximum(pooled + b3_ref[...], 0.0).astype(jnp.bfloat16)  # (TB, 128)

    # ---- MLP head -------------------------------------------------------------
    h4 = jnp.maximum(jnp.dot(h3, w4_ref[...], preferred_element_type=jnp.float32)
                     + b4_ref[...], 0.0).astype(jnp.bfloat16)
    h5 = jnp.maximum(jnp.dot(h4, w5_ref[...], preferred_element_type=jnp.float32)
                     + b5_ref[...], 0.0).astype(jnp.bfloat16)
    o_ref[0] = (jnp.dot(h5, w6_ref[...], preferred_element_type=jnp.float32)
                + b6_ref[...])


# ---------------------------------------------------------------------------
# Wrappers (layout plumbing in plain JAX; all FLOPs inside the Pallas kernels)
# ---------------------------------------------------------------------------

def _im2col_pooled(x_nhwc, k=3, stride=2, pad=1):
    """im2col grouped by 2x2 maxpool cell.

    Returns (patches, hp, wp) with patches of shape (4, n*hp*wp, k*k*c); axis 0
    enumerates the (dy, dx) conv-output position inside each pool window, so
    the pool becomes a max over the leading axis inside the kernel.
    """
    n, h, w, c = x_nhwc.shape
    ho = (h + 2 * pad - k) // stride + 1
    wo = (w + 2 * pad - k) // stride + 1
    assert ho % 2 == 0 and wo % 2 == 0, "maxpool2x2 needs even conv output dims"
    hp, wp = ho // 2, wo // 2
    xp = jnp.pad(x_nhwc, ((0, 0), (pad, pad), (pad, pad), (0, 0)))
    step = 2 * stride
    pos = []
    for dy in range(2):
        for dx in range(2):
            cols = []
            for ky in range(k):
                for kx in range(k):
                    y0 = stride * dy + ky
                    x0 = stride * dx + kx
                    cols.append(xp[:, y0:y0 + step * (hp - 1) + 1:step,
                                      x0:x0 + step * (wp - 1) + 1:step, :])
            pcols = jnp.stack(cols, axis=3)              # (n, hp, wp, k*k, c)
            pos.append(pcols.reshape(n * hp * wp, k * k * c))
    return jnp.stack(pos, axis=0), hp, wp                # (4, n*hp*wp, k*k*c)


def conv1_relu_pool_pallas(x_nhwc, w_oihw, b, *, row_tile=512):
    """Conv2d(k3, s2, p1) + ReLU + MaxPool2x2 as one Pallas call (row-tiled grid)."""
    n = x_nhwc.shape[0]
    cout, cin, kh, kw = w_oihw.shape
    # bf16 BEFORE im2col: half-width strided slices + half-width patch tensor.
    patches, hp, wp = _im2col_pooled(x_nhwc.astype(jnp.bfloat16), k=kh)
    rows = patches.shape[1]
    k_dim = kh * kw * cin                                # K = 9, deliberately NOT padded

    # Row tile: multiple of 16, capped so the grid has >= 2 steps (v7x megacore).
    half = max(16, (rows // 2) // 16 * 16)
    tr = min(row_tile, half if rows >= 32 else _round_up(rows, 16))
    rows_pad = _round_up(rows, tr)
    if rows_pad != rows:
        patches = jnp.pad(patches, ((0, 0), (0, rows_pad - rows), (0, 0)))

    w_mat = jnp.transpose(w_oihw, (2, 3, 1, 0)).reshape(k_dim, cout).astype(jnp.bfloat16)
    b_row = b.reshape(1, cout).astype(jnp.float32)

    out = pl.pallas_call(
        _conv_relu_pool_kernel,
        out_shape=jax.ShapeDtypeStruct((rows_pad, cout), jnp.bfloat16),
        grid=(rows_pad // tr,),
        in_specs=[
            pl.BlockSpec((4, tr, k_dim), lambda i: (0, i, 0)),
            pl.BlockSpec((k_dim, cout), lambda i: (0, 0)),   # weights stay VMEM-resident
            pl.BlockSpec((1, cout), lambda i: (0, 0)),
        ],
        out_specs=pl.BlockSpec((tr, cout), lambda i: (i, 0)),
        compiler_params=pltpu.CompilerParams(dimension_semantics=("parallel",)),
    )(patches, w_mat, b_row)
    if rows_pad != rows:
        out = out[:rows]
    return out.reshape(n, hp, wp, cout)


def conv23_mlp_pallas(x_nhwc, params):
    """conv2+pool + conv3+pool + fc1/relu + fc2/relu + fc3 in ONE Pallas call."""
    n, h, w, c = x_nhwc.shape
    w2, b2 = params["conv2_w"], params["conv2_b"]
    w3, b3 = params["conv3_w"], params["conv3_b"]
    c2out, c2in, kh, kw = w2.shape
    c3out = w3.shape[0]
    assert c2in == c, "conv2 input-channel mismatch"

    # Pool-grouped im2col for conv2 (input already bf16 from the conv1 kernel).
    patches, hp, wp = _im2col_pooled(x_nhwc, k=kh)        # (4, n*16, 288)
    k2 = kh * kw * c2in
    assert (hp, wp) == (4, 4) and c3out == params["fc1_w"].shape[0] == 128, (
        "fused conv2+conv3+MLP tail assumes the conv tower collapses the "
        "spatial dims to 1x1 with 128 channels (64x64 single-channel inputs)")
    # TODO(synk): general input sizes need a standalone conv3+MLP kernel here.

    num_classes = params["fc3_w"].shape[1]
    nc_pad = _round_up(num_classes, 128)                  # lane-dense output stores

    # Batch tiling: grid >= 2 whenever n >= 2 (v7x megacore split).
    tb = 1 if n < 4 else min(8, n // 2)
    n_pad = _round_up(n, tb)
    if n_pad != n:
        patches = jnp.pad(patches, ((0, 0), (0, (n_pad - n) * 16), (0, 0)))
    grid = n_pad // tb

    w2m = jnp.transpose(w2, (2, 3, 1, 0)).reshape(k2, c2out).astype(jnp.bfloat16)
    b2r = b2.reshape(1, c2out).astype(jnp.float32)
    w3m = jnp.transpose(w3, (2, 3, 1, 0)).reshape(9, c2out, c3out).astype(jnp.bfloat16)
    b3r = b3.reshape(1, c3out).astype(jnp.float32)
    w4 = params["fc1_w"].astype(jnp.bfloat16)
    b4 = params["fc1_b"].reshape(1, -1).astype(jnp.float32)
    w5 = params["fc2_w"].astype(jnp.bfloat16)
    b5 = params["fc2_b"].reshape(1, -1).astype(jnp.float32)
    w6 = jnp.pad(params["fc3_w"], ((0, 0), (0, nc_pad - num_classes))).astype(jnp.bfloat16)
    b6 = jnp.pad(params["fc3_b"].reshape(1, -1),
                 ((0, 0), (0, nc_pad - num_classes))).astype(jnp.float32)

    args = (patches, w2m, b2r, w3m, b3r, w4, b4, w5, b5, w6, b6)
    full_spec = lambda a: pl.BlockSpec(a.shape, lambda i, nd=a.ndim: (0,) * nd)
    in_specs = ([pl.BlockSpec((4, tb * 16, k2), lambda i: (0, i, 0))]
                + [full_spec(a) for a in args[1:]])

    out = pl.pallas_call(
        _conv23_mlp_kernel,
        out_shape=jax.ShapeDtypeStruct((grid, tb, nc_pad), jnp.float32),
        grid=(grid,),
        in_specs=in_specs,
        out_specs=pl.BlockSpec((1, tb, nc_pad), lambda i: (i, 0, 0)),
        compiler_params=pltpu.CompilerParams(dimension_semantics=("parallel",)),
    )(*args)
    return out.reshape(n_pad, nc_pad)[:n, :num_classes]


def cnn_multilabel_forward(x_nchw, params):
    """Full forward pass. x_nchw: (N, 1, H, W) float32 (PyTorch NCHW layout)."""
    x = jnp.transpose(x_nchw, (0, 2, 3, 1))      # NCHW -> NHWC (channels on lanes)
    x = conv1_relu_pool_pallas(x, params["conv1_w"], params["conv1_b"])
    # dropout(rate=0.0) == identity, omitted
    return conv23_mlp_pallas(x, params)


# ---------------------------------------------------------------------------
# Deterministic parameter init + matched-precision reference for validation
# ---------------------------------------------------------------------------

def init_params(key, num_classes=33, flat_size=128):
    ks = jax.random.split(key, 12)

    def u(k, shape, fan_in):
        bound = 1.0 / jnp.sqrt(fan_in)
        return jax.random.uniform(k, shape, jnp.float32, -bound, bound)

    params = {}
    chans = [(1, 32), (32, 64), (64, 128)]
    for i, (cin, cout) in enumerate(chans):
        fan_in = cin * 9
        params[f"conv{i + 1}_w"] = u(ks[2 * i], (cout, cin, 3, 3), fan_in)
        params[f"conv{i + 1}_b"] = u(ks[2 * i + 1], (cout,), fan_in)
    params["fc1_w"] = u(ks[6], (flat_size, 128), flat_size)
    params["fc1_b"] = u(ks[7], (128,), flat_size)
    params["fc2_w"] = u(ks[8], (128, 64), 128)
    params["fc2_b"] = u(ks[9], (64,), 128)
    params["fc3_w"] = u(ks[10], (64, num_classes), 64)
    params["fc3_b"] = u(ks[11], (num_classes,), 64)
    return params


def reference_forward(x_nchw, params):
    """Pure-JAX reference with the same bf16-operand / f32-accumulate choices."""
    bf = jnp.bfloat16
    x = jnp.transpose(x_nchw, (0, 2, 3, 1)).astype(bf)
    for i in range(3):
        w = params[f"conv{i + 1}_w"].astype(bf)
        b = params[f"conv{i + 1}_b"]
        w_hwio = jnp.transpose(w, (2, 3, 1, 0))
        y = lax.conv_general_dilated(
            x, w_hwio, window_strides=(2, 2), padding=((1, 1), (1, 1)),
            dimension_numbers=("NHWC", "HWIO", "NHWC"),
            preferred_element_type=jnp.float32)
        y = jnp.maximum(y + b, 0.0)
        y = lax.reduce_window(y, -jnp.inf, lax.max, (1, 2, 2, 1), (1, 2, 2, 1), "VALID")
        x = y.astype(bf)
    n = x.shape[0]
    xf = jnp.transpose(x, (0, 3, 1, 2)).reshape(n, -1)    # channel-major flatten
    h = jnp.maximum(
        jnp.dot(xf, params["fc1_w"].astype(bf), preferred_element_type=jnp.float32)
        + params["fc1_b"], 0.0).astype(bf)
    h = jnp.maximum(
        jnp.dot(h, params["fc2_w"].astype(bf), preferred_element_type=jnp.float32)
        + params["fc2_b"], 0.0).astype(bf)
    return (jnp.dot(h, params["fc3_w"].astype(bf), preferred_element_type=jnp.float32)
            + params["fc3_b"])


if __name__ == "__main__":
    key = jax.random.PRNGKey(0)
    kx, kp = jax.random.split(key)
    # (batch=2, 1 channel, 64x64): the conv tower collapses to 128 features,
    # matching fc1(128, 128) in this config.
    x = jax.random.normal(kx, (2, 1, 64, 64), dtype=jnp.float32)
    params = init_params(kp, num_classes=33, flat_size=128)

    fwd = jax.jit(cnn_multilabel_forward)
    out = jax.block_until_ready(fwd(x, params))
    assert out.shape == (2, 33), out.shape

    ref = jax.block_until_ready(reference_forward(x, params))
    max_err = float(jnp.max(jnp.abs(out - ref)))
    assert jnp.allclose(out, ref, atol=1e-2, rtol=1e-2), max_err
    print("KERNEL_OK")
</pallas_src>

<mosaic_0001>
module attributes {stable_mosaic.version = 11 : i64} {
  func.func @_conv_relu_pool_kernel(%arg0: i32, %arg1: memref<4x256x9xbf16, #tpu.memory_space<vmem>>, %arg2: memref<9x32xbf16, #tpu.memory_space<vmem>>, %arg3: memref<1x32xf32, #tpu.memory_space<vmem>>, %arg4: memref<256x32xbf16, #tpu.memory_space<vmem>>) attributes {dimension_semantics = [#tpu.dimension_semantics<parallel>], iteration_bounds = array<i64: 2>, scalar_prefetch = 0 : i64, scratch_operands = 0 : i64, tpu.core_type = #tpu.core_type<tc>, window_params = [{transform_indices = @transform_0, window_bounds = array<i64: 4, 256, 9>}, {pipeline_mode = #tpu.pipeline_mode<synchronous>, transform_indices = @transform_1, window_bounds = array<i64: 9, 32>}, {pipeline_mode = #tpu.pipeline_mode<synchronous>, transform_indices = @transform_2, window_bounds = array<i64: 1, 32>}, {transform_indices = @transform_3, window_bounds = array<i64: 256, 32>}]} {
    %c0 = arith.constant 0 : index
    %c0_0 = arith.constant 0 : index
    %c0_1 = arith.constant 0 : index
    %0 = vector.load %arg1[%c0, %c0_0, %c0_1] : memref<4x256x9xbf16, #tpu.memory_space<vmem>>, vector<4x256x9xbf16>
    %1 = vector.shape_cast %0 : vector<4x256x9xbf16> to vector<1024x9xbf16>
    %c0_2 = arith.constant 0 : index
    %c0_3 = arith.constant 0 : index
    %2 = vector.load %arg2[%c0_2, %c0_3] : memref<9x32xbf16, #tpu.memory_space<vmem>>, vector<9x32xbf16>
    %cst = arith.constant dense<0.000000e+00> : vector<1024x32xf32>
    %3 = tpu.matmul %1, %2, %cst {dimension_numbers = #tpu.dot_dimension_numbers<[1], [0], [0], [1], [0, 0, 1, 1], [], []>} : vector<1024x9xbf16>, vector<9x32xbf16>, vector<1024x32xf32> -> vector<1024x32xf32>
    %4 = vector.shape_cast %3 : vector<1024x32xf32> to vector<4x256x32xf32>
    %cst_4 = arith.constant dense<0xFF800000> : vector<256x32xf32>
    %5 = vector.multi_reduction <maximumf>, %4, %cst_4 [0] : vector<4x256x32xf32> to vector<256x32xf32>
    %c0_5 = arith.constant 0 : index
    %c0_6 = arith.constant 0 : index
    %6 = vector.load %arg3[%c0_5, %c0_6] : memref<1x32xf32, #tpu.memory_space<vmem>>, vector<1x32xf32>
    %7 = vector.broadcast %6 : vector<1x32xf32> to vector<256x32xf32>
    %8 = arith.addf %5, %7 : vector<256x32xf32>
    %cst_7 = arith.constant 0.000000e+00 : f32
    %9 = vector.broadcast %cst_7 : f32 to vector<256x32xf32>
    %10 = arith.maximumf %8, %9 : vector<256x32xf32>
    %11 = arith.truncf %10 : vector<256x32xf32> to vector<256x32xbf16>
    %c0_8 = arith.constant 0 : index
    %c0_9 = arith.constant 0 : index
    %12 = vector.load %arg4[%c0_8, %c0_9] : memref<256x32xbf16, #tpu.memory_space<vmem>>, vector<256x32xbf16>
    tpu.vector_store %arg4[%c0_8, %c0_9], %11 {strides = array<i32>} : memref<256x32xbf16, #tpu.memory_space<vmem>>, vector<256x32xbf16>,
    return
  }
  func.func @transform_0(%arg0: i32) -> (i32, i32, i32) {
    %c0_i32 = arith.constant 0 : i32
    %c0_i32_0 = arith.constant 0 : i32
    %c0_i32_1 = arith.constant 0 : i32
    return %c0_i32, %arg0, %c0_i32_0 : i32, i32, i32
  }
  func.func @transform_1(%arg0: i32) -> (i32, i32) {
    %c0_i32 = arith.constant 0 : i32
    %c0_i32_0 = arith.constant 0 : i32
    %c0_i32_1 = arith.constant 0 : i32
    return %c0_i32, %c0_i32_0 : i32, i32
  }
  func.func @transform_2(%arg0: i32) -> (i32, i32) {
    %c0_i32 = arith.constant 0 : i32
    %c0_i32_0 = arith.constant 0 : i32
    %c0_i32_1 = arith.constant 0 : i32
    return %c0_i32, %c0_i32_0 : i32, i32
  }
  func.func @transform_3(%arg0: i32) -> (i32, i32) {
    %c0_i32 = arith.constant 0 : i32
    %c0_i32_0 = arith.constant 0 : i32
    return %arg0, %c0_i32 : i32, i32
  }
}

module attributes {stable_mosaic.version = 11 : i64} {
  func.func @_conv23_mlp_kernel(%arg0: i32, %arg1: memref<4x16x288xbf16, #tpu.memory_space<vmem>>, %arg2: memref<288x64xbf16, #tpu.memory_space<vmem>>, %arg3: memref<1x64xf32, #tpu.memory_space<vmem>>, %arg4: memref<9x64x128xbf16, #tpu.memory_space<vmem>>, %arg5: memref<1x128xf32, #tpu.memory_space<vmem>>, %arg6: memref<128x128xbf16, #tpu.memory_space<vmem>>, %arg7: memref<1x128xf32, #tpu.memory_space<vmem>>, %arg8: memref<128x64xbf16, #tpu.memory_space<vmem>>, %arg9: memref<1x64xf32, #tpu.memory_space<vmem>>, %arg10: memref<64x128xbf16, #tpu.memory_space<vmem>>, %arg11: memref<1x128xf32, #tpu.memory_space<vmem>>, %arg12: memref<1x1x128xf32, #tpu.memory_space<vmem>>) attributes {dimension_semantics = [#tpu.dimension_semantics<parallel>], iteration_bounds = array<i64: 2>, scalar_prefetch = 0 : i64, scratch_operands = 0 : i64, tpu.core_type = #tpu.core_type<tc>, window_params = [{transform_indices = @transform_0, window_bounds = array<i64: 4, 16, 288>}, {pipeline_mode = #tpu.pipeline_mode<synchronous>, transform_indices = @transform_1, window_bounds = array<i64: 288, 64>}, {pipeline_mode = #tpu.pipeline_mode<synchronous>, transform_indices = @transform_2, window_bounds = array<i64: 1, 64>}, {pipeline_mode = #tpu.pipeline_mode<synchronous>, transform_indices = @transform_3, window_bounds = array<i64: 9, 64, 128>}, {pipeline_mode = #tpu.pipeline_mode<synchronous>, transform_indices = @transform_4, window_bounds = array<i64: 1, 128>}, {pipeline_mode = #tpu.pipeline_mode<synchronous>, transform_indices = @transform_5, window_bounds = array<i64: 128, 128>}, {pipeline_mode = #tpu.pipeline_mode<synchronous>, transform_indices = @transform_6, window_bounds = array<i64: 1, 128>}, {pipeline_mode = #tpu.pipeline_mode<synchronous>, transform_indices = @transform_7, window_bounds = array<i64: 128, 64>}, {pipeline_mode = #tpu.pipeline_mode<synchronous>, transform_indices = @transform_8, window_bounds = array<i64: 1, 64>}, {pipeline_mode = #tpu.pipeline_mode<synchronous>, transform_indices = @transform_9, window_bounds = array<i64: 64, 128>}, {pipeline_mode = #tpu.pipeline_mode<synchronous>, transform_indices = @transform_10, window_bounds = array<i64: 1, 128>}, {transform_indices = @transform_11, window_bounds = array<i64: 1, 1, 128>}]} {
    %c0 = arith.constant 0 : index
    %c0_0 = arith.constant 0 : index
    %c0_1 = arith.constant 0 : index
    %0 = vector.load %arg1[%c0, %c0_0, %c0_1] : memref<4x16x288xbf16, #tpu.memory_space<vmem>>, vector<4x16x288xbf16>
    %1 = vector.shape_cast %0 : vector<4x16x288xbf16> to vector<64x288xbf16>
    %c0_2 = arith.constant 0 : index
    %c0_3 = arith.constant 0 : index
    %2 = vector.load %arg2[%c0_2, %c0_3] : memref<288x64xbf16, #tpu.memory_space<vmem>>, vector<288x64xbf16>
    %cst = arith.constant dense<0.000000e+00> : vector<64x64xf32>
    %3 = tpu.matmul %1, %2, %cst {dimension_numbers = #tpu.dot_dimension_numbers<[1], [0], [0], [1], [0, 0, 1, 1], [], []>} : vector<64x288xbf16>, vector<288x64xbf16>, vector<64x64xf32> -> vector<64x64xf32>
    %4 = vector.shape_cast %3 : vector<64x64xf32> to vector<4x16x64xf32>
    %cst_4 = arith.constant dense<0xFF800000> : vector<16x64xf32>
    %5 = vector.multi_reduction <maximumf>, %4, %cst_4 [0] : vector<4x16x64xf32> to vector<16x64xf32>
    %c0_5 = arith.constant 0 : index
    %c0_6 = arith.constant 0 : index
    %6 = vector.load %arg3[%c0_5, %c0_6] : memref<1x64xf32, #tpu.memory_space<vmem>>, vector<1x64xf32>
    %7 = vector.broadcast %6 : vector<1x64xf32> to vector<16x64xf32>
    %8 = arith.addf %5, %7 : vector<16x64xf32>
    %cst_7 = arith.constant 0.000000e+00 : f32
    %9 = vector.broadcast %cst_7 : f32 to vector<16x64xf32>
    %10 = arith.maximumf %8, %9 : vector<16x64xf32>
    %11 = arith.truncf %10 : vector<16x64xf32> to vector<16x64xbf16>
    %12 = vector.shape_cast %11 : vector<16x64xbf16> to vector<1x16x64xbf16>
    %13 = vector.extract_strided_slice %12 {offsets = [0, 0, 0], sizes = [1, 1, 64], strides = [1, 1, 1]} : vector<1x16x64xbf16> to vector<1x1x64xbf16>
    %14 = vector.shape_cast %13 : vector<1x1x64xbf16> to vector<1x64xbf16>
    %15 = vector.extract_strided_slice %12 {offsets = [0, 1, 0], sizes = [1, 1, 64], strides = [1, 1, 1]} : vector<1x16x64xbf16> to vector<1x1x64xbf16>
    %16 = vector.shape_cast %15 : vector<1x1x64xbf16> to vector<1x64xbf16>
    %17 = vector.extract_strided_slice %12 {offsets = [0, 2, 0], sizes = [1, 1, 64], strides = [1, 1, 1]} : vector<1x16x64xbf16> to vector<1x1x64xbf16>
    %18 = vector.shape_cast %17 : vector<1x1x64xbf16> to vector<1x64xbf16>
    %19 = vector.extract_strided_slice %12 {offsets = [0, 3, 0], sizes = [1, 1, 64], strides = [1, 1, 1]} : vector<1x16x64xbf16> to vector<1x1x64xbf16>
    %20 = vector.shape_cast %19 : vector<1x1x64xbf16> to vector<1x64xbf16>
    %21 = vector.extract_strided_slice %12 {offsets = [0, 4, 0], sizes = [1, 1, 64], strides = [1, 1, 1]} : vector<1x16x64xbf16> to vector<1x1x64xbf16>
    %22 = vector.shape_cast %21 : vector<1x1x64xbf16> to vector<1x64xbf16>
    %23 = vector.extract_strided_slice %12 {offsets = [0, 5, 0], sizes = [1, 1, 64], strides = [1, 1, 1]} : vector<1x16x64xbf16> to vector<1x1x64xbf16>
    %24 = vector.shape_cast %23 : vector<1x1x64xbf16> to vector<1x64xbf16>
    %25 = vector.extract_strided_slice %12 {offsets = [0, 6, 0], sizes = [1, 1, 64], strides = [1, 1, 1]} : vector<1x16x64xbf16> to vector<1x1x64xbf16>
    %26 = vector.shape_cast %25 : vector<1x1x64xbf16> to vector<1x64xbf16>
    %27 = vector.extract_strided_slice %12 {offsets = [0, 7, 0], sizes = [1, 1, 64], strides = [1, 1, 1]} : vector<1x16x64xbf16> to vector<1x1x64xbf16>
    %28 = vector.shape_cast %27 : vector<1x1x64xbf16> to vector<1x64xbf16>
    %29 = vector.extract_strided_slice %12 {offsets = [0, 8, 0], sizes = [1, 1, 64], strides = [1, 1, 1]} : vector<1x16x64xbf16> to vector<1x1x64xbf16>
    %30 = vector.shape_cast %29 : vector<1x1x64xbf16> to vector<1x64xbf16>
    %31 = vector.extract_strided_slice %12 {offsets = [0, 9, 0], sizes = [1, 1, 64], strides = [1, 1, 1]} : vector<1x16x64xbf16> to vector<1x1x64xbf16>
    %32 = vector.shape_cast %31 : vector<1x1x64xbf16> to vector<1x64xbf16>
    %33 = vector.extract_strided_slice %12 {offsets = [0, 10, 0], sizes = [1, 1, 64], strides = [1, 1, 1]} : vector<1x16x64xbf16> to vector<1x1x64xbf16>
    %34 = vector.shape_cast %33 : vector<1x1x64xbf16> to vector<1x64xbf16>
    %35 = vector.extract_strided_slice %12 {offsets = [0, 11, 0], sizes = [1, 1, 64], strides = [1, 1, 1]} : vector<1x16x64xbf16> to vector<1x1x64xbf16>
    %36 = vector.shape_cast %35 : vector<1x1x64xbf16> to vector<1x64xbf16>
    %37 = vector.extract_strided_slice %12 {offsets = [0, 12, 0], sizes = [1, 1, 64], strides = [1, 1, 1]} : vector<1x16x64xbf16> to vector<1x1x64xbf16>
    %38 = vector.shape_cast %37 : vector<1x1x64xbf16> to vector<1x64xbf16>
    %39 = vector.extract_strided_slice %12 {offsets = [0, 13, 0], sizes = [1, 1, 64], strides = [1, 1, 1]} : vector<1x16x64xbf16> to vector<1x1x64xbf16>
    %40 = vector.shape_cast %39 : vector<1x1x64xbf16> to vector<1x64xbf16>
    %41 = vector.extract_strided_slice %12 {offsets = [0, 14, 0], sizes = [1, 1, 64], strides = [1, 1, 1]} : vector<1x16x64xbf16> to vector<1x1x64xbf16>
    %42 = vector.shape_cast %41 : vector<1x1x64xbf16> to vector<1x64xbf16>
    %43 = vector.extract_strided_slice %12 {offsets = [0, 15, 0], sizes = [1, 1, 64], strides = [1, 1, 1]} : vector<1x16x64xbf16> to vector<1x1x64xbf16>
    %44 = vector.shape_cast %43 : vector<1x1x64xbf16> to vector<1x64xbf16>
    %c0_8 = arith.constant 0 : index
    %c0_9 = arith.constant 0 : index
    %c0_10 = arith.constant 0 : index
    %45 = vector.load %arg4[%c0_8, %c0_9, %c0_10] : memref<9x64x128xbf16, #tpu.memory_space<vmem>>, vector<1x64x128xbf16>
    %46 = vector.shape_cast %45 : vector<1x64x128xbf16> to vector<64x128xbf16>
    %c1 = arith.constant 1 : index
    %c0_11 = arith.constant 0 : index
    %c0_12 = arith.constant 0 : index
    %47 = vector.load %arg4[%c1, %c0_11, %c0_12] : memref<9x64x128xbf16, #tpu.memory_space<vmem>>, vector<1x64x128xbf16>
    %48 = vector.shape_cast %47 : vector<1x64x128xbf16> to vector<64x128xbf16>
    %c2 = arith.constant 2 : index
    %c0_13 = arith.constant 0 : index
    %c0_14 = arith.constant 0 : index
    %49 = vector.load %arg4[%c2, %c0_13, %c0_14] : memref<9x64x128xbf16, #tpu.memory_space<vmem>>, vector<1x64x128xbf16>
    %50 = vector.shape_cast %49 : vector<1x64x128xbf16> to vector<64x128xbf16>
    %c3 = arith.constant 3 : index
    %c0_15 = arith.constant 0 : index
    %c0_16 = arith.constant 0 : index
    %51 = vector.load %arg4[%c3, %c0_15, %c0_16] : memref<9x64x128xbf16, #tpu.memory_space<vmem>>, vector<1x64x128xbf16>
    %52 = vector.shape_cast %51 : vector<1x64x128xbf16> to vector<64x128xbf16>
    %c4 = arith.constant 4 : index
    %c0_17 = arith.constant 0 : index
    %c0_18 = arith.constant 0 : index
    %53 = vector.load %arg4[%c4, %c0_17, %c0_18] : memref<9x64x128xbf16, #tpu.memory_space<vmem>>, vector<1x64x128xbf16>
    %54 = vector.shape_cast %53 : vector<1x64x128xbf16> to vector<64x128xbf16>
    %c5 = arith.constant 5 : index
    %c0_19 = arith.constant 0 : index
    %c0_20 = arith.constant 0 : index
    %55 = vector.load %arg4[%c5, %c0_19, %c0_20] : memref<9x64x128xbf16, #tpu.memory_space<vmem>>, vector<1x64x128xbf16>
    %56 = vector.shape_cast %55 : vector<1x64x128xbf16> to vector<64x128xbf16>
    %c6 = arith.constant 6 : index
    %c0_21 = arith.constant 0 : index
    %c0_22 = arith.constant 0 : index
    %57 = vector.load %arg4[%c6, %c0_21, %c0_22] : memref<9x64x128xbf16, #tpu.memory_space<vmem>>, vector<1x64x128xbf16>
    %58 = vector.shape_cast %57 : vector<1x64x128xbf16> to vector<64x128xbf16>
    %c7 = arith.constant 7 : index
    %c0_23 = arith.constant 0 : index
    %c0_24 = arith.constant 0 : index
    %59 = vector.load %arg4[%c7, %c0_23, %c0_24] : memref<9x64x128xbf16, #tpu.memory_space<vmem>>, vector<1x64x128xbf16>
    %60 = vector.shape_cast %59 : vector<1x64x128xbf16> to vector<64x128xbf16>
    %c8 = arith.constant 8 : index
    %c0_25 = arith.constant 0 : index
    %c0_26 = arith.constant 0 : index
    %61 = vector.load %arg4[%c8, %c0_25, %c0_26] : memref<9x64x128xbf16, #tpu.memory_space<vmem>>, vector<1x64x128xbf16>
    %62 = vector.shape_cast %61 : vector<1x64x128xbf16> to vector<64x128xbf16>
    %cst_27 = arith.constant dense<0.000000e+00> : vector<1x128xf32>
    %63 = tpu.matmul %14, %54, %cst_27 {dimension_numbers = #tpu.dot_dimension_numbers<[1], [0], [0], [1], [0, 0, 1, 1], [], []>} : vector<1x64xbf16>, vector<64x128xbf16>, vector<1x128xf32> -> vector<1x128xf32>
    %cst_28 = arith.constant dense<0.000000e+00> : vector<1x128xf32>
    %64 = tpu.matmul %16, %56, %cst_28 {dimension_numbers = #tpu.dot_dimension_numbers<[1], [0], [0], [1], [0, 0, 1, 1], [], []>} : vector<1x64xbf16>, vector<64x128xbf16>, vector<1x128xf32> -> vector<1x128xf32>
    %65 = arith.addf %63, %64 : vector<1x128xf32>
    %cst_29 = arith.constant dense<0.000000e+00> : vector<1x128xf32>
    %66 = tpu.matmul %22, %60, %cst_29 {dimension_numbers = #tpu.dot_dimension_numbers<[1], [0], [0], [1], [0, 0, 1, 1], [], []>} : vector<1x64xbf16>, vector<64x128xbf16>, vector<1x128xf32> -> vector<1x128xf32>
    %67 = arith.addf %65, %66 : vector<1x128xf32>
    %cst_30 = arith.constant dense<0.000000e+00> : vector<1x128xf32>
    %68 = tpu.matmul %24, %62, %cst_30 {dimension_numbers = #tpu.dot_dimension_numbers<[1], [0], [0], [1], [0, 0, 1, 1], [], []>} : vector<1x64xbf16>, vector<64x128xbf16>, vector<1x128xf32> -> vector<1x128xf32>
    %69 = arith.addf %67, %68 : vector<1x128xf32>
    %cst_31 = arith.constant dense<0.000000e+00> : vector<1x128xf32>
    %70 = tpu.matmul %16, %52, %cst_31 {dimension_numbers = #tpu.dot_dimension_numbers<[1], [0], [0], [1], [0, 0, 1, 1], [], []>} : vector<1x64xbf16>, vector<64x128xbf16>, vector<1x128xf32> -> vector<1x128xf32>
    %cst_32 = arith.constant dense<0.000000e+00> : vector<1x128xf32>
    %71 = tpu.matmul %18, %54, %cst_32 {dimension_numbers = #tpu.dot_dimension_numbers<[1], [0], [0], [1], [0, 0, 1, 1], [], []>} : vector<1x64xbf16>, vector<64x128xbf16>, vector<1x128xf32> -> vector<1x128xf32>
    %72 = arith.addf %70, %71 : vector<1x128xf32>
    %cst_33 = arith.constant dense<0.000000e+00> : vector<1x128xf32>
    %73 = tpu.matmul %20, %56, %cst_33 {dimension_numbers = #tpu.dot_dimension_numbers<[1], [0], [0], [1], [0, 0, 1, 1], [], []>} : vector<1x64xbf16>, vector<64x128xbf16>, vector<1x128xf32> -> vector<1x128xf32>
    %74 = arith.addf %72, %73 : vector<1x128xf32>
    %cst_34 = arith.constant dense<0.000000e+00> : vector<1x128xf32>
    %75 = tpu.matmul %24, %58, %cst_34 {dimension_numbers = #tpu.dot_dimension_numbers<[1], [0], [0], [1], [0, 0, 1, 1], [], []>} : vector<1x64xbf16>, vector<64x128xbf16>, vector<1x128xf32> -> vector<1x128xf32>
    %76 = arith.addf %74, %75 : vector<1x128xf32>
    %cst_35 = arith.constant dense<0.000000e+00> : vector<1x128xf32>
    %77 = tpu.matmul %26, %60, %cst_35 {dimension_numbers = #tpu.dot_dimension_numbers<[1], [0], [0], [1], [0, 0, 1, 1], [], []>} : vector<1x64xbf16>, vector<64x128xbf16>, vector<1x128xf32> -> vector<1x128xf32>
    %78 = arith.addf %76, %77 : vector<1x128xf32>
    %cst_36 = arith.constant dense<0.000000e+00> : vector<1x128xf32>
    %79 = tpu.matmul %28, %62, %cst_36 {dimension_numbers = #tpu.dot_dimension_numbers<[1], [0], [0], [1], [0, 0, 1, 1], [], []>} : vector<1x64xbf16>, vector<64x128xbf16>, vector<1x128xf32> -> vector<1x128xf32>
    %80 = arith.addf %78, %79 : vector<1x128xf32>
    %81 = arith.maximumf %69, %80 : vector<1x128xf32>
    %cst_37 = arith.constant dense<0.000000e+00> : vector<1x128xf32>
    %82 = tpu.matmul %22, %48, %cst_37 {dimension_numbers = #tpu.dot_dimension_numbers<[1], [0], [0], [1], [0, 0, 1, 1], [], []>} : vector<1x64xbf16>, vector<64x128xbf16>, vector<1x128xf32> -> vector<1x128xf32>
    %cst_38 = arith.constant dense<0.000000e+00> : vector<1x128xf32>
    %83 = tpu.matmul %24, %50, %cst_38 {dimension_numbers = #tpu.dot_dimension_numbers<[1], [0], [0], [1], [0, 0, 1, 1], [], []>} : vector<1x64xbf16>, vector<64x128xbf16>, vector<1x128xf32> -> vector<1x128xf32>
    %84 = arith.addf %82, %83 : vector<1x128xf32>
    %cst_39 = arith.constant dense<0.000000e+00> : vector<1x128xf32>
    %85 = tpu.matmul %30, %54, %cst_39 {dimension_numbers = #tpu.dot_dimension_numbers<[1], [0], [0], [1], [0, 0, 1, 1], [], []>} : vector<1x64xbf16>, vector<64x128xbf16>, vector<1x128xf32> -> vector<1x128xf32>
    %86 = arith.addf %84, %85 : vector<1x128xf32>
    %cst_40 = arith.constant dense<0.000000e+00> : vector<1x128xf32>
    %87 = tpu.matmul %32, %56, %cst_40 {dimension_numbers = #tpu.dot_dimension_numbers<[1], [0], [0], [1], [0, 0, 1, 1], [], []>} : vector<1x64xbf16>, vector<64x128xbf16>, vector<1x128xf32> -> vector<1x128xf32>
    %88 = arith.addf %86, %87 : vector<1x128xf32>
    %cst_41 = arith.constant dense<0.000000e+00> : vector<1x128xf32>
    %89 = tpu.matmul %38, %60, %cst_41 {dimension_numbers = #tpu.dot_dimension_numbers<[1], [0], [0], [1], [0, 0, 1, 1], [], []>} : vector<1x64xbf16>, vector<64x128xbf16>, vector<1x128xf32> -> vector<1x128xf32>
    %90 = arith.addf %88, %89 : vector<1x128xf32>
    %cst_42 = arith.constant dense<0.000000e+00> : vector<1x128xf32>
    %91 = tpu.matmul %40, %62, %cst_42 {dimension_numbers = #tpu.dot_dimension_numbers<[1], [0], [0], [1], [0, 0, 1, 1], [], []>} : vector<1x64xbf16>, vector<64x128xbf16>, vector<1x128xf32> -> vector<1x128xf32>
    %92 = arith.addf %90, %91 : vector<1x128xf32>
    %93 = arith.maximumf %81, %92 : vector<1x128xf32>
    %cst_43 = arith.constant dense<0.000000e+00> : vector<1x128xf32>
    %94 = tpu.matmul %24, %46, %cst_43 {dimension_numbers = #tpu.dot_dimension_numbers<[1], [0], [0], [1], [0, 0, 1, 1], [], []>} : vector<1x64xbf16>, vector<64x128xbf16>, vector<1x128xf32> -> vector<1x128xf32>
    %cst_44 = arith.constant dense<0.000000e+00> : vector<1x128xf32>
    %95 = tpu.matmul %26, %48, %cst_44 {dimension_numbers = #tpu.dot_dimension_numbers<[1], [0], [0], [1], [0, 0, 1, 1], [], []>} : vector<1x64xbf16>, vector<64x128xbf16>, vector<1x128xf32> -> vector<1x128xf32>
    %96 = arith.addf %94, %95 : vector<1x128xf32>
    %cst_45 = arith.constant dense<0.000000e+00> : vector<1x128xf32>
    %97 = tpu.matmul %28, %50, %cst_45 {dimension_numbers = #tpu.dot_dimension_numbers<[1], [0], [0], [1], [0, 0, 1, 1], [], []>} : vector<1x64xbf16>, vector<64x128xbf16>, vector<1x128xf32> -> vector<1x128xf32>
    %98 = arith.addf %96, %97 : vector<1x128xf32>
    %cst_46 = arith.constant dense<0.000000e+00> : vector<1x128xf32>
    %99 = tpu.matmul %32, %52, %cst_46 {dimension_numbers = #tpu.dot_dimension_numbers<[1], [0], [0], [1], [0, 0, 1, 1], [], []>} : vector<1x64xbf16>, vector<64x128xbf16>, vector<1x128xf32> -> vector<1x128xf32>
    %100 = arith.addf %98, %99 : vector<1x128xf32>
    %cst_47 = arith.constant dense<0.000000e+00> : vector<1x128xf32>
    %101 = tpu.matmul %34, %54, %cst_47 {dimension_numbers = #tpu.dot_dimension_numbers<[1], [0], [0], [1], [0, 0, 1, 1], [], []>} : vector<1x64xbf16>, vector<64x128xbf16>, vector<1x128xf32> -> vector<1x128xf32>
    %102 = arith.addf %100, %101 : vector<1x128xf32>
    %cst_48 = arith.constant dense<0.000000e+00> : vector<1x128xf32>
    %103 = tpu.matmul %36, %56, %cst_48 {dimension_numbers = #tpu.dot_dimension_numbers<[1], [0], [0], [1], [0, 0, 1, 1], [], []>} : vector<1x64xbf16>, vector<64x128xbf16>, vector<1x128xf32> -> vector<1x128xf32>
    %104 = arith.addf %102, %103 : vector<1x128xf32>
    %cst_49 = arith.constant dense<0.000000e+00> : vector<1x128xf32>
    %105 = tpu.matmul %40, %58, %cst_49 {dimension_numbers = #tpu.dot_dimension_numbers<[1], [0], [0], [1], [0, 0, 1, 1], [], []>} : vector<1x64xbf16>, vector<64x128xbf16>, vector<1x128xf32> -> vector<1x128xf32>
    %106 = arith.addf %104, %105 : vector<1x128xf32>
    %cst_50 = arith.constant dense<0.000000e+00> : vector<1x128xf32>
    %107 = tpu.matmul %42, %60, %cst_50 {dimension_numbers = #tpu.dot_dimension_numbers<[1], [0], [0], [1], [0, 0, 1, 1], [], []>} : vector<1x64xbf16>, vector<64x128xbf16>, vector<1x128xf32> -> vector<1x128xf32>
    %108 = arith.addf %106, %107 : vector<1x128xf32>
    %cst_51 = arith.constant dense<0.000000e+00> : vector<1x128xf32>
    %109 = tpu.matmul %44, %62, %cst_51 {dimension_numbers = #tpu.dot_dimension_numbers<[1], [0], [0], [1], [0, 0, 1, 1], [], []>} : vector<1x64xbf16>, vector<64x128xbf16>, vector<1x128xf32> -> vector<1x128xf32>
    %110 = arith.addf %108, %109 : vector<1x128xf32>
    %111 = arith.maximumf %93, %110 : vector<1x128xf32>
    %c0_52 = arith.constant 0 : index
    %c0_53 = arith.constant 0 : index
    %112 = vector.load %arg5[%c0_52, %c0_53] : memref<1x128xf32, #tpu.memory_space<vmem>>, vector<1x128xf32>
    %113 = arith.addf %111, %112 : vector<1x128xf32>
    %cst_54 = arith.constant 0.000000e+00 : f32
    %114 = vector.broadcast %cst_54 : f32 to vector<1x128xf32>
    %115 = arith.maximumf %113, %114 : vector<1x128xf32>
    %116 = arith.truncf %115 : vector<1x128xf32> to vector<1x128xbf16>
    %c0_55 = arith.constant 0 : index
    %c0_56 = arith.constant 0 : index
    %117 = vector.load %arg6[%c0_55, %c0_56] : memref<128x128xbf16, #tpu.memory_space<vmem>>, vector<128x128xbf16>
    %cst_57 = arith.constant dense<0.000000e+00> : vector<1x128xf32>
    %118 = tpu.matmul %116, %117, %cst_57 {dimension_numbers = #tpu.dot_dimension_numbers<[1], [0], [0], [1], [0, 0, 1, 1], [], []>} : vector<1x128xbf16>, vector<128x128xbf16>, vector<1x128xf32> -> vector<1x128xf32>
    %c0_58 = arith.constant 0 : index
    %c0_59 = arith.constant 0 : index
    %119 = vector.load %arg7[%c0_58, %c0_59] : memref<1x128xf32, #tpu.memory_space<vmem>>, vector<1x128xf32>
    %120 = arith.addf %118, %119 : vector<1x128xf32>
    %cst_60 = arith.constant 0.000000e+00 : f32
    %121 = vector.broadcast %cst_60 : f32 to vector<1x128xf32>
    %122 = arith.maximumf %120, %121 : vector<1x128xf32>
    %123 = arith.truncf %122 : vector<1x128xf32> to vector<1x128xbf16>
    %c0_61 = arith.constant 0 : index
    %c0_62 = arith.constant 0 : index
    %124 = vector.load %arg8[%c0_61, %c0_62] : memref<128x64xbf16, #tpu.memory_space<vmem>>, vector<128x64xbf16>
    %cst_63 = arith.constant dense<0.000000e+00> : vector<1x64xf32>
    %125 = tpu.matmul %123, %124, %cst_63 {dimension_numbers = #tpu.dot_dimension_numbers<[1], [0], [0], [1], [0, 0, 1, 1], [], []>} : vector<1x128xbf16>, vector<128x64xbf16>, vector<1x64xf32> -> vector<1x64xf32>
    %c0_64 = arith.constant 0 : index
    %c0_65 = arith.constant 0 : index
    %126 = vector.load %arg9[%c0_64, %c0_65] : memref<1x64xf32, #tpu.memory_space<vmem>>, vector<1x64xf32>
    %127 = arith.addf %125, %126 : vector<1x64xf32>
    %cst_66 = arith.constant 0.000000e+00 : f32
    %128 = vector.broadcast %cst_66 : f32 to vector<1x64xf32>
    %129 = arith.maximumf %127, %128 : vector<1x64xf32>
    %130 = arith.truncf %129 : vector<1x64xf32> to vector<1x64xbf16>
    %c0_67 = arith.constant 0 : index
    %c0_68 = arith.constant 0 : index
    %131 = vector.load %arg10[%c0_67, %c0_68] : memref<64x128xbf16, #tpu.memory_space<vmem>>, vector<64x128xbf16>
    %cst_69 = arith.constant dense<0.000000e+00> : vector<1x128xf32>
    %132 = tpu.matmul %130, %131, %cst_69 {dimension_numbers = #tpu.dot_dimension_numbers<[1], [0], [0], [1], [0, 0, 1, 1], [], []>} : vector<1x64xbf16>, vector<64x128xbf16>, vector<1x128xf32> -> vector<1x128xf32>
    %c0_70 = arith.constant 0 : index
    %c0_71 = arith.constant 0 : index
    %133 = vector.load %arg11[%c0_70, %c0_71] : memref<1x128xf32, #tpu.memory_space<vmem>>, vector<1x128xf32>
    %134 = arith.addf %132, %133 : vector<1x128xf32>
    %c0_72 = arith.constant 0 : index
    %c0_73 = arith.constant 0 : index
    %c0_74 = arith.constant 0 : index
    %135 = vector.load %arg12[%c0_72, %c0_73, %c0_74] : memref<1x1x128xf32, #tpu.memory_space<vmem>>, vector<1x1x128xf32>
    %136 = vector.shape_cast %135 : vector<1x1x128xf32> to vector<1x128xf32>
    %137 = vector.shape_cast %134 : vector<1x128xf32> to vector<1x1x128xf32>
    tpu.vector_store %arg12[%c0_72, %c0_73, %c0_74], %137 {strides = array<i32>} : memref<1x1x128xf32, #tpu.memory_space<vmem>>, vector<1x1x128xf32>,
    return
  }
  func.func @transform_0(%arg0: i32) -> (i32, i32, i32) {
    %c0_i32 = arith.constant 0 : i32
    %c0_i32_0 = arith.constant 0 : i32
    %c0_i32_1 = arith.constant 0 : i32
    return %c0_i32, %arg0, %c0_i32_0 : i32, i32, i32
  }
  func.func @transform_1(%arg0: i32) -> (i32, i32) {
    %c0_i32 = arith.constant 0 : i32
    %c0_i32_0 = arith.constant 0 : i32
    %c0_i32_1 = arith.constant 0 : i32
    return %c0_i32, %c0_i32_0 : i32, i32
  }
  func.func @transform_2(%arg0: i32) -> (i32, i32) {
    %c0_i32 = arith.constant 0 : i32
    %c0_i32_0 = arith.constant 0 : i32
    %c0_i32_1 = arith.constant 0 : i32
    return %c0_i32, %c0_i32_0 : i32, i32
  }
  func.func @transform_3(%arg0: i32) -> (i32, i32, i32) {
    %c0_i32 = arith.constant 0 : i32
    %c0_i32_0 = arith.constant 0 : i32
    %c0_i32_1 = arith.constant 0 : i32
    %c0_i32_2 = arith.constant 0 : i32
    return %c0_i32, %c0_i32_0, %c0_i32_1 : i32, i32, i32
  }
  func.func @transform_4(%arg0: i32) -> (i32, i32) {
    %c0_i32 = arith.constant 0 : i32
    %c0_i32_0 = arith.constant 0 : i32
    %c0_i32_1 = arith.constant 0 : i32
    return %c0_i32, %c0_i32_0 : i32, i32
  }
  func.func @transform_5(%arg0: i32) -> (i32, i32) {
    %c0_i32 = arith.constant 0 : i32
    %c0_i32_0 = arith.constant 0 : i32
    %c0_i32_1 = arith.constant 0 : i32
    return %c0_i32, %c0_i32_0 : i32, i32
  }
  func.func @transform_6(%arg0: i32) -> (i32, i32) {
    %c0_i32 = arith.constant 0 : i32
    %c0_i32_0 = arith.constant 0 : i32
    %c0_i32_1 = arith.constant 0 : i32
    return %c0_i32, %c0_i32_0 : i32, i32
  }
  func.func @transform_7(%arg0: i32) -> (i32, i32) {
    %c0_i32 = arith.constant 0 : i32
    %c0_i32_0 = arith.constant 0 : i32
    %c0_i32_1 = arith.constant 0 : i32
    return %c0_i32, %c0_i32_0 : i32, i32
  }
  func.func @transform_8(%arg0: i32) -> (i32, i32) {
    %c0_i32 = arith.constant 0 : i32
    %c0_i32_0 = arith.constant 0 : i32
    %c0_i32_1 = arith.constant 0 : i32
    return %c0_i32, %c0_i32_0 : i32, i32
  }
  func.func @transform_9(%arg0: i32) -> (i32, i32) {
    %c0_i32 = arith.constant 0 : i32
    %c0_i32_0 = arith.constant 0 : i32
    %c0_i32_1 = arith.constant 0 : i32
    return %c0_i32, %c0_i32_0 : i32, i32
  }
  func.func @transform_10(%arg0: i32) -> (i32, i32) {
    %c0_i32 = arith.constant 0 : i32
    %c0_i32_0 = arith.constant 0 : i32
    %c0_i32_1 = arith.constant 0 : i32
    return %c0_i32, %c0_i32_0 : i32, i32
  }
  func.func @transform_11(%arg0: i32) -> (i32, i32, i32) {
    %c0_i32 = arith.constant 0 : i32
    %c0_i32_0 = arith.constant 0 : i32
    %c0_i32_1 = arith.constant 0 : i32
    return %arg0, %c0_i32, %c0_i32_0 : i32, i32, i32
  }
}

</mosaic_0001>

<llo_original>
// kernel: cnn_multilabel_forward.2
$region0: #{cnn_multilabel_forward.2}
  #allocation0 [shape = 'u32[]', space=smem, size = 0x4, offset = 0x4, fixed_abs, tag = 'smem constant byte address 0x4 - core index']
  #allocation1 [shape = 'u32[72,128]{1,0:T(1,128)}', space=vmem, size = 0x9000, scoped, tag = 'internal scratch']
  %s0 = inlined_call_operand.vmem [shape: bf16[4,512,9], index: 0, kind: input, shape index: {}]
  %s1 = inlined_call_operand.vmem [shape: bf16[9,32], index: 1, kind: input, shape index: {}]
  %s2 = inlined_call_operand.vmem [shape: f32[1,32], index: 2, kind: input, shape index: {}]
  %s3 = inlined_call_operand.vmem [shape: bf16[512,32], index: 3, kind: output, shape index: {}]
  %s4 = sld [smem:[#allocation0]]
  $region86: #{cnn_multilabel_forward.2} parent=0
    _
  %s6 = ssub.s32 1, %s4
  %s7 = scalar_select 0, %s6, %s4
  $region1: #{cnn_multilabel_forward.2} parent=0
    #allocation2 [shape = 'u8[524288]{0}', space=vmem, size = 0x80000, scoped, tag = 'input window, operand 0']
    loop: start=0, step=1, limit=4
    $region2: #{cnn_multilabel_forward.2} parent=1 // loop_pre_header
      _
    $region3: #{cnn_multilabel_forward.2} parent=1 // loop_header
      %s9 = sphi 0, %s13
      %p10 = scmp.ge.s32.totalorder %s9, 4
      %s19 = sphi 0, %s21
      %s22 = sphi 0, %s19
      %s23 = sphi 0, %s22
      %s39 = sphi 0, %s23
      %s43 = sphi 0, %s43
      %s45 = sphi 0, %s43
      %s46 = sphi 0, %s45
      %s60 = sphi 0, %s46
      %s64 = sphi 0, %s64
      %s66 = sphi 0, %s64
      %s67 = sphi 0, %s66
      %s81 = sphi 0, %s67
      %s87 = sphi 0, %s89
      %s90 = sphi 0, %s87
      %s91 = sphi 0, %s90
      %s107 = sphi 0, %s91
    $region4: #{cnn_multilabel_forward.2} parent=1 // loop_header_branch
      %12 = sbr.rel (%p10) target = $region8
    $region5: #{cnn_multilabel_forward.2} parent=1 // loop_body
      %s14 = ssub.s32 %s9, 1
      %s15 = ssub.s32 %s9, 2
      %s16 = sadd.s32 %s9, 1
      %s17 = ssub.s32 %s9, %s16
      %p18 = scmp.eq.s32.totalorder %s17, 0
      %s20 = sadd.s32 %s19, 1
      %s21 = scalar_select %p18, %s19, %s20
      %p24 = pneg %p18
      %p25 = scmp.eq.s32.totalorder %s9, 1
      %p26 = por %p24, %p25
      %p27 = scmp.ne.s32.totalorder %s19, %s22
      %p28 = scmp.eq.s32.totalorder %s9, 0
      %p29 = por %p27, %p28
      %p30 = scmp.ne.s32.totalorder %s19, %s22
      %p31 = scmp.eq.s32.totalorder %s14, 1
      %p32 = por %p30, %p31
      %p33 = scmp.ne.s32.totalorder %s22, %s23
      %p34 = scmp.eq.s32.totalorder %s14, 0
      %p35 = por %p33, %p34
      %p36 = scmp.ne.s32.totalorder %s22, %s23
      %p37 = scmp.eq.s32.totalorder %s15, 1
      %p38 = por %p36, %p37
      %p40 = scmp.ne.s32.totalorder %s23, %s39
      %p41 = scmp.eq.s32.totalorder %s15, 0
      %p42 = por %p40, %p41
      %s44 = sadd.s32 %s43, 1
      %p47 = scmp.eq.s32.totalorder %s9, 1
      %p48 = scmp.ne.s32.totalorder %s43, %s45
      %p49 = scmp.eq.s32.totalorder %s9, 0
      %p50 = por %p48, %p49
      %p51 = scmp.ne.s32.totalorder %s43, %s45
      %p52 = scmp.eq.s32.totalorder %s14, 1
      %p53 = por %p51, %p52
      %p54 = scmp.ne.s32.totalorder %s45, %s46
      %p55 = scmp.eq.s32.totalorder %s14, 0
      %p56 = por %p54, %p55
      %p57 = scmp.ne.s32.totalorder %s45, %s46
      %p58 = scmp.eq.s32.totalorder %s15, 1
      %p59 = por %p57, %p58
      %p61 = scmp.ne.s32.totalorder %s46, %s60
      %p62 = scmp.eq.s32.totalorder %s15, 0
      %p63 = por %p61, %p62
      %s65 = sadd.s32 %s64, 1
      %p68 = scmp.eq.s32.totalorder %s9, 1
      %p69 = scmp.ne.s32.totalorder %s64, %s66
      %p70 = scmp.eq.s32.totalorder %s9, 0
      %p71 = por %p69, %p70
      %p72 = scmp.ne.s32.totalorder %s64, %s66
      %p73 = scmp.eq.s32.totalorder %s14, 1
      %p74 = por %p72, %p73
      %p75 = scmp.ne.s32.totalorder %s66, %s67
      %p76 = scmp.eq.s32.totalorder %s14, 0
      %p77 = por %p75, %p76
      %p78 = scmp.ne.s32.totalorder %s66, %s67
      %p79 = scmp.eq.s32.totalorder %s15, 1
      %p80 = por %p78, %p79
      %p82 = scmp.ne.s32.totalorder %s67, %s81
      %p83 = scmp.eq.s32.totalorder %s15, 0
      %p84 = por %p82, %p83
      %s85 = ssub.s32 %s9, %s16
      %p86 = scmp.eq.s32.totalorder %s85, 0
      %s88 = sadd.s32 %s87, 1
      %s89 = scalar_select %p86, %s87, %s88
      %p92 = pneg %p86
      %p93 = scmp.eq.s32.totalorder %s9, 1
      %p94 = por %p92, %p93
      %p95 = scmp.ne.s32.totalorder %s87, %s90
      %p96 = scmp.eq.s32.totalorder %s9, 0
      %p97 = por %p95, %p96
      %p98 = scmp.ne.s32.totalorder %s87, %s90
      %p99 = scmp.eq.s32.totalorder %s14, 1
      %p100 = por %p98, %p99
      %p101 = scmp.ne.s32.totalorder %s90, %s91
      %p102 = scmp.eq.s32.totalorder %s14, 0
      %p103 = por %p101, %p102
      %p104 = scmp.ne.s32.totalorder %s90, %s91
      %p105 = scmp.eq.s32.totalorder %s15, 1
      %p106 = por %p104, %p105
      %p108 = scmp.ne.s32.totalorder %s91, %s107
      %p109 = scmp.eq.s32.totalorder %s15, 0
      %p110 = por %p108, %p109
      %p111 = scmp.le.s32.totalorder 1, %s9
      %p112 = scmp.lt.s32.totalorder %s9, 3
      %p113 = pnand %p111, %p112
      %p114 = pneg %p113
      // Predicated region
      $region9: #{cnn_multilabel_forward.2} parent=5 // pred_check
        _
      $region10: #{cnn_multilabel_forward.2} parent=5 // pred_check_branch
        %116 = sbr.rel (%p113) target = $region12
      $region11: #{cnn_multilabel_forward.2} parent=5 // pred_region
        %s117 = ssub.s32 %s9, 1
        // Predicated region
        $region13: #{cnn_multilabel_forward.2} parent=11 // pred_check
          %p118 = pneg %p56
        $region14: #{cnn_multilabel_forward.2} parent=11 // pred_check_branch
          %120 = sbr.rel (%p118) target = $region16
        $region15: #{cnn_multilabel_forward.2} parent=11 // pred_region
          _
        $region16: #{cnn_multilabel_forward.2} parent=11 // pred_fallthru
          _
        // Predicated region
        $region17: #{cnn_multilabel_forward.2} parent=11 // pred_check
          %p121 = pneg %p77
        $region18: #{cnn_multilabel_forward.2} parent=11 // pred_check_branch
          %123 = sbr.rel (%p121) target = $region20
        $region19: #{cnn_multilabel_forward.2} parent=11 // pred_region
          _
        $region20: #{cnn_multilabel_forward.2} parent=11 // pred_fallthru
          _
      $region12: #{cnn_multilabel_forward.2} parent=5 // pred_fallthru
        _
      %p124 = scmp.lt.s32.totalorder %s9, 2
      // Predicated region
      $region21: #{cnn_multilabel_forward.2} parent=5 // pred_check
        %p125 = pneg %p124
      $region22: #{cnn_multilabel_forward.2} parent=5 // pred_check_branch
        %127 = sbr.rel (%p125) target = $region24
      $region23: #{cnn_multilabel_forward.2} parent=5 // pred_region
        // Predicated region
        $region25: #{cnn_multilabel_forward.2} parent=23 // pred_check
          %p128 = pneg %p29
        $region26: #{cnn_multilabel_forward.2} parent=23 // pred_check_branch
          %130 = sbr.rel (%p128) target = $region28
        $region27: #{cnn_multilabel_forward.2} parent=23 // pred_region
          %s131 = sand.u32 %s19, 1
          %s132 = sand.u32 %s19, 1
          %s133 = smul.addr %s132, 512
          %s134 = scalar_lea.vmem [#allocation2], %s133
          %s135 = smul.u32 32, %s9
          %s136 = smul.addr %s135, 4
          %s137 = scalar_lea.vmem %s0, %s136
          // Predicated region
          $region29: #{cnn_multilabel_forward.2} parent=27 // pred_check
            _
          $region30: #{cnn_multilabel_forward.2} parent=27 // pred_check_branch
            %139 = sbr.rel (0) target = $region32
          $region31: #{cnn_multilabel_forward.2} parent=27 // pred_region
            // Predicated region
            $region33: #{cnn_multilabel_forward.2} parent=31 // pred_check
              _
            $region34: #{cnn_multilabel_forward.2} parent=31 // pred_check_branch
              %141 = sbr.rel target = $region36
            $region35: #{cnn_multilabel_forward.2} parent=31 // pred_region
              // Predicated region
              $region48: #{cnn_multilabel_forward.2} parent=35 // pred_check
                _
              $region49: #{cnn_multilabel_forward.2} parent=35 // pred_check_branch
                %411 = sbr.rel (0) target = $region51
              $region50: #{cnn_multilabel_forward.2} parent=35 // pred_region
                loop: start=0, step=1, limit=1
                $region52: #{cnn_multilabel_forward.2} parent=50 // loop_pre_header
                  _
                $region53: #{cnn_multilabel_forward.2} parent=50 // loop_header
                  %s413 = sphi 0, %s417
                  %p414 = scmp.ge.s32.totalorder %s413, 1
                  %s418 = sphi %s137, %s137
                  %s419 = sphi %s134, %s134
                $region54: #{cnn_multilabel_forward.2} parent=50 // loop_header_branch
                  %416 = sbr.rel (%p414) target = $region58
                $region55: #{cnn_multilabel_forward.2} parent=50 // loop_body
                  _
                $region56: #{cnn_multilabel_forward.2} parent=50 // loop_footer
                  %s417 = sadd.s32 1, %s413
                $region57: #{cnn_multilabel_forward.2} parent=50 // loop_footer_branch
                  %412 = sbr.rel target = $region53
                $region58: #{cnn_multilabel_forward.2} parent=50 // loop_exit
                  _
                %s421 = ssub.s32 16, 1
                loop: start=0, step=1, limit=1
                $region59: #{cnn_multilabel_forward.2} parent=50 // loop_pre_header
                  _
                $region60: #{cnn_multilabel_forward.2} parent=50 // loop_header
                  %s423 = sphi 0, %s427
                  %p424 = scmp.ge.s32.totalorder %s423, 1
                  %s428 = sphi %s137, %s137
                  %s429 = sphi %s134, %s134
                $region61: #{cnn_multilabel_forward.2} parent=50 // loop_header_branch
                  %426 = sbr.rel (%p424) target = $region65
                $region62: #{cnn_multilabel_forward.2} parent=50 // loop_body
                  %v430 = vld [vmem:[%s428] sm:%s421]
                  %431 = vst [vmem:[%s429] sm:%s421] %v430
                  %v432 = vld [vmem:[%s428 + $0x4] sm:%s421]
                  %433 = vst [vmem:[%s429 + $0x4] sm:%s421] %v432
                  %v434 = vld [vmem:[%s428 + $0x8] sm:%s421]
                  %435 = vst [vmem:[%s429 + $0x8] sm:%s421] %v434
                  %v436 = vld [vmem:[%s428 + $0xc] sm:%s421]
                  %437 = vst [vmem:[%s429 + $0xc] sm:%s421] %v436
                  %v438 = vld [vmem:[%s428 + $0x10] sm:%s421]
                  %439 = vst [vmem:[%s429 + $0x10] sm:%s421] %v438
                  %v440 = vld [vmem:[%s428 + $0x14] sm:%s421]
                  %441 = vst [vmem:[%s429 + $0x14] sm:%s421] %v440
                  %v442 = vld [vmem:[%s428 + $0x18] sm:%s421]
                  %443 = vst [vmem:[%s429 + $0x18] sm:%s421] %v442
                  %v444 = vld [vmem:[%s428 + $0x1c] sm:%s421]
                  %445 = vst [vmem:[%s429 + $0x1c] sm:%s421] %v444
                  %v446 = vld [vmem:[%s428 + $0x20] sm:%s421]
                  %447 = vst [vmem:[%s429 + $0x20] sm:%s421] %v446
                  %v448 = vld [vmem:[%s428 + $0x24] sm:%s421]
                  %449 = vst [vmem:[%s429 + $0x24] sm:%s421] %v448
                  %v450 = vld [vmem:[%s428 + $0x28] sm:%s421]
                  %451 = vst [vmem:[%s429 + $0x28] sm:%s421] %v450
                  %v452 = vld [vmem:[%s428 + $0x2c] sm:%s421]
                  %453 = vst [vmem:[%s429 + $0x2c] sm:%s421] %v452
                  %v454 = vld [vmem:[%s428 + $0x30] sm:%s421]
                  %455 = vst [vmem:[%s429 + $0x30] sm:%s421] %v454
                  %v456 = vld [vmem:[%s428 + $0x34] sm:%s421]
                  %457 = vst [vmem:[%s429 + $0x34] sm:%s421] %v456
                  %v458 = vld [vmem:[%s428 + $0x38] sm:%s421]
                  %459 = vst [vmem:[%s429 + $0x38] sm:%s421] %v458
                  %v460 = vld [vmem:[%s428 + $0x3c] sm:%s421]
                  %461 = vst [vmem:[%s429 + $0x3c] sm:%s421] %v460
                  %v462 = vld [vmem:[%s428 + $0x40] sm:%s421]
                  %463 = vst [vmem:[%s429 + $0x40] sm:%s421] %v462
                  %v464 = vld [vmem:[%s428 + $0x44] sm:%s421]
                  %465 = vst [vmem:[%s429 + $0x44] sm:%s421] %v464
                  %v466 = vld [vmem:[%s428 + $0x48] sm:%s421]
                  %467 = vst [vmem:[%s429 + $0x48] sm:%s421] %v466
                  %v468 = vld [vmem:[%s428 + $0x4c] sm:%s421]
                  %469 = vst [vmem:[%s429 + $0x4c] sm:%s421] %v468
                  %v470 = vld [vmem:[%s428 + $0x50] sm:%s421]
                  %471 = vst [vmem:[%s429 + $0x50] sm:%s421] %v470
                  %v472 = vld [vmem:[%s428 + $0x54] sm:%s421]
                  %473 = vst [vmem:[%s429 + $0x54] sm:%s421] %v472
                  %v474 = vld [vmem:[%s428 + $0x58] sm:%s421]
                  %475 = vst [vmem:[%s429 + $0x58] sm:%s421] %v474
                  %v476 = vld [vmem:[%s428 + $0x5c] sm:%s421]
                  %477 = vst [vmem:[%s429 + $0x5c] sm:%s421] %v476
                  %v478 = vld [vmem:[%s428 + $0x60] sm:%s421]
                  %479 = vst [vmem:[%s429 + $0x60] sm:%s421] %v478
                  %v480 = vld [vmem:[%s428 + $0x64] sm:%s421]
                  %481 = vst [vmem:[%s429 + $0x64] sm:%s421] %v480
                  %v482 = vld [vmem:[%s428 + $0x68] sm:%s421]
                  %483 = vst [vmem:[%s429 + $0x68] sm:%s421] %v482
                  %v484 = vld [vmem:[%s428 + $0x6c] sm:%s421]
                  %485 = vst [vmem:[%s429 + $0x6c] sm:%s421] %v484
                  %v486 = vld [vmem:[%s428 + $0x70] sm:%s421]
                  %487 = vst [vmem:[%s429 + $0x70] sm:%s421] %v486
                  %v488 = vld [vmem:[%s428 + $0x74] sm:%s421]
                  %489 = vst [vmem:[%s429 + $0x74] sm:%s421] %v488
                  %v490 = vld [vmem:[%s428 + $0x78] sm:%s421]
                  %491 = vst [vmem:[%s429 + $0x78] sm:%s421] %v490
                  %v492 = vld [vmem:[%s428 + $0x7c] sm:%s421]
                  %493 = vst [vmem:[%s429 + $0x7c] sm:%s421] %v492
                  %v494 = vld [vmem:[%s428 + $0x100] sm:%s421]
                  %495 = vst [vmem:[%s429 + $0x80] sm:%s421] %v494
                  %v496 = vld [vmem:[%s428 + $0x104] sm:%s421]
                  %497 = vst [vmem:[%s429 + $0x84] sm:%s421] %v496
                  %v498 = vld [vmem:[%s428 + $0x108] sm:%s421]
                  %499 = vst [vmem:[%s429 + $0x88] sm:%s421] %v498
                  %v500 = vld [vmem:[%s428 + $0x10c] sm:%s421]
                  %501 = vst [vmem:[%s429 + $0x8c] sm:%s421] %v500
                  %v502 = vld [vmem:[%s428 + $0x110] sm:%s421]
                  %503 = vst [vmem:[%s429 + $0x90] sm:%s421] %v502
                  %v504 = vld [vmem:[%s428 + $0x114] sm:%s421]
                  %505 = vst [vmem:[%s429 + $0x94] sm:%s421] %v504
                  %v506 = vld [vmem:[%s428 + $0x118] sm:%s421]
                  %507 = vst [vmem:[%s429 + $0x98] sm:%s421] %v506
                  %v508 = vld [vmem:[%s428 + $0x11c] sm:%s421]
                  %509 = vst [vmem:[%s429 + $0x9c] sm:%s421] %v508
                  %v510 = vld [vmem:[%s428 + $0x120] sm:%s421]
                  %511 = vst [vmem:[%s429 + $0xa0] sm:%s421] %v510
                  %v512 = vld [vmem:[%s428 + $0x124] sm:%s421]
                  %513 = vst [vmem:[%s429 + $0xa4] sm:%s421] %v512
                  %v514 = vld [vmem:[%s428 + $0x128] sm:%s421]
                  %515 = vst [vmem:[%s429 + $0xa8] sm:%s421] %v514
                  %v516 = vld [vmem:[%s428 + $0x12c] sm:%s421]
                  %517 = vst [vmem:[%s429 + $0xac] sm:%s421] %v516
                  %v518 = vld [vmem:[%s428 + $0x130] sm:%s421]
                  %519 = vst [vmem:[%s429 + $0xb0] sm:%s421] %v518
                  %v520 = vld [vmem:[%s428 + $0x134] sm:%s421]
                  %521 = vst [vmem:[%s429 + $0xb4] sm:%s421] %v520
                  %v522 = vld [vmem:[%s428 + $0x138] sm:%s421]
                  %523 = vst [vmem:[%s429 + $0xb8] sm:%s421] %v522
                  %v524 = vld [vmem:[%s428 + $0x13c] sm:%s421]
                  %525 = vst [vmem:[%s429 + $0xbc] sm:%s421] %v524
                  %v526 = vld [vmem:[%s428 + $0x140] sm:%s421]
                  %527 = vst [vmem:[%s429 + $0xc0] sm:%s421] %v526
                  %v528 = vld [vmem:[%s428 + $0x144] sm:%s421]
                  %529 = vst [vmem:[%s429 + $0xc4] sm:%s421] %v528
                  %v530 = vld [vmem:[%s428 + $0x148] sm:%s421]
                  %531 = vst [vmem:[%s429 + $0xc8] sm:%s421] %v530
                  %v532 = vld [vmem:[%s428 + $0x14c] sm:%s421]
                  %533 = vst [vmem:[%s429 + $0xcc] sm:%s421] %v532
                  %v534 = vld [vmem:[%s428 + $0x150] sm:%s421]
                  %535 = vst [vmem:[%s429 + $0xd0] sm:%s421] %v534
                  %v536 = vld [vmem:[%s428 + $0x154] sm:%s421]
                  %537 = vst [vmem:[%s429 + $0xd4] sm:%s421] %v536
                  %v538 = vld [vmem:[%s428 + $0x158] sm:%s421]
                  %539 = vst [vmem:[%s429 + $0xd8] sm:%s421] %v538
                  %v540 = vld [vmem:[%s428 + $0x15c] sm:%s421]
                  %541 = vst [vmem:[%s429 + $0xdc] sm:%s421] %v540
                  %v542 = vld [vmem:[%s428 + $0x160] sm:%s421]
                  %543 = vst [vmem:[%s429 + $0xe0] sm:%s421] %v542
                  %v544 = vld [vmem:[%s428 + $0x164] sm:%s421]
                  %545 = vst [vmem:[%s429 + $0xe4] sm:%s421] %v544
                  %v546 = vld [vmem:[%s428 + $0x168] sm:%s421]
                  %547 = vst [vmem:[%s429 + $0xe8] sm:%s421] %v546
                  %v548 = vld [vmem:[%s428 + $0x16c] sm:%s421]
                  %549 = vst [vmem:[%s429 + $0xec] sm:%s421] %v548
                  %v550 = vld [vmem:[%s428 + $0x170] sm:%s421]
                  %551 = vst [vmem:[%s429 + $0xf0] sm:%s421] %v550
                  %v552 = vld [vmem:[%s428 + $0x174] sm:%s421]
                  %553 = vst [vmem:[%s429 + $0xf4] sm:%s421] %v552
                  %v554 = vld [vmem:[%s428 + $0x178] sm:%s421]
                  %555 = vst [vmem:[%s429 + $0xf8] sm:%s421] %v554
                  %v556 = vld [vmem:[%s428 + $0x17c] sm:%s421]
                  %557 = vst [vmem:[%s429 + $0xfc] sm:%s421] %v556
                  %v558 = vld [vmem:[%s428 + $0x200] sm:%s421]
                  %559 = vst [vmem:[%s429 + $0x100] sm:%s421] %v558
                  %v560 = vld [vmem:[%s428 + $0x204] sm:%s421]
                  %561 = vst [vmem:[%s429 + $0x104] sm:%s421] %v560
                  %v562 = vld [vmem:[%s428 + $0x208] sm:%s421]
                  %563 = vst [vmem:[%s429 + $0x108] sm:%s421] %v562
                  %v564 = vld [vmem:[%s428 + $0x20c] sm:%s421]
                  %565 = vst [vmem:[%s429 + $0x10c] sm:%s421] %v564
                  %v566 = vld [vmem:[%s428 + $0x210] sm:%s421]
                  %567 = vst [vmem:[%s429 + $0x110] sm:%s421] %v566
                  %v568 = vld [vmem:[%s428 + $0x214] sm:%s421]
                  %569 = vst [vmem:[%s429 + $0x114] sm:%s421] %v568
                  %v570 = vld [vmem:[%s428 + $0x218] sm:%s421]
                  %571 = vst [vmem:[%s429 + $0x118] sm:%s421] %v570
                  %v572 = vld [vmem:[%s428 + $0x21c] sm:%s421]
                  %573 = vst [vmem:[%s429 + $0x11c] sm:%s421] %v572
                  %v574 = vld [vmem:[%s428 + $0x220] sm:%s421]
                  %575 = vst [vmem:[%s429 + $0x120] sm:%s421] %v574
                  %v576 = vld [vmem:[%s428 + $0x224] sm:%s421]
                  %577 = vst [vmem:[%s429 + $0x124] sm:%s421] %v576
                  %v578 = vld [vmem:[%s428 + $0x228] sm:%s421]
                  %579 = vst [vmem:[%s429 + $0x128] sm:%s421] %v578
                  %v580 = vld [vmem:[%s428 + $0x22c] sm:%s421]
                  %581 = vst [vmem:[%s429 + $0x12c] sm:%s421] %v580
                  %v582 = vld [vmem:[%s428 + $0x230] sm:%s421]
                  %583 = vst [vmem:[%s429 + $0x130] sm:%s421] %v582
                  %v584 = vld [vmem:[%s428 + $0x234] sm:%s421]
                  %585 = vst [vmem:[%s429 + $0x134] sm:%s421] %v584
                  %v586 = vld [vmem:[%s428 + $0x238] sm:%s421]
                  %587 = vst [vmem:[%s429 + $0x138] sm:%s421] %v586
                  %v588 = vld [vmem:[%s428 + $0x23c] sm:%s421]
                  %589 = vst [vmem:[%s429 + $0x13c] sm:%s421] %v588
                  %v590 = vld [vmem:[%s428 + $0x240] sm:%s421]
                  %591 = vst [vmem:[%s429 + $0x140] sm:%s421] %v590
                  %v592 = vld [vmem:[%s428 + $0x244] sm:%s421]
                  %593 = vst [vmem:[%s429 + $0x144] sm:%s421] %v592
                  %v594 = vld [vmem:[%s428 + $0x248] sm:%s421]
                  %595 = vst [vmem:[%s429 + $0x148] sm:%s421] %v594
                  %v596 = vld [vmem:[%s428 + $0x24c] sm:%s421]
                  %597 = vst [vmem:[%s429 + $0x14c] sm:%s421] %v596
                  %v598 = vld [vmem:[%s428 + $0x250] sm:%s421]
                  %599 = vst [vmem:[%s429 + $0x150] sm:%s421] %v598
                  %v600 = vld [vmem:[%s428 + $0x254] sm:%s421]
                  %601 = vst [vmem:[%s429 + $0x154] sm:%s421] %v600
                  %v602 = vld [vmem:[%s428 + $0x258] sm:%s421]
                  %603 = vst [vmem:[%s429 + $0x158] sm:%s421] %v602
                  %v604 = vld [vmem:[%s428 + $0x25c] sm:%s421]
                  %605 = vst [vmem:[%s429 + $0x15c] sm:%s421] %v604
                  %v606 = vld [vmem:[%s428 + $0x260] sm:%s421]
                  %607 = vst [vmem:[%s429 + $0x160] sm:%s421] %v606
                  %v608 = vld [vmem:[%s428 + $0x264] sm:%s421]
                  %609 = vst [vmem:[%s429 + $0x164] sm:%s421] %v608
                  %v610 = vld [vmem:[%s428 + $0x268] sm:%s421]
                  %611 = vst [vmem:[%s429 + $0x168] sm:%s421] %v610
                  %v612 = vld [vmem:[%s428 + $0x26c] sm:%s421]
                  %613 = vst [vmem:[%s429 + $0x16c] sm:%s421] %v612
                  %v614 = vld [vmem:[%s428 + $0x270] sm:%s421]
                  %615 = vst [vmem:[%s429 + $0x170] sm:%s421] %v614
                  %v616 = vld [vmem:[%s428 + $0x274] sm:%s421]
                  %617 = vst [vmem:[%s429 + $0x174] sm:%s421] %v616
                  %v618 = vld [vmem:[%s428 + $0x278] sm:%s421]
                  %619 = vst [vmem:[%s429 + $0x178] sm:%s421] %v618
                  %v620 = vld [vmem:[%s428 + $0x27c] sm:%s421]
                  %621 = vst [vmem:[%s429 + $0x17c] sm:%s421] %v620
                  %v622 = vld [vmem:[%s428 + $0x300] sm:%s421]
                  %623 = vst [vmem:[%s429 + $0x180] sm:%s421] %v622
                  %v624 = vld [vmem:[%s428 + $0x304] sm:%s421]
                  %625 = vst [vmem:[%s429 + $0x184] sm:%s421] %v624
                  %v626 = vld [vmem:[%s428 + $0x308] sm:%s421]
                  %627 = vst [vmem:[%s429 + $0x188] sm:%s421] %v626
                  %v628 = vld [vmem:[%s428 + $0x30c] sm:%s421]
                  %629 = vst [vmem:[%s429 + $0x18c] sm:%s421] %v628
                  %v630 = vld [vmem:[%s428 + $0x310] sm:%s421]
                  %631 = vst [vmem:[%s429 + $0x190] sm:%s421] %v630
                  %v632 = vld [vmem:[%s428 + $0x314] sm:%s421]
                  %633 = vst [vmem:[%s429 + $0x194] sm:%s421] %v632
                  %v634 = vld [vmem:[%s428 + $0x318] sm:%s421]
                  %635 = vst [vmem:[%s429 + $0x198] sm:%s421] %v634
                  %v636 = vld [vmem:[%s428 + $0x31c] sm:%s421]
                  %637 = vst [vmem:[%s429 + $0x19c] sm:%s421] %v636
                  %v638 = vld [vmem:[%s428 + $0x320] sm:%s421]
                  %639 = vst [vmem:[%s429 + $0x1a0] sm:%s421] %v638
                  %v640 = vld [vmem:[%s428 + $0x324] sm:%s421]
                  %641 = vst [vmem:[%s429 + $0x1a4] sm:%s421] %v640
                  %v642 = vld [vmem:[%s428 + $0x328] sm:%s421]
                  %643 = vst [vmem:[%s429 + $0x1a8] sm:%s421] %v642
                  %v644 = vld [vmem:[%s428 + $0x32c] sm:%s421]
                  %645 = vst [vmem:[%s429 + $0x1ac] sm:%s421] %v644
                  %v646 = vld [vmem:[%s428 + $0x330] sm:%s421]
                  %647 = vst [vmem:[%s429 + $0x1b0] sm:%s421] %v646
                  %v648 = vld [vmem:[%s428 + $0x334] sm:%s421]
                  %649 = vst [vmem:[%s429 + $0x1b4] sm:%s421] %v648
                  %v650 = vld [vmem:[%s428 + $0x338] sm:%s421]
                  %651 = vst [vmem:[%s429 + $0x1b8] sm:%s421] %v650
                  %v652 = vld [vmem:[%s428 + $0x33c] sm:%s421]
                  %653 = vst [vmem:[%s429 + $0x1bc] sm:%s421] %v652
                  %v654 = vld [vmem:[%s428 + $0x340] sm:%s421]
                  %655 = vst [vmem:[%s429 + $0x1c0] sm:%s421] %v654
                  %v656 = vld [vmem:[%s428 + $0x344] sm:%s421]
                  %657 = vst [vmem:[%s429 + $0x1c4] sm:%s421] %v656
                  %v658 = vld [vmem:[%s428 + $0x348] sm:%s421]
                  %659 = vst [vmem:[%s429 + $0x1c8] sm:%s421] %v658
                  %v660 = vld [vmem:[%s428 + $0x34c] sm:%s421]
                  %661 = vst [vmem:[%s429 + $0x1cc] sm:%s421] %v660
                  %v662 = vld [vmem:[%s428 + $0x350] sm:%s421]
                  %663 = vst [vmem:[%s429 + $0x1d0] sm:%s421] %v662
                  %v664 = vld [vmem:[%s428 + $0x354] sm:%s421]
                  %665 = vst [vmem:[%s429 + $0x1d4] sm:%s421] %v664
                  %v666 = vld [vmem:[%s428 + $0x358] sm:%s421]
                  %667 = vst [vmem:[%s429 + $0x1d8] sm:%s421] %v666
                  %v668 = vld [vmem:[%s428 + $0x35c] sm:%s421]
                  %669 = vst [vmem:[%s429 + $0x1dc] sm:%s421] %v668
                  %v670 = vld [vmem:[%s428 + $0x360] sm:%s421]
                  %671 = vst [vmem:[%s429 + $0x1e0] sm:%s421] %v670
                  %v672 = vld [vmem:[%s428 + $0x364] sm:%s421]
                  %673 = vst [vmem:[%s429 + $0x1e4] sm:%s421] %v672
                  %v674 = vld [vmem:[%s428 + $0x368] sm:%s421]
                  %675 = vst [vmem:[%s429 + $0x1e8] sm:%s421] %v674
                  %v676 = vld [vmem:[%s428 + $0x36c] sm:%s421]
                  %677 = vst [vmem:[%s429 + $0x1ec] sm:%s421] %v676
                  %v678 = vld [vmem:[%s428 + $0x370] sm:%s421]
                  %679 = vst [vmem:[%s429 + $0x1f0] sm:%s421] %v678
                  %v680 = vld [vmem:[%s428 + $0x374] sm:%s421]
                  %681 = vst [vmem:[%s429 + $0x1f4] sm:%s421] %v680
                  %v682 = vld [vmem:[%s428 + $0x378] sm:%s421]
                  %683 = vst [vmem:[%s429 + $0x1f8] sm:%s421] %v682
                  %v684 = vld [vmem:[%s428 + $0x37c] sm:%s421]
                  %685 = vst [vmem:[%s429 + $0x1fc] sm:%s421] %v684
                $region63: #{cnn_multilabel_forward.2} parent=50 // loop_footer
                  %s427 = sadd.s32 1, %s423
                $region64: #{cnn_multilabel_forward.2} parent=50 // loop_footer_branch
                  %422 = sbr.rel target = $region60
                $region65: #{cnn_multilabel_forward.2} parent=50 // loop_exit
                  _
              $region51: #{cnn_multilabel_forward.2} parent=35 // pred_fallthru
                _
            $region36: #{cnn_multilabel_forward.2} parent=31 // pred_fallthru
              _
            // Predicated region
            $region37: #{cnn_multilabel_forward.2} parent=31 // pred_check
              _
            $region38: #{cnn_multilabel_forward.2} parent=31 // pred_check_branch
              %143 = sbr.rel (0) target = $region40
            $region39: #{cnn_multilabel_forward.2} parent=31 // pred_region
              %s145 = ssub.s32 16, 1
              loop: start=0, step=1, limit=1
              $region41: #{cnn_multilabel_forward.2} parent=39 // loop_pre_header
                _
              $region42: #{cnn_multilabel_forward.2} parent=39 // loop_header
                %s147 = sphi 0, %s151
                %p148 = scmp.ge.s32.totalorder %s147, 1
                %s152 = sphi %s137, %s137
                %s153 = sphi %s134, %s134
              $region43: #{cnn_multilabel_forward.2} parent=39 // loop_header_branch
                %150 = sbr.rel (%p148) target = $region47
              $region44: #{cnn_multilabel_forward.2} parent=39 // loop_body
                %v154 = vld [vmem:[%s152] sm:%s145]
                %155 = vst [vmem:[%s153] sm:%s145] %v154
                %v156 = vld [vmem:[%s152 + $0x4] sm:%s145]
                %157 = vst [vmem:[%s153 + $0x4] sm:%s145] %v156
                %v158 = vld [vmem:[%s152 + $0x8] sm:%s145]
                %159 = vst [vmem:[%s153 + $0x8] sm:%s145] %v158
                %v160 = vld [vmem:[%s152 + $0xc] sm:%s145]
                %161 = vst [vmem:[%s153 + $0xc] sm:%s145] %v160
                %v162 = vld [vmem:[%s152 + $0x10] sm:%s145]
                %163 = vst [vmem:[%s153 + $0x10] sm:%s145] %v162
                %v164 = vld [vmem:[%s152 + $0x14] sm:%s145]
                %165 = vst [vmem:[%s153 + $0x14] sm:%s145] %v164
                %v166 = vld [vmem:[%s152 + $0x18] sm:%s145]
                %167 = vst [vmem:[%s153 + $0x18] sm:%s145] %v166
                %v168 = vld [vmem:[%s152 + $0x1c] sm:%s145]
                %169 = vst [vmem:[%s153 + $0x1c] sm:%s145] %v168
                %v170 = vld [vmem:[%s152 + $0x20] sm:%s145]
                %171 = vst [vmem:[%s153 + $0x20] sm:%s145] %v170
                %v172 = vld [vmem:[%s152 + $0x24] sm:%s145]
                %173 = vst [vmem:[%s153 + $0x24] sm:%s145] %v172
                %v174 = vld [vmem:[%s152 + $0x28] sm:%s145]
                %175 = vst [vmem:[%s153 + $0x28] sm:%s145] %v174
                %v176 = vld [vmem:[%s152 + $0x2c] sm:%s145]
                %177 = vst [vmem:[%s153 + $0x2c] sm:%s145] %v176
                %v178 = vld [vmem:[%s152 + $0x30] sm:%s145]
                %179 = vst [vmem:[%s153 + $0x30] sm:%s145] %v178
                %v180 = vld [vmem:[%s152 + $0x34] sm:%s145]
                %181 = vst [vmem:[%s153 + $0x34] sm:%s145] %v180
                %v182 = vld [vmem:[%s152 + $0x38] sm:%s145]
                %183 = vst [vmem:[%s153 + $0x38] sm:%s145] %v182
                %v184 = vld [vmem:[%s152 + $0x3c] sm:%s145]
                %185 = vst [vmem:[%s153 + $0x3c] sm:%s145] %v184
                %v186 = vld [vmem:[%s152 + $0x40] sm:%s145]
                %187 = vst [vmem:[%s153 + $0x40] sm:%s145] %v186
                %v188 = vld [vmem:[%s152 + $0x44] sm:%s145]
                %189 = vst [vmem:[%s153 + $0x44] sm:%s145] %v188
                %v190 = vld [vmem:[%s152 + $0x48] sm:%s145]
                %191 = vst [vmem:[%s153 + $0x48] sm:%s145] %v190
                %v192 = vld [vmem:[%s152 + $0x4c] sm:%s145]
                %193 = vst [vmem:[%s153 + $0x4c] sm:%s145] %v192
                %v194 = vld [vmem:[%s152 + $0x50] sm:%s145]
                %195 = vst [vmem:[%s153 + $0x50] sm:%s145] %v194
                %v196 = vld [vmem:[%s152 + $0x54] sm:%s145]
                %197 = vst [vmem:[%s153 + $0x54] sm:%s145] %v196
                %v198 = vld [vmem:[%s152 + $0x58] sm:%s145]
                %199 = vst [vmem:[%s153 + $0x58] sm:%s145] %v198
                %v200 = vld [vmem:[%s152 + $0x5c] sm:%s145]
                %201 = vst [vmem:[%s153 + $0x5c] sm:%s145] %v200
                %v202 = vld [vmem:[%s152 + $0x60] sm:%s145]
                %203 = vst [vmem:[%s153 + $0x60] sm:%s145] %v202
                %v204 = vld [vmem:[%s152 + $0x64] sm:%s145]
                %205 = vst [vmem:[%s153 + $0x64] sm:%s145] %v204
                %v206 = vld [vmem:[%s152 + $0x68] sm:%s145]
                %207 = vst [vmem:[%s153 + $0x68] sm:%s145] %v206
                %v208 = vld [vmem:[%s152 + $0x6c] sm:%s145]
                %209 = vst [vmem:[%s153 + $0x6c] sm:%s145] %v208
                %v210 = vld [vmem:[%s152 + $0x70] sm:%s145]
                %211 = vst [vmem:[%s153 + $0x70] sm:%s145] %v210
                %v212 = vld [vmem:[%s152 + $0x74] sm:%s145]
                %213 = vst [vmem:[%s153 + $0x74] sm:%s145] %v212
                %v214 = vld [vmem:[%s152 + $0x78] sm:%s145]
                %215 = vst [vmem:[%s153 + $0x78] sm:%s145] %v214
                %v216 = vld [vmem:[%s152 + $0x7c] sm:%s145]
                %217 = vst [vmem:[%s153 + $0x7c] sm:%s145] %v216
                %v218 = vld [vmem:[%s152 + $0x100] sm:%s145]
                %219 = vst [vmem:[%s153 + $0x80] sm:%s145] %v218
                %v220 = vld [vmem:[%s152 + $0x104] sm:%s145]
                %221 = vst [vmem:[%s153 + $0x84] sm:%s145] %v220
                %v222 = vld [vmem:[%s152 + $0x108] sm:%s145]
                %223 = vst [vmem:[%s153 + $0x88] sm:%s145] %v222
                %v224 = vld [vmem:[%s152 + $0x10c] sm:%s145]
                %225 = vst [vmem:[%s153 + $0x8c] sm:%s145] %v224
                %v226 = vld [vmem:[%s152 + $0x110] sm:%s145]
                %227 = vst [vmem:[%s153 + $0x90] sm:%s145] %v226
                %v228 = vld [vmem:[%s152 + $0x114] sm:%s145]
                %229 = vst [vmem:[%s153 + $0x94] sm:%s145] %v228
                %v230 = vld [vmem:[%s152 + $0x118] sm:%s145]
                %231 = vst [vmem:[%s153 + $0x98] sm:%s145] %v230
                %v232 = vld [vmem:[%s152 + $0x11c] sm:%s145]
                %233 = vst [vmem:[%s153 + $0x9c] sm:%s145] %v232
                %v234 = vld [vmem:[%s152 + $0x120] sm:%s145]
                %235 = vst [vmem:[%s153 + $0xa0] sm:%s145] %v234
                %v236 = vld [vmem:[%s152 + $0x124] sm:%s145]
                %237 = vst [vmem:[%s153 + $0xa4] sm:%s145] %v236
                %v238 = vld [vmem:[%s152 + $0x128] sm:%s145]
                %239 = vst [vmem:[%s153 + $0xa8] sm:%s145] %v238
                %v240 = vld [vmem:[%s152 + $0x12c] sm:%s145]
                %241 = vst [vmem:[%s153 + $0xac] sm:%s145] %v240
                %v242 = vld [vmem:[%s152 + $0x130] sm:%s145]
                %243 = vst [vmem:[%s153 + $0xb0] sm:%s145] %v242
                %v244 = vld [vmem:[%s152 + $0x134] sm:%s145]
                %245 = vst [vmem:[%s153 + $0xb4] sm:%s145] %v244
                %v246 = vld [vmem:[%s152 + $0x138] sm:%s145]
                %247 = vst [vmem:[%s153 + $0xb8] sm:%s145] %v246
                %v248 = vld [vmem:[%s152 + $0x13c] sm:%s145]
                %249 = vst [vmem:[%s153 + $0xbc] sm:%s145] %v248
                %v250 = vld [vmem:[%s152 + $0x140] sm:%s145]
                %251 = vst [vmem:[%s153 + $0xc0] sm:%s145] %v250
                %v252 = vld [vmem:[%s152 + $0x144] sm:%s145]
                %253 = vst [vmem:[%s153 + $0xc4] sm:%s145] %v252
                %v254 = vld [vmem:[%s152 + $0x148] sm:%s145]
                %255 = vst [vmem:[%s153 + $0xc8] sm:%s145] %v254
                %v256 = vld [vmem:[%s152 + $0x14c] sm:%s145]
                %257 = vst [vmem:[%s153 + $0xcc] sm:%s145] %v256
                %v258 = vld [vmem:[%s152 + $0x150] sm:%s145]
                %259 = vst [vmem:[%s153 + $0xd0] sm:%s145] %v258
                %v260 = vld [vmem:[%s152 + $0x154] sm:%s145]
                %261 = vst [vmem:[%s153 + $0xd4] sm:%s145] %v260
                %v262 = vld [vmem:[%s152 + $0x158] sm:%s145]
                %263 = vst [vmem:[%s153 + $0xd8] sm:%s145] %v262
                %v264 = vld [vmem:[%s152 + $0x15c] sm:%s145]
                %265 = vst [vmem:[%s153 + $0xdc] sm:%s145] %v264
                %v266 = vld [vmem:[%s152 + $0x160] sm:%s145]
                %267 = vst [vmem:[%s153 + $0xe0] sm:%s145] %v266
                %v268 = vld [vmem:[%s152 + $0x164] sm:%s145]
                %269 = vst [vmem:[%s153 + $0xe4] sm:%s145] %v268
                %v270 = vld [vmem:[%s152 + $0x168] sm:%s145]
                %271 = vst [vmem:[%s153 + $0xe8] sm:%s145] %v270
                %v272 = vld [vmem:[%s152 + $0x16c] sm:%s145]
                %273 = vst [vmem:[%s153 + $0xec] sm:%s145] %v272
                %v274 = vld [vmem:[%s152 + $0x170] sm:%s145]
                %275 = vst [vmem:[%s153 + $0xf0] sm:%s145] %v274
                %v276 = vld [vmem:[%s152 + $0x174] sm:%s145]
                %277 = vst [vmem:[%s153 + $0xf4] sm:%s145] %v276
                %v278 = vld [vmem:[%s152 + $0x178] sm:%s145]
                %279 = vst [vmem:[%s153 + $0xf8] sm:%s145] %v278
                %v280 = vld [vmem:[%s152 + $0x17c] sm:%s145]
                %281 = vst [vmem:[%s153 + $0xfc] sm:%s145] %v280
                %v282 = vld [vmem:[%s152 + $0x200] sm:%s145]
                %283 = vst [vmem:[%s153 + $0x100] sm:%s145] %v282
                %v284 = vld [vmem:[%s152 + $0x204] sm:%s145]
                %285 = vst [vmem:[%s153 + $0x104] sm:%s145] %v284
                %v286 = vld [vmem:[%s152 + $0x208] sm:%s145]
                %287 = vst [vmem:[%s153 + $0x108] sm:%s145] %v286
                %v288 = vld [vmem:[%s152 + $0x20c] sm:%s145]
                %289 = vst [vmem:[%s153 + $0x10c] sm:%s145] %v288
                %v290 = vld [vmem:[%s152 + $0x210] sm:%s145]
                %291 = vst [vmem:[%s153 + $0x110] sm:%s145] %v290
                %v292 = vld [vmem:[%s152 + $0x214] sm:%s145]
                %293 = vst [vmem:[%s153 + $0x114] sm:%s145] %v292
                %v294 = vld [vmem:[%s152 + $0x218] sm:%s145]
                %295 = vst [vmem:[%s153 + $0x118] sm:%s145] %v294
                %v296 = vld [vmem:[%s152 + $0x21c] sm:%s145]
                %297 = vst [vmem:[%s153 + $0x11c] sm:%s145] %v296
                %v298 = vld [vmem:[%s152 + $0x220] sm:%s145]
                %299 = vst [vmem:[%s153 + $0x120] sm:%s145] %v298
                %v300 = vld [vmem:[%s152 + $0x224] sm:%s145]
                %301 = vst [vmem:[%s153 + $0x124] sm:%s145] %v300
                %v302 = vld [vmem:[%s152 + $0x228] sm:%s145]
                %303 = vst [vmem:[%s153 + $0x128] sm:%s145] %v302
                %v304 = vld [vmem:[%s152 + $0x22c] sm:%s145]
                %305 = vst [vmem:[%s153 + $0x12c] sm:%s145] %v304
                %v306 = vld [vmem:[%s152 + $0x230] sm:%s145]
                %307 = vst [vmem:[%s153 + $0x130] sm:%s145] %v306
                %v308 = vld [vmem:[%s152 + $0x234] sm:%s145]
                %309 = vst [vmem:[%s153 + $0x134] sm:%s145] %v308
                %v310 = vld [vmem:[%s152 + $0x238] sm:%s145]
                %311 = vst [vmem:[%s153 + $0x138] sm:%s145] %v310
                %v312 = vld [vmem:[%s152 + $0x23c] sm:%s145]
                %313 = vst [vmem:[%s153 + $0x13c] sm:%s145] %v312
                %v314 = vld [vmem:[%s152 + $0x240] sm:%s145]
                %315 = vst [vmem:[%s153 + $0x140] sm:%s145] %v314
                %v316 = vld [vmem:[%s152 + $0x244] sm:%s145]
                %317 = vst [vmem:[%s153 + $0x144] sm:%s145] %v316
                %v318 = vld [vmem:[%s152 + $0x248] sm:%s145]
                %319 = vst [vmem:[%s153 + $0x148] sm:%s145] %v318
                %v320 = vld [vmem:[%s152 + $0x24c] sm:%s145]
                %321 = vst [vmem:[%s153 + $0x14c] sm:%s145] %v320
                %v322 = vld [vmem:[%s152 + $0x250] sm:%s145]
                %323 = vst [vmem:[%s153 + $0x150] sm:%s145] %v322
                %v324 = vld [vmem:[%s152 + $0x254] sm:%s145]
                %325 = vst [vmem:[%s153 + $0x154] sm:%s145] %v324
                %v326 = vld [vmem:[%s152 + $0x258] sm:%s145]
                %327 = vst [vmem:[%s153 + $0x158] sm:%s145] %v326
                %v328 = vld [vmem:[%s152 + $0x25c] sm:%s145]
                %329 = vst [vmem:[%s153 + $0x15c] sm:%s145] %v328
                %v330 = vld [vmem:[%s152 + $0x260] sm:%s145]
                %331 = vst [vmem:[%s153 + $0x160] sm:%s145] %v330
                %v332 = vld [vmem:[%s152 + $0x264] sm:%s145]
                %333 = vst [vmem:[%s153 + $0x164] sm:%s145] %v332
                %v334 = vld [vmem:[%s152 + $0x268] sm:%s145]
                %335 = vst [vmem:[%s153 + $0x168] sm:%s145] %v334
                %v336 = vld [vmem:[%s152 + $0x26c] sm:%s145]
                %337 = vst [vmem:[%s153 + $0x16c] sm:%s145] %v336
                %v338 = vld [vmem:[%s152 + $0x270] sm:%s145]
                %339 = vst [vmem:[%s153 + $0x170] sm:%s145] %v338
                %v340 = vld [vmem:[%s152 + $0x274] sm:%s145]
                %341 = vst [vmem:[%s153 + $0x174] sm:%s145] %v340
                %v342 = vld [vmem:[%s152 + $0x278] sm:%s145]
                %343 = vst [vmem:[%s153 + $0x178] sm:%s145] %v342
                %v344 = vld [vmem:[%s152 + $0x27c] sm:%s145]
                %345 = vst [vmem:[%s153 + $0x17c] sm:%s145] %v344
                %v346 = vld [vmem:[%s152 + $0x300] sm:%s145]
                %347 = vst [vmem:[%s153 + $0x180] sm:%s145] %v346
                %v348 = vld [vmem:[%s152 + $0x304] sm:%s145]
                %349 = vst [vmem:[%s153 + $0x184] sm:%s145] %v348
                %v350 = vld [vmem:[%s152 + $0x308] sm:%s145]
                %351 = vst [vmem:[%s153 + $0x188] sm:%s145] %v350
                %v352 = vld [vmem:[%s152 + $0x30c] sm:%s145]
                %353 = vst [vmem:[%s153 + $0x18c] sm:%s145] %v352
                %v354 = vld [vmem:[%s152 + $0x310] sm:%s145]
                %355 = vst [vmem:[%s153 + $0x190] sm:%s145] %v354
                %v356 = vld [vmem:[%s152 + $0x314] sm:%s145]
                %357 = vst [vmem:[%s153 + $0x194] sm:%s145] %v356
                %v358 = vld [vmem:[%s152 + $0x318] sm:%s145]
                %359 = vst [vmem:[%s153 + $0x198] sm:%s145] %v358
                %v360 = vld [vmem:[%s152 + $0x31c] sm:%s145]
                %361 = vst [vmem:[%s153 + $0x19c] sm:%s145] %v360
                %v362 = vld [vmem:[%s152 + $0x320] sm:%s145]
                %363 = vst [vmem:[%s153 + $0x1a0] sm:%s145] %v362
                %v364 = vld [vmem:[%s152 + $0x324] sm:%s145]
                %365 = vst [vmem:[%s153 + $0x1a4] sm:%s145] %v364
                %v366 = vld [vmem:[%s152 + $0x328] sm:%s145]
                %367 = vst [vmem:[%s153 + $0x1a8] sm:%s145] %v366
                %v368 = vld [vmem:[%s152 + $0x32c] sm:%s145]
                %369 = vst [vmem:[%s153 + $0x1ac] sm:%s145] %v368
                %v370 = vld [vmem:[%s152 + $0x330] sm:%s145]
                %371 = vst [vmem:[%s153 + $0x1b0] sm:%s145] %v370
                %v372 = vld [vmem:[%s152 + $0x334] sm:%s145]
                %373 = vst [vmem:[%s153 + $0x1b4] sm:%s145] %v372
                %v374 = vld [vmem:[%s152 + $0x338] sm:%s145]
                %375 = vst [vmem:[%s153 + $0x1b8] sm:%s145] %v374
                %v376 = vld [vmem:[%s152 + $0x33c] sm:%s145]
                %377 = vst [vmem:[%s153 + $0x1bc] sm:%s145] %v376
                %v378 = vld [vmem:[%s152 + $0x340] sm:%s145]
                %379 = vst [vmem:[%s153 + $0x1c0] sm:%s145] %v378
                %v380 = vld [vmem:[%s152 + $0x344] sm:%s145]
                %381 = vst [vmem:[%s153 + $0x1c4] sm:%s145] %v380
                %v382 = vld [vmem:[%s152 + $0x348] sm:%s145]
                %383 = vst [vmem:[%s153 + $0x1c8] sm:%s145] %v382
                %v384 = vld [vmem:[%s152 + $0x34c] sm:%s145]
                %385 = vst [vmem:[%s153 + $0x1cc] sm:%s145] %v384
                %v386 = vld [vmem:[%s152 + $0x350] sm:%s145]
                %387 = vst [vmem:[%s153 + $0x1d0] sm:%s145] %v386
                %v388 = vld [vmem:[%s152 + $0x354] sm:%s145]
                %389 = vst [vmem:[%s153 + $0x1d4] sm:%s145] %v388
                %v390 = vld [vmem:[%s152 + $0x358] sm:%s145]
                %391 = vst [vmem:[%s153 + $0x1d8] sm:%s145] %v390
                %v392 = vld [vmem:[%s152 + $0x35c] sm:%s145]
                %393 = vst [vmem:[%s153 + $0x1dc] sm:%s145] %v392
                %v394 = vld [vmem:[%s152 + $0x360] sm:%s145]
                %395 = vst [vmem:[%s153 + $0x1e0] sm:%s145] %v394
                %v396 = vld [vmem:[%s152 + $0x364] sm:%s145]
                %397 = vst [vmem:[%s153 + $0x1e4] sm:%s145] %v396
                %v398 = vld [vmem:[%s152 + $0x368] sm:%s145]
                %399 = vst [vmem:[%s153 + $0x1e8] sm:%s145] %v398
                %v400 = vld [vmem:[%s152 + $0x36c] sm:%s145]
                %401 = vst [vmem:[%s153 + $0x1ec] sm:%s145] %v400
                %v402 = vld [vmem:[%s152 + $0x370] sm:%s145]
                %403 = vst [vmem:[%s153 + $0x1f0] sm:%s145] %v402
                %v404 = vld [vmem:[%s152 + $0x374] sm:%s145]
                %405 = vst [vmem:[%s153 + $0x1f4] sm:%s145] %v404
                %v406 = vld [vmem:[%s152 + $0x378] sm:%s145]
                %407 = vst [vmem:[%s153 + $0x1f8] sm:%s145] %v406
                %v408 = vld [vmem:[%s152 + $0x37c] sm:%s145]
                %409 = vst [vmem:[%s153 + $0x1fc] sm:%s145] %v408
              $region45: #{cnn_multilabel_forward.2} parent=39 // loop_footer
                %s151 = sadd.s32 1, %s147
              $region46: #{cnn_multilabel_forward.2} parent=39 // loop_footer_branch
                %146 = sbr.rel target = $region42
              $region47: #{cnn_multilabel_forward.2} parent=39 // loop_exit
                _
            $region40: #{cnn_multilabel_forward.2} parent=31 // pred_fallthru
              _
          $region32: #{cnn_multilabel_forward.2} parent=27 // pred_fallthru
            _
          %686 = vnop
        $region28: #{cnn_multilabel_forward.2} parent=23 // pred_fallthru
          _
      $region24: #{cnn_multilabel_forward.2} parent=5 // pred_fallthru
        _
      %p687 = scmp.le.s32.totalorder 1, %s9
      %p688 = scmp.lt.s32.totalorder %s9, 3
      %p689 = pnand %p687, %p688
      %p690 = pneg %p689
      // Predicated region
      $region66: #{cnn_multilabel_forward.2} parent=5 // pred_check
        _
      $region67: #{cnn_multilabel_forward.2} parent=5 // pred_check_branch
        %692 = sbr.rel (%p689) target = $region69
      $region68: #{cnn_multilabel_forward.2} parent=5 // pred_region
        %s693 = ssub.s32 %s9, 1
        %s694 = sand.u32 %s22, 1
        %s695 = sand.u32 %s22, 1
        %s696 = smul.addr %s695, 512
        %s697 = scalar_lea.vmem [#allocation2], %s696
        // Predicated region
        $region70: #{cnn_multilabel_forward.2} parent=68 // pred_check
          %p698 = pneg %p35
        $region71: #{cnn_multilabel_forward.2} parent=68 // pred_check_branch
          %700 = sbr.rel (%p698) target = $region73
        $region72: #{cnn_multilabel_forward.2} parent=68 // pred_region
          _
        $region73: #{cnn_multilabel_forward.2} parent=68 // pred_fallthru
          _
        %s701 = sand.u32 %s22, 1
        %s702 = sand.u32 %s22, 1
        %s703 = smul.addr %s702, 512
        %s704 = scalar_lea.vmem [#allocation2], %s703
        %p705 = pneg %p35
        %p706 = pneg %p32
        %p707 = pneg %p56
        %p708 = pneg %p53
        %p709 = pneg %p77
        %p710 = pneg %p74
        %p711 = pneg %p103
        %p712 = pneg %p100
        %s713 = smul.u32 32, %s14
        %p714 = scmp.lt.s32.totalorder %s713, 63
        %s715 = scalar_select %p714, %s713, 63
        %s716 = smul.addr %s715, 4
        %s717 = scalar_lea.vmem %s3, %s716
        %s718 = smul.u32 32, %s14
        %s719 = smul.u32 32, %s14
        %p720 = scmp.lt.s32.totalorder %s719, 63
        %s721 = scalar_select %p720, %s719, 63
        %s722 = smul.addr %s721, 4
        %s723 = scalar_lea.vmem %s3, %s722
        %s724 = smul.u32 32, %s14
        %v726 = vld [vmem:[%s697] sm:$0xf]
        %v727 = vld [vmem:[%s697 + $0x4] sm:$0xf]
        %v728 = vld [vmem:[%s697 + $0x8] sm:$0xf]
        %v729 = vld [vmem:[%s697 + $0xc] sm:$0xf]
        %v730 = vld [vmem:[%s697 + $0x10] sm:$0xf]
        %v731 = vld [vmem:[%s697 + $0x14] sm:$0xf]
        %v732 = vld [vmem:[%s697 + $0x18] sm:$0xf]
        %v733 = vld [vmem:[%s697 + $0x1c] sm:$0xf]
        %v734 = vld [vmem:[%s697 + $0x20] sm:$0xf]
        %v735 = vld [vmem:[%s697 + $0x24] sm:$0xf]
        %v736 = vld [vmem:[%s697 + $0x28] sm:$0xf]
        %v737 = vld [vmem:[%s697 + $0x2c] sm:$0xf]
        %v738 = vld [vmem:[%s697 + $0x30] sm:$0xf]
        %v739 = vld [vmem:[%s697 + $0x34] sm:$0xf]
        %v740 = vld [vmem:[%s697 + $0x38] sm:$0xf]
        %v741 = vld [vmem:[%s697 + $0x3c] sm:$0xf]
        %v742 = vld [vmem:[%s697 + $0x40] sm:$0xf]
        %v743 = vld [vmem:[%s697 + $0x44] sm:$0xf]
        %v744 = vld [vmem:[%s697 + $0x48] sm:$0xf]
        %v745 = vld [vmem:[%s697 + $0x4c] sm:$0xf]
        %v746 = vld [vmem:[%s697 + $0x50] sm:$0xf]
        %v747 = vld [vmem:[%s697 + $0x54] sm:$0xf]
        %v748 = vld [vmem:[%s697 + $0x58] sm:$0xf]
        %v749 = vld [vmem:[%s697 + $0x5c] sm:$0xf]
        %v750 = vld [vmem:[%s697 + $0x60] sm:$0xf]
        %v751 = vld [vmem:[%s697 + $0x64] sm:$0xf]
        %v752 = vld [vmem:[%s697 + $0x68] sm:$0xf]
        %v753 = vld [vmem:[%s697 + $0x6c] sm:$0xf]
        %v754 = vld [vmem:[%s697 + $0x70] sm:$0xf]
        %v755 = vld [vmem:[%s697 + $0x74] sm:$0xf]
        %v756 = vld [vmem:[%s697 + $0x78] sm:$0xf]
        %v757 = vld [vmem:[%s697 + $0x7c] sm:$0xf]
        %v758 = vld [vmem:[%s697 + $0x80] sm:$0xf]
        %v759 = vld [vmem:[%s697 + $0x84] sm:$0xf]
        %v760 = vld [vmem:[%s697 + $0x88] sm:$0xf]
        %v761 = vld [vmem:[%s697 + $0x8c] sm:$0xf]
        %v762 = vld [vmem:[%s697 + $0x90] sm:$0xf]
        %v763 = vld [vmem:[%s697 + $0x94] sm:$0xf]
        %v764 = vld [vmem:[%s697 + $0x98] sm:$0xf]
        %v765 = vld [vmem:[%s697 + $0x9c] sm:$0xf]
        %v766 = vld [vmem:[%s697 + $0xa0] sm:$0xf]
        %v767 = vld [vmem:[%s697 + $0xa4] sm:$0xf]
        %v768 = vld [vmem:[%s697 + $0xa8] sm:$0xf]
        %v769 = vld [vmem:[%s697 + $0xac] sm:$0xf]
        %v770 = vld [vmem:[%s697 + $0xb0] sm:$0xf]
        %v771 = vld [vmem:[%s697 + $0xb4] sm:$0xf]
        %v772 = vld [vmem:[%s697 + $0xb8] sm:$0xf]
        %v773 = vld [vmem:[%s697 + $0xbc] sm:$0xf]
        %v774 = vld [vmem:[%s697 + $0xc0] sm:$0xf]
        %v775 = vld [vmem:[%s697 + $0xc4] sm:$0xf]
        %v776 = vld [vmem:[%s697 + $0xc8] sm:$0xf]
        %v777 = vld [vmem:[%s697 + $0xcc] sm:$0xf]
        %v778 = vld [vmem:[%s697 + $0xd0] sm:$0xf]
        %v779 = vld [vmem:[%s697 + $0xd4] sm:$0xf]
        %v780 = vld [vmem:[%s697 + $0xd8] sm:$0xf]
        %v781 = vld [vmem:[%s697 + $0xdc] sm:$0xf]
        %v782 = vld [vmem:[%s697 + $0xe0] sm:$0xf]
        %v783 = vld [vmem:[%s697 + $0xe4] sm:$0xf]
        %v784 = vld [vmem:[%s697 + $0xe8] sm:$0xf]
        %v785 = vld [vmem:[%s697 + $0xec] sm:$0xf]
        %v786 = vld [vmem:[%s697 + $0xf0] sm:$0xf]
        %v787 = vld [vmem:[%s697 + $0xf4] sm:$0xf]
        %v788 = vld [vmem:[%s697 + $0xf8] sm:$0xf]
        %v789 = vld [vmem:[%s697 + $0xfc] sm:$0xf]
        %v790 = vld [vmem:[%s697 + $0x100] sm:$0xf]
        %v791 = vld [vmem:[%s697 + $0x104] sm:$0xf]
        %v792 = vld [vmem:[%s697 + $0x108] sm:$0xf]
        %v793 = vld [vmem:[%s697 + $0x10c] sm:$0xf]
        %v794 = vld [vmem:[%s697 + $0x110] sm:$0xf]
        %v795 = vld [vmem:[%s697 + $0x114] sm:$0xf]
        %v796 = vld [vmem:[%s697 + $0x118] sm:$0xf]
        %v797 = vld [vmem:[%s697 + $0x11c] sm:$0xf]
        %v798 = vld [vmem:[%s697 + $0x120] sm:$0xf]
        %v799 = vld [vmem:[%s697 + $0x124] sm:$0xf]
        %v800 = vld [vmem:[%s697 + $0x128] sm:$0xf]
        %v801 = vld [vmem:[%s697 + $0x12c] sm:$0xf]
        %v802 = vld [vmem:[%s697 + $0x130] sm:$0xf]
        %v803 = vld [vmem:[%s697 + $0x134] sm:$0xf]
        %v804 = vld [vmem:[%s697 + $0x138] sm:$0xf]
        %v805 = vld [vmem:[%s697 + $0x13c] sm:$0xf]
        %v806 = vld [vmem:[%s697 + $0x140] sm:$0xf]
        %v807 = vld [vmem:[%s697 + $0x144] sm:$0xf]
        %v808 = vld [vmem:[%s697 + $0x148] sm:$0xf]
        %v809 = vld [vmem:[%s697 + $0x14c] sm:$0xf]
        %v810 = vld [vmem:[%s697 + $0x150] sm:$0xf]
        %v811 = vld [vmem:[%s697 + $0x154] sm:$0xf]
        %v812 = vld [vmem:[%s697 + $0x158] sm:$0xf]
        %v813 = vld [vmem:[%s697 + $0x15c] sm:$0xf]
        %v814 = vld [vmem:[%s697 + $0x160] sm:$0xf]
        %v815 = vld [vmem:[%s697 + $0x164] sm:$0xf]
        %v816 = vld [vmem:[%s697 + $0x168] sm:$0xf]
        %v817 = vld [vmem:[%s697 + $0x16c] sm:$0xf]
        %v818 = vld [vmem:[%s697 + $0x170] sm:$0xf]
        %v819 = vld [vmem:[%s697 + $0x174] sm:$0xf]
        %v820 = vld [vmem:[%s697 + $0x178] sm:$0xf]
        %v821 = vld [vmem:[%s697 + $0x17c] sm:$0xf]
        %v822 = vld [vmem:[%s697 + $0x180] sm:$0xf]
        %v823 = vld [vmem:[%s697 + $0x184] sm:$0xf]
        %v824 = vld [vmem:[%s697 + $0x188] sm:$0xf]
        %v825 = vld [vmem:[%s697 + $0x18c] sm:$0xf]
        %v826 = vld [vmem:[%s697 + $0x190] sm:$0xf]
        %v827 = vld [vmem:[%s697 + $0x194] sm:$0xf]
        %v828 = vld [vmem:[%s697 + $0x198] sm:$0xf]
        %v829 = vld [vmem:[%s697 + $0x19c] sm:$0xf]
        %v830 = vld [vmem:[%s697 + $0x1a0] sm:$0xf]
        %v831 = vld [vmem:[%s697 + $0x1a4] sm:$0xf]
        %v832 = vld [vmem:[%s697 + $0x1a8] sm:$0xf]
        %v833 = vld [vmem:[%s697 + $0x1ac] sm:$0xf]
        %v834 = vld [vmem:[%s697 + $0x1b0] sm:$0xf]
        %v835 = vld [vmem:[%s697 + $0x1b4] sm:$0xf]
        %v836 = vld [vmem:[%s697 + $0x1b8] sm:$0xf]
        %v837 = vld [vmem:[%s697 + $0x1bc] sm:$0xf]
        %v838 = vld [vmem:[%s697 + $0x1c0] sm:$0xf]
        %v839 = vld [vmem:[%s697 + $0x1c4] sm:$0xf]
        %v840 = vld [vmem:[%s697 + $0x1c8] sm:$0xf]
        %v841 = vld [vmem:[%s697 + $0x1cc] sm:$0xf]
        %v842 = vld [vmem:[%s697 + $0x1d0] sm:$0xf]
        %v843 = vld [vmem:[%s697 + $0x1d4] sm:$0xf]
        %v844 = vld [vmem:[%s697 + $0x1d8] sm:$0xf]
        %v845 = vld [vmem:[%s697 + $0x1dc] sm:$0xf]
        %v846 = vld [vmem:[%s697 + $0x1e0] sm:$0xf]
        %v847 = vld [vmem:[%s697 + $0x1e4] sm:$0xf]
        %v848 = vld [vmem:[%s697 + $0x1e8] sm:$0xf]
        %v849 = vld [vmem:[%s697 + $0x1ec] sm:$0xf]
        %v850 = vld [vmem:[%s697 + $0x1f0] sm:$0xf]
        %v851 = vld [vmem:[%s697 + $0x1f4] sm:$0xf]
        %v852 = vld [vmem:[%s697 + $0x1f8] sm:$0xf]
        %v853 = vld [vmem:[%s697 + $0x1fc] sm:$0xf]
        %v854 = vld [vmem:[%s1] sm:$0xf]
        %v855 = vld [vmem:[%s1 + $0x4] sm:$0x1]
        %v984 = vunpack.c.l.b16 %v726
        %v985 = vunpack.c.l.b16 %v727
        %v986 = vunpack.c.l.b16 %v728
        %v987 = vunpack.c.l.b16 %v729
        %v988 = vunpack.c.l.b16 %v730
        %v989 = vunpack.c.l.b16 %v731
        %v990 = vunpack.c.l.b16 %v732
        %v991 = vunpack.c.l.b16 %v733
        %v992 = vunpack.c.l.b16 %v734
        %v993 = vunpack.c.l.b16 %v735
        %v994 = vunpack.c.l.b16 %v736
        %v995 = vunpack.c.l.b16 %v737
        %v996 = vunpack.c.l.b16 %v738
        %v997 = vunpack.c.l.b16 %v739
        %v998 = vunpack.c.l.b16 %v740
        %v999 = vunpack.c.l.b16 %v741
        %v1000 = vunpack.c.l.b16 %v742
        %v1001 = vunpack.c.l.b16 %v743
        %v1002 = vunpack.c.l.b16 %v744
        %v1003 = vunpack.c.l.b16 %v745
        %v1004 = vunpack.c.l.b16 %v746
        %v1005 = vunpack.c.l.b16 %v747
        %v1006 = vunpack.c.l.b16 %v748
        %v1007 = vunpack.c.l.b16 %v749
        %v1008 = vunpack.c.l.b16 %v750
        %v1009 = vunpack.c.l.b16 %v751
        %v1010 = vunpack.c.l.b16 %v752
        %v1011 = vunpack.c.l.b16 %v753
        %v1012 = vunpack.c.l.b16 %v754
        %v1013 = vunpack.c.l.b16 %v755
        %v1014 = vunpack.c.l.b16 %v756
        %v1015 = vunpack.c.l.b16 %v757
        %v1016 = vunpack.c.l.b16 %v758
        %v1017 = vunpack.c.l.b16 %v759
        %v1018 = vunpack.c.l.b16 %v760
        %v1019 = vunpack.c.l.b16 %v761
        %v1020 = vunpack.c.l.b16 %v762
        %v1021 = vunpack.c.l.b16 %v763
        %v1022 = vunpack.c.l.b16 %v764
        %v1023 = vunpack.c.l.b16 %v765
        %v1024 = vunpack.c.l.b16 %v766
        %v1025 = vunpack.c.l.b16 %v767
        %v1026 = vunpack.c.l.b16 %v768
        %v1027 = vunpack.c.l.b16 %v769
        %v1028 = vunpack.c.l.b16 %v770
        %v1029 = vunpack.c.l.b16 %v771
        %v1030 = vunpack.c.l.b16 %v772
        %v1031 = vunpack.c.l.b16 %v773
        %v1032 = vunpack.c.l.b16 %v774
        %v1033 = vunpack.c.l.b16 %v775
        %v1034 = vunpack.c.l.b16 %v776
        %v1035 = vunpack.c.l.b16 %v777
        %v1036 = vunpack.c.l.b16 %v778
        %v1037 = vunpack.c.l.b16 %v779
        %v1038 = vunpack.c.l.b16 %v780
        %v1039 = vunpack.c.l.b16 %v781
        %v1040 = vunpack.c.l.b16 %v782
        %v1041 = vunpack.c.l.b16 %v783
        %v1042 = vunpack.c.l.b16 %v784
        %v1043 = vunpack.c.l.b16 %v785
        %v1044 = vunpack.c.l.b16 %v786
        %v1045 = vunpack.c.l.b16 %v787
        %v1046 = vunpack.c.l.b16 %v788
        %v1047 = vunpack.c.l.b16 %v789
        %v1048 = vunpack.c.l.b16 %v790
        %v1049 = vunpack.c.l.b16 %v791
        %v1050 = vunpack.c.l.b16 %v792
        %v1051 = vunpack.c.l.b16 %v793
        %v1052 = vunpack.c.l.b16 %v794
        %v1053 = vunpack.c.l.b16 %v795
        %v1054 = vunpack.c.l.b16 %v796
        %v1055 = vunpack.c.l.b16 %v797
        %v1056 = vunpack.c.l.b16 %v798
        %v1057 = vunpack.c.l.b16 %v799
        %v1058 = vunpack.c.l.b16 %v800
        %v1059 = vunpack.c.l.b16 %v801
        %v1060 = vunpack.c.l.b16 %v802
        %v1061 = vunpack.c.l.b16 %v803
        %v1062 = vunpack.c.l.b16 %v804
        %v1063 = vunpack.c.l.b16 %v805
        %v1064 = vunpack.c.l.b16 %v806
        %v1065 = vunpack.c.l.b16 %v807
        %v1066 = vunpack.c.l.b16 %v808
        %v1067 = vunpack.c.l.b16 %v809
        %v1068 = vunpack.c.l.b16 %v810
        %v1069 = vunpack.c.l.b16 %v811
        %v1070 = vunpack.c.l.b16 %v812
        %v1071 = vunpack.c.l.b16 %v813
        %v1072 = vunpack.c.l.b16 %v814
        %v1073 = vunpack.c.l.b16 %v815
        %v1074 = vunpack.c.l.b16 %v816
        %v1075 = vunpack.c.l.b16 %v817
        %v1076 = vunpack.c.l.b16 %v818
        %v1077 = vunpack.c.l.b16 %v819
        %v1078 = vunpack.c.l.b16 %v820
        %v1079 = vunpack.c.l.b16 %v821
        %v1080 = vunpack.c.l.b16 %v822
        %v1081 = vunpack.c.l.b16 %v823
        %v1082 = vunpack.c.l.b16 %v824
        %v1083 = vunpack.c.l.b16 %v825
        %v1084 = vunpack.c.l.b16 %v826
        %v1085 = vunpack.c.l.b16 %v827
        %v1086 = vunpack.c.l.b16 %v828
        %v1087 = vunpack.c.l.b16 %v829
        %v1088 = vunpack.c.l.b16 %v830
        %v1089 = vunpack.c.l.b16 %v831
        %v1090 = vunpack.c.l.b16 %v832
        %v1091 = vunpack.c.l.b16 %v833
        %v1092 = vunpack.c.l.b16 %v834
        %v1093 = vunpack.c.l.b16 %v835
        %v1094 = vunpack.c.l.b16 %v836
        %v1095 = vunpack.c.l.b16 %v837
        %v1096 = vunpack.c.l.b16 %v838
        %v1097 = vunpack.c.l.b16 %v839
        %v1098 = vunpack.c.l.b16 %v840
        %v1099 = vunpack.c.l.b16 %v841
        %v1100 = vunpack.c.l.b16 %v842
        %v1101 = vunpack.c.l.b16 %v843
        %v1102 = vunpack.c.l.b16 %v844
        %v1103 = vunpack.c.l.b16 %v845
        %v1104 = vunpack.c.l.b16 %v846
        %v1105 = vunpack.c.l.b16 %v847
        %v1106 = vunpack.c.l.b16 %v848
        %v1107 = vunpack.c.l.b16 %v849
        %v1108 = vunpack.c.l.b16 %v850
        %v1109 = vunpack.c.l.b16 %v851
        %v1110 = vunpack.c.l.b16 %v852
        %v1111 = vunpack.c.l.b16 %v853
        %v1112 = vpack.c.b16 %v985, %v984
        %v1113 = vpack.c.b16 %v987, %v986
        %v1114 = vpack.c.b16 %v989, %v988
        %v1115 = vpack.c.b16 %v991, %v990
        %v1116 = vpack.c.b16 %v993, %v992
        %v1117 = vpack.c.b16 %v995, %v994
        %v1118 = vpack.c.b16 %v997, %v996
        %v1119 = vpack.c.b16 %v999, %v998
        %v1120 = vpack.c.b16 %v1001, %v1000
        %v1121 = vpack.c.b16 %v1003, %v1002
        %v1122 = vpack.c.b16 %v1005, %v1004
        %v1123 = vpack.c.b16 %v1007, %v1006
        %v1124 = vpack.c.b16 %v1009, %v1008
        %v1125 = vpack.c.b16 %v1011, %v1010
        %v1126 = vpack.c.b16 %v1013, %v1012
        %v1127 = vpack.c.b16 %v1015, %v1014
        %v1128 = vpack.c.b16 %v1017, %v1016
        %v1129 = vpack.c.b16 %v1019, %v1018
        %v1130 = vpack.c.b16 %v1021, %v1020
        %v1131 = vpack.c.b16 %v1023, %v1022
        %v1132 = vpack.c.b16 %v1025, %v1024
        %v1133 = vpack.c.b16 %v1027, %v1026
        %v1134 = vpack.c.b16 %v1029, %v1028
        %v1135 = vpack.c.b16 %v1031, %v1030
        %v1136 = vpack.c.b16 %v1033, %v1032
        %v1137 = vpack.c.b16 %v1035, %v1034
        %v1138 = vpack.c.b16 %v1037, %v1036
        %v1139 = vpack.c.b16 %v1039, %v1038
        %v1140 = vpack.c.b16 %v1041, %v1040
        %v1141 = vpack.c.b16 %v1043, %v1042
        %v1142 = vpack.c.b16 %v1045, %v1044
        %v1143 = vpack.c.b16 %v1047, %v1046
        %v1144 = vpack.c.b16 %v1049, %v1048
        %v1145 = vpack.c.b16 %v1051, %v1050
        %v1146 = vpack.c.b16 %v1053, %v1052
        %v1147 = vpack.c.b16 %v1055, %v1054
        %v1148 = vpack.c.b16 %v1057, %v1056
        %v1149 = vpack.c.b16 %v1059, %v1058
        %v1150 = vpack.c.b16 %v1061, %v1060
        %v1151 = vpack.c.b16 %v1063, %v1062
        %v1152 = vpack.c.b16 %v1065, %v1064
        %v1153 = vpack.c.b16 %v1067, %v1066
        %v1154 = vpack.c.b16 %v1069, %v1068
        %v1155 = vpack.c.b16 %v1071, %v1070
        %v1156 = vpack.c.b16 %v1073, %v1072
        %v1157 = vpack.c.b16 %v1075, %v1074
        %v1158 = vpack.c.b16 %v1077, %v1076
        %v1159 = vpack.c.b16 %v1079, %v1078
        %v1160 = vpack.c.b16 %v1081, %v1080
        %v1161 = vpack.c.b16 %v1083, %v1082
        %v1162 = vpack.c.b16 %v1085, %v1084
        %v1163 = vpack.c.b16 %v1087, %v1086
        %v1164 = vpack.c.b16 %v1089, %v1088
        %v1165 = vpack.c.b16 %v1091, %v1090
        %v1166 = vpack.c.b16 %v1093, %v1092
        %v1167 = vpack.c.b16 %v1095, %v1094
        %v1168 = vpack.c.b16 %v1097, %v1096
        %v1169 = vpack.c.b16 %v1099, %v1098
        %v1170 = vpack.c.b16 %v1101, %v1100
        %v1171 = vpack.c.b16 %v1103, %v1102
        %v1172 = vpack.c.b16 %v1105, %v1104
        %v1173 = vpack.c.b16 %v1107, %v1106
        %v1174 = vpack.c.b16 %v1109, %v1108
        %v1175 = vpack.c.b16 %v1111, %v1110
        %v1178 = vunpack.c.l.b16 %v854
        %v1179 = vunpack.c.l.b16 %v855
        %v1180 = vpack.c.b16 %v1179, %v1178
        %vm1181 = vcmask 72704
        %v1183 = vsel %vm1181, %v1112, 0
        %v1186 = vsel %vm1181, %v1113, 0
        %v1189 = vsel %vm1181, %v1114, 0
        %v1192 = vsel %vm1181, %v1115, 0
        %v1195 = vsel %vm1181, %v1116, 0
        %v1198 = vsel %vm1181, %v1117, 0
        %v1201 = vsel %vm1181, %v1118, 0
        %v1204 = vsel %vm1181, %v1119, 0
        %v1207 = vsel %vm1181, %v1120, 0
        %v1210 = vsel %vm1181, %v1121, 0
        %v1213 = vsel %vm1181, %v1122, 0
        %v1216 = vsel %vm1181, %v1123, 0
        %v1219 = vsel %vm1181, %v1124, 0
        %v1222 = vsel %vm1181, %v1125, 0
        %v1225 = vsel %vm1181, %v1126, 0
        %v1228 = vsel %vm1181, %v1127, 0
        %v1231 = vsel %vm1181, %v1128, 0
        %v1234 = vsel %vm1181, %v1129, 0
        %v1237 = vsel %vm1181, %v1130, 0
        %v1240 = vsel %vm1181, %v1131, 0
        %v1243 = vsel %vm1181, %v1132, 0
        %v1246 = vsel %vm1181, %v1133, 0
        %v1249 = vsel %vm1181, %v1134, 0
        %v1252 = vsel %vm1181, %v1135, 0
        %v1255 = vsel %vm1181, %v1136, 0
        %v1258 = vsel %vm1181, %v1137, 0
        %v1261 = vsel %vm1181, %v1138, 0
        %v1264 = vsel %vm1181, %v1139, 0
        %v1267 = vsel %vm1181, %v1140, 0
        %v1270 = vsel %vm1181, %v1141, 0
        %v1273 = vsel %vm1181, %v1142, 0
        %v1276 = vsel %vm1181, %v1143, 0
        %v1279 = vsel %vm1181, %v1144, 0
        %v1282 = vsel %vm1181, %v1145, 0
        %v1285 = vsel %vm1181, %v1146, 0
        %v1288 = vsel %vm1181, %v1147, 0
        %v1291 = vsel %vm1181, %v1148, 0
        %v1294 = vsel %vm1181, %v1149, 0
        %v1297 = vsel %vm1181, %v1150, 0
        %v1300 = vsel %vm1181, %v1151, 0
        %v1303 = vsel %vm1181, %v1152, 0
        %v1306 = vsel %vm1181, %v1153, 0
        %v1309 = vsel %vm1181, %v1154, 0
        %v1312 = vsel %vm1181, %v1155, 0
        %v1315 = vsel %vm1181, %v1156, 0
        %v1318 = vsel %vm1181, %v1157, 0
        %v1321 = vsel %vm1181, %v1158, 0
        %v1324 = vsel %vm1181, %v1159, 0
        %v1327 = vsel %vm1181, %v1160, 0
        %v1330 = vsel %vm1181, %v1161, 0
        %v1333 = vsel %vm1181, %v1162, 0
        %v1336 = vsel %vm1181, %v1163, 0
        %v1339 = vsel %vm1181, %v1164, 0
        %v1342 = vsel %vm1181, %v1165, 0
        %v1345 = vsel %vm1181, %v1166, 0
        %v1348 = vsel %vm1181, %v1167, 0
        %v1351 = vsel %vm1181, %v1168, 0
        %v1354 = vsel %vm1181, %v1169, 0
        %v1357 = vsel %vm1181, %v1170, 0
        %v1360 = vsel %vm1181, %v1171, 0
        %v1363 = vsel %vm1181, %v1172, 0
        %v1366 = vsel %vm1181, %v1173, 0
        %v1369 = vsel %vm1181, %v1174, 0
        %v1372 = vsel %vm1181, %v1175, 0
        %vm1374 = vcmask 1043456
        %vm1375 = vcmask 1044480
        %v1376 = vsel %vm1374, 4294967295, 65535
        %v1377 = vsel %vm1375, %v1376, 0
        %v1379 = vand.u32 %v1180, %v1377
        %1381 = vmatpush.bf16.msra.mxu0 0
        %1382 = vmatpush.bf16.msra.mxu0 0
        %1383 = vmatpush.bf16.msra.mxu0 0
        %1384 = vmatpush.bf16.msra.mxu0 0
        %1385 = vmatpush.bf16.msra.mxu0 0
        %1386 = vmatpush.bf16.msra.mxu0 0
        %1387 = vmatpush.bf16.msra.mxu0 0
        %1388 = vmatpush.bf16.msra.mxu0 %v1379
        %1389 = vmatmul.bf16.gmra.mxu0 %v1183
        %v1390 = vpop.f32.mrf.mxu0
        %v1391 = vadd.f32 0.0, %v1390
        %v1392 = vpop.f32.mrf.mxu0
        %v1393 = vadd.f32 0.0, %v1392
        %1394 = vmatmul.bf16.gmra.mxu0 %v1186
        %v1395 = vpop.f32.mrf.mxu0
        %v1396 = vadd.f32 0.0, %v1395
        %v1397 = vpop.f32.mrf.mxu0
        %v1398 = vadd.f32 0.0, %v1397
        %1399 = vmatmul.bf16.gmra.mxu0 %v1189
        %v1400 = vpop.f32.mrf.mxu0
        %v1401 = vadd.f32 0.0, %v1400
        %v1402 = vpop.f32.mrf.mxu0
        %v1403 = vadd.f32 0.0, %v1402
        %1404 = vmatmul.bf16.gmra.mxu0 %v1192
        %v1405 = vpop.f32.mrf.mxu0
        %v1406 = vadd.f32 0.0, %v1405
        %v1407 = vpop.f32.mrf.mxu0
        %v1408 = vadd.f32 0.0, %v1407
        %1409 = vmatmul.bf16.gmra.mxu0 %v1195
        %v1410 = vpop.f32.mrf.mxu0
        %v1411 = vadd.f32 0.0, %v1410
        %v1412 = vpop.f32.mrf.mxu0
        %v1413 = vadd.f32 0.0, %v1412
        %1414 = vmatmul.bf16.gmra.mxu0 %v1198
        %v1415 = vpop.f32.mrf.mxu0
        %v1416 = vadd.f32 0.0, %v1415
        %v1417 = vpop.f32.mrf.mxu0
        %v1418 = vadd.f32 0.0, %v1417
        %1419 = vmatmul.bf16.gmra.mxu0 %v1201
        %v1420 = vpop.f32.mrf.mxu0
        %v1421 = vadd.f32 0.0, %v1420
        %v1422 = vpop.f32.mrf.mxu0
        %v1423 = vadd.f32 0.0, %v1422
        %1424 = vmatmul.bf16.gmra.mxu0 %v1204
        %v1425 = vpop.f32.mrf.mxu0
        %v1426 = vadd.f32 0.0, %v1425
        %v1427 = vpop.f32.mrf.mxu0
        %v1428 = vadd.f32 0.0, %v1427
        %1429 = vmatmul.bf16.gmra.mxu0 %v1207
        %v1430 = vpop.f32.mrf.mxu0
        %v1431 = vadd.f32 0.0, %v1430
        %v1432 = vpop.f32.mrf.mxu0
        %v1433 = vadd.f32 0.0, %v1432
        %1434 = vmatmul.bf16.gmra.mxu0 %v1210
        %v1435 = vpop.f32.mrf.mxu0
        %v1436 = vadd.f32 0.0, %v1435
        %v1437 = vpop.f32.mrf.mxu0
        %v1438 = vadd.f32 0.0, %v1437
        %1439 = vmatmul.bf16.gmra.mxu0 %v1213
        %v1440 = vpop.f32.mrf.mxu0
        %v1441 = vadd.f32 0.0, %v1440
        %v1442 = vpop.f32.mrf.mxu0
        %v1443 = vadd.f32 0.0, %v1442
        %1444 = vmatmul.bf16.gmra.mxu0 %v1216
        %v1445 = vpop.f32.mrf.mxu0
        %v1446 = vadd.f32 0.0, %v1445
        %v1447 = vpop.f32.mrf.mxu0
        %v1448 = vadd.f32 0.0, %v1447
        %1449 = vmatmul.bf16.gmra.mxu0 %v1219
        %v1450 = vpop.f32.mrf.mxu0
        %v1451 = vadd.f32 0.0, %v1450
        %v1452 = vpop.f32.mrf.mxu0
        %v1453 = vadd.f32 0.0, %v1452
        %1454 = vmatmul.bf16.gmra.mxu0 %v1222
        %v1455 = vpop.f32.mrf.mxu0
        %v1456 = vadd.f32 0.0, %v1455
        %v1457 = vpop.f32.mrf.mxu0
        %v1458 = vadd.f32 0.0, %v1457
        %1459 = vmatmul.bf16.gmra.mxu0 %v1225
        %v1460 = vpop.f32.mrf.mxu0
        %v1461 = vadd.f32 0.0, %v1460
        %v1462 = vpop.f32.mrf.mxu0
        %v1463 = vadd.f32 0.0, %v1462
        %1464 = vmatmul.bf16.gmra.mxu0 %v1228
        %v1465 = vpop.f32.mrf.mxu0
        %v1466 = vadd.f32 0.0, %v1465
        %v1467 = vpop.f32.mrf.mxu0
        %v1468 = vadd.f32 0.0, %v1467
        %1469 = vmatmul.bf16.gmra.mxu0 %v1231
        %v1470 = vpop.f32.mrf.mxu0
        %v1471 = vadd.f32 0.0, %v1470
        %v1472 = vpop.f32.mrf.mxu0
        %v1473 = vadd.f32 0.0, %v1472
        %1474 = vmatmul.bf16.gmra.mxu0 %v1234
        %v1475 = vpop.f32.mrf.mxu0
        %v1476 = vadd.f32 0.0, %v1475
        %v1477 = vpop.f32.mrf.mxu0
        %v1478 = vadd.f32 0.0, %v1477
        %1479 = vmatmul.bf16.gmra.mxu0 %v1237
        %v1480 = vpop.f32.mrf.mxu0
        %v1481 = vadd.f32 0.0, %v1480
        %v1482 = vpop.f32.mrf.mxu0
        %v1483 = vadd.f32 0.0, %v1482
        %1484 = vmatmul.bf16.gmra.mxu0 %v1240
        %v1485 = vpop.f32.mrf.mxu0
        %v1486 = vadd.f32 0.0, %v1485
        %v1487 = vpop.f32.mrf.mxu0
        %v1488 = vadd.f32 0.0, %v1487
        %1489 = vmatmul.bf16.gmra.mxu0 %v1243
        %v1490 = vpop.f32.mrf.mxu0
        %v1491 = vadd.f32 0.0, %v1490
        %v1492 = vpop.f32.mrf.mxu0
        %v1493 = vadd.f32 0.0, %v1492
        %1494 = vmatmul.bf16.gmra.mxu0 %v1246
        %v1495 = vpop.f32.mrf.mxu0
        %v1496 = vadd.f32 0.0, %v1495
        %v1497 = vpop.f32.mrf.mxu0
        %v1498 = vadd.f32 0.0, %v1497
        %1499 = vmatmul.bf16.gmra.mxu0 %v1249
        %v1500 = vpop.f32.mrf.mxu0
        %v1501 = vadd.f32 0.0, %v1500
        %v1502 = vpop.f32.mrf.mxu0
        %v1503 = vadd.f32 0.0, %v1502
        %1504 = vmatmul.bf16.gmra.mxu0 %v1252
        %v1505 = vpop.f32.mrf.mxu0
        %v1506 = vadd.f32 0.0, %v1505
        %v1507 = vpop.f32.mrf.mxu0
        %v1508 = vadd.f32 0.0, %v1507
        %1509 = vmatmul.bf16.gmra.mxu0 %v1255
        %v1510 = vpop.f32.mrf.mxu0
        %v1511 = vadd.f32 0.0, %v1510
        %v1512 = vpop.f32.mrf.mxu0
        %v1513 = vadd.f32 0.0, %v1512
        %1514 = vmatmul.bf16.gmra.mxu0 %v1258
        %v1515 = vpop.f32.mrf.mxu0
        %v1516 = vadd.f32 0.0, %v1515
        %v1517 = vpop.f32.mrf.mxu0
        %v1518 = vadd.f32 0.0, %v1517
        %1519 = vmatmul.bf16.gmra.mxu0 %v1261
        %v1520 = vpop.f32.mrf.mxu0
        %v1521 = vadd.f32 0.0, %v1520
        %v1522 = vpop.f32.mrf.mxu0
        %v1523 = vadd.f32 0.0, %v1522
        %1524 = vmatmul.bf16.gmra.mxu0 %v1264
        %v1525 = vpop.f32.mrf.mxu0
        %v1526 = vadd.f32 0.0, %v1525
        %v1527 = vpop.f32.mrf.mxu0
        %v1528 = vadd.f32 0.0, %v1527
        %1529 = vmatmul.bf16.gmra.mxu0 %v1267
        %v1530 = vpop.f32.mrf.mxu0
        %v1531 = vadd.f32 0.0, %v1530
        %v1532 = vpop.f32.mrf.mxu0
        %v1533 = vadd.f32 0.0, %v1532
        %1534 = vmatmul.bf16.gmra.mxu0 %v1270
        %v1535 = vpop.f32.mrf.mxu0
        %v1536 = vadd.f32 0.0, %v1535
        %v1537 = vpop.f32.mrf.mxu0
        %v1538 = vadd.f32 0.0, %v1537
        %1539 = vmatmul.bf16.gmra.mxu0 %v1273
        %v1540 = vpop.f32.mrf.mxu0
        %v1541 = vadd.f32 0.0, %v1540
        %v1542 = vpop.f32.mrf.mxu0
        %v1543 = vadd.f32 0.0, %v1542
        %1544 = vmatmul.bf16.gmra.mxu0 %v1276
        %v1545 = vpop.f32.mrf.mxu0
        %v1546 = vadd.f32 0.0, %v1545
        %v1547 = vpop.f32.mrf.mxu0
        %v1548 = vadd.f32 0.0, %v1547
        %1549 = vmatmul.bf16.gmra.mxu0 %v1279
        %v1550 = vpop.f32.mrf.mxu0
        %v1551 = vadd.f32 0.0, %v1550
        %v1552 = vpop.f32.mrf.mxu0
        %v1553 = vadd.f32 0.0, %v1552
        %1554 = vmatmul.bf16.gmra.mxu0 %v1282
        %v1555 = vpop.f32.mrf.mxu0
        %v1556 = vadd.f32 0.0, %v1555
        %v1557 = vpop.f32.mrf.mxu0
        %v1558 = vadd.f32 0.0, %v1557
        %1559 = vmatmul.bf16.gmra.mxu0 %v1285
        %v1560 = vpop.f32.mrf.mxu0
        %v1561 = vadd.f32 0.0, %v1560
        %v1562 = vpop.f32.mrf.mxu0
        %v1563 = vadd.f32 0.0, %v1562
        %1564 = vmatmul.bf16.gmra.mxu0 %v1288
        %v1565 = vpop.f32.mrf.mxu0
        %v1566 = vadd.f32 0.0, %v1565
        %v1567 = vpop.f32.mrf.mxu0
        %v1568 = vadd.f32 0.0, %v1567
        %1569 = vmatmul.bf16.gmra.mxu0 %v1291
        %v1570 = vpop.f32.mrf.mxu0
        %v1571 = vadd.f32 0.0, %v1570
        %v1572 = vpop.f32.mrf.mxu0
        %v1573 = vadd.f32 0.0, %v1572
        %1574 = vmatmul.bf16.gmra.mxu0 %v1294
        %v1575 = vpop.f32.mrf.mxu0
        %v1576 = vadd.f32 0.0, %v1575
        %v1577 = vpop.f32.mrf.mxu0
        %v1578 = vadd.f32 0.0, %v1577
        %1579 = vmatmul.bf16.gmra.mxu0 %v1297
        %v1580 = vpop.f32.mrf.mxu0
        %v1581 = vadd.f32 0.0, %v1580
        %v1582 = vpop.f32.mrf.mxu0
        %v1583 = vadd.f32 0.0, %v1582
        %1584 = vmatmul.bf16.gmra.mxu0 %v1300
        %v1585 = vpop.f32.mrf.mxu0
        %v1586 = vadd.f32 0.0, %v1585
        %v1587 = vpop.f32.mrf.mxu0
        %v1588 = vadd.f32 0.0, %v1587
        %1589 = vmatmul.bf16.gmra.mxu0 %v1303
        %v1590 = vpop.f32.mrf.mxu0
        %v1591 = vadd.f32 0.0, %v1590
        %v1592 = vpop.f32.mrf.mxu0
        %v1593 = vadd.f32 0.0, %v1592
        %1594 = vmatmul.bf16.gmra.mxu0 %v1306
        %v1595 = vpop.f32.mrf.mxu0
        %v1596 = vadd.f32 0.0, %v1595
        %v1597 = vpop.f32.mrf.mxu0
        %v1598 = vadd.f32 0.0, %v1597
        %1599 = vmatmul.bf16.gmra.mxu0 %v1309
        %v1600 = vpop.f32.mrf.mxu0
        %v1601 = vadd.f32 0.0, %v1600
        %v1602 = vpop.f32.mrf.mxu0
        %v1603 = vadd.f32 0.0, %v1602
        %1604 = vmatmul.bf16.gmra.mxu0 %v1312
        %v1605 = vpop.f32.mrf.mxu0
        %v1606 = vadd.f32 0.0, %v1605
        %v1607 = vpop.f32.mrf.mxu0
        %v1608 = vadd.f32 0.0, %v1607
        %1609 = vmatmul.bf16.gmra.mxu0 %v1315
        %v1610 = vpop.f32.mrf.mxu0
        %v1611 = vadd.f32 0.0, %v1610
        %v1612 = vpop.f32.mrf.mxu0
        %v1613 = vadd.f32 0.0, %v1612
        %1614 = vmatmul.bf16.gmra.mxu0 %v1318
        %v1615 = vpop.f32.mrf.mxu0
        %v1616 = vadd.f32 0.0, %v1615
        %v1617 = vpop.f32.mrf.mxu0
        %v1618 = vadd.f32 0.0, %v1617
        %1619 = vmatmul.bf16.gmra.mxu0 %v1321
        %v1620 = vpop.f32.mrf.mxu0
        %v1621 = vadd.f32 0.0, %v1620
        %v1622 = vpop.f32.mrf.mxu0
        %v1623 = vadd.f32 0.0, %v1622
        %1624 = vmatmul.bf16.gmra.mxu0 %v1324
        %v1625 = vpop.f32.mrf.mxu0
        %v1626 = vadd.f32 0.0, %v1625
        %v1627 = vpop.f32.mrf.mxu0
        %v1628 = vadd.f32 0.0, %v1627
        %1629 = vmatmul.bf16.gmra.mxu0 %v1327
        %v1630 = vpop.f32.mrf.mxu0
        %v1631 = vadd.f32 0.0, %v1630
        %v1632 = vpop.f32.mrf.mxu0
        %v1633 = vadd.f32 0.0, %v1632
        %1634 = vmatmul.bf16.gmra.mxu0 %v1330
        %v1635 = vpop.f32.mrf.mxu0
        %v1636 = vadd.f32 0.0, %v1635
        %v1637 = vpop.f32.mrf.mxu0
        %v1638 = vadd.f32 0.0, %v1637
        %1639 = vmatmul.bf16.gmra.mxu0 %v1333
        %v1640 = vpop.f32.mrf.mxu0
        %v1641 = vadd.f32 0.0, %v1640
        %v1642 = vpop.f32.mrf.mxu0
        %v1643 = vadd.f32 0.0, %v1642
        %1644 = vmatmul.bf16.gmra.mxu0 %v1336
        %v1645 = vpop.f32.mrf.mxu0
        %v1646 = vadd.f32 0.0, %v1645
        %v1647 = vpop.f32.mrf.mxu0
        %v1648 = vadd.f32 0.0, %v1647
        %1649 = vmatmul.bf16.gmra.mxu0 %v1339
        %v1650 = vpop.f32.mrf.mxu0
        %v1651 = vadd.f32 0.0, %v1650
        %v1652 = vpop.f32.mrf.mxu0
        %v1653 = vadd.f32 0.0, %v1652
        %1654 = vmatmul.bf16.gmra.mxu0 %v1342
        %v1655 = vpop.f32.mrf.mxu0
        %v1656 = vadd.f32 0.0, %v1655
        %v1657 = vpop.f32.mrf.mxu0
        %v1658 = vadd.f32 0.0, %v1657
        %1659 = vmatmul.bf16.gmra.mxu0 %v1345
        %v1660 = vpop.f32.mrf.mxu0
        %v1661 = vadd.f32 0.0, %v1660
        %v1662 = vpop.f32.mrf.mxu0
        %v1663 = vadd.f32 0.0, %v1662
        %1664 = vmatmul.bf16.gmra.mxu0 %v1348
        %v1665 = vpop.f32.mrf.mxu0
        %v1666 = vadd.f32 0.0, %v1665
        %v1667 = vpop.f32.mrf.mxu0
        %v1668 = vadd.f32 0.0, %v1667
        %1669 = vmatmul.bf16.gmra.mxu0 %v1351
        %v1670 = vpop.f32.mrf.mxu0
        %v1671 = vadd.f32 0.0, %v1670
        %v1672 = vpop.f32.mrf.mxu0
        %v1673 = vadd.f32 0.0, %v1672
        %1674 = vmatmul.bf16.gmra.mxu0 %v1354
        %v1675 = vpop.f32.mrf.mxu0
        %v1676 = vadd.f32 0.0, %v1675
        %v1677 = vpop.f32.mrf.mxu0
        %v1678 = vadd.f32 0.0, %v1677
        %1679 = vmatmul.bf16.gmra.mxu0 %v1357
        %v1680 = vpop.f32.mrf.mxu0
        %v1681 = vadd.f32 0.0, %v1680
        %v1682 = vpop.f32.mrf.mxu0
        %v1683 = vadd.f32 0.0, %v1682
        %1684 = vmatmul.bf16.gmra.mxu0 %v1360
        %v1685 = vpop.f32.mrf.mxu0
        %v1686 = vadd.f32 0.0, %v1685
        %v1687 = vpop.f32.mrf.mxu0
        %v1688 = vadd.f32 0.0, %v1687
        %1689 = vmatmul.bf16.gmra.mxu0 %v1363
        %v1690 = vpop.f32.mrf.mxu0
        %v1691 = vadd.f32 0.0, %v1690
        %v1692 = vpop.f32.mrf.mxu0
        %v1693 = vadd.f32 0.0, %v1692
        %1694 = vmatmul.bf16.gmra.mxu0 %v1366
        %v1695 = vpop.f32.mrf.mxu0
        %v1696 = vadd.f32 0.0, %v1695
        %v1697 = vpop.f32.mrf.mxu0
        %v1698 = vadd.f32 0.0, %v1697
        %1699 = vmatmul.bf16.gmra.mxu0 %v1369
        %v1700 = vpop.f32.mrf.mxu0
        %v1701 = vadd.f32 0.0, %v1700
        %v1702 = vpop.f32.mrf.mxu0
        %v1703 = vadd.f32 0.0, %v1702
        %1704 = vmatmul.bf16.gmra.mxu0 %v1372
        %v1705 = vpop.f32.mrf.mxu0
        %v1706 = vadd.f32 0.0, %v1705
        %v1707 = vpop.f32.mrf.mxu0
        %v1708 = vadd.f32 0.0, %v1707
        %1709 = vdwg.mxu0
        %vm1710 = vcmask 261120
        %v1711 = vsel %vm1710, %v1391, -inf
        %v1712 = vsel %vm1710, %v1471, -inf
        %v1713 = vmax.f32 %v1711, %v1712
        %v1714 = vsel %vm1710, %v1551, -inf
        %v1715 = vmax.f32 %v1713, %v1714
        %v1716 = vsel %vm1710, %v1631, -inf
        %v1717 = vmax.f32 %v1715, %v1716
        %v1718 = vsel %vm1710, %v1393, -inf
        %v1719 = vsel %vm1710, %v1473, -inf
        %v1720 = vmax.f32 %v1718, %v1719
        %v1721 = vsel %vm1710, %v1553, -inf
        %v1722 = vmax.f32 %v1720, %v1721
        %v1723 = vsel %vm1710, %v1633, -inf
        %v1724 = vmax.f32 %v1722, %v1723
        %v1725 = vsel %vm1710, %v1396, -inf
        %v1726 = vsel %vm1710, %v1476, -inf
        %v1727 = vmax.f32 %v1725, %v1726
        %v1728 = vsel %vm1710, %v1556, -inf
        %v1729 = vmax.f32 %v1727, %v1728
        %v1730 = vsel %vm1710, %v1636, -inf
        %v1731 = vmax.f32 %v1729, %v1730
        %v1732 = vsel %vm1710, %v1398, -inf
        %v1733 = vsel %vm1710, %v1478, -inf
        %v1734 = vmax.f32 %v1732, %v1733
        %v1735 = vsel %vm1710, %v1558, -inf
        %v1736 = vmax.f32 %v1734, %v1735
        %v1737 = vsel %vm1710, %v1638, -inf
        %v1738 = vmax.f32 %v1736, %v1737
        %v1739 = vsel %vm1710, %v1401, -inf
        %v1740 = vsel %vm1710, %v1481, -inf
        %v1741 = vmax.f32 %v1739, %v1740
        %v1742 = vsel %vm1710, %v1561, -inf
        %v1743 = vmax.f32 %v1741, %v1742
        %v1744 = vsel %vm1710, %v1641, -inf
        %v1745 = vmax.f32 %v1743, %v1744
        %v1746 = vsel %vm1710, %v1403, -inf
        %v1747 = vsel %vm1710, %v1483, -inf
        %v1748 = vmax.f32 %v1746, %v1747
        %v1749 = vsel %vm1710, %v1563, -inf
        %v1750 = vmax.f32 %v1748, %v1749
        %v1751 = vsel %vm1710, %v1643, -inf
        %v1752 = vmax.f32 %v1750, %v1751
        %v1753 = vsel %vm1710, %v1406, -inf
        %v1754 = vsel %vm1710, %v1486, -inf
        %v1755 = vmax.f32 %v1753, %v1754
        %v1756 = vsel %vm1710, %v1566, -inf
        %v1757 = vmax.f32 %v1755, %v1756
        %v1758 = vsel %vm1710, %v1646, -inf
        %v1759 = vmax.f32 %v1757, %v1758
        %v1760 = vsel %vm1710, %v1408, -inf
        %v1761 = vsel %vm1710, %v1488, -inf
        %v1762 = vmax.f32 %v1760, %v1761
        %v1763 = vsel %vm1710, %v1568, -inf
        %v1764 = vmax.f32 %v1762, %v1763
        %v1765 = vsel %vm1710, %v1648, -inf
        %v1766 = vmax.f32 %v1764, %v1765
        %v1767 = vsel %vm1710, %v1411, -inf
        %v1768 = vsel %vm1710, %v1491, -inf
        %v1769 = vmax.f32 %v1767, %v1768
        %v1770 = vsel %vm1710, %v1571, -inf
        %v1771 = vmax.f32 %v1769, %v1770
        %v1772 = vsel %vm1710, %v1651, -inf
        %v1773 = vmax.f32 %v1771, %v1772
        %v1774 = vsel %vm1710, %v1413, -inf
        %v1775 = vsel %vm1710, %v1493, -inf
        %v1776 = vmax.f32 %v1774, %v1775
        %v1777 = vsel %vm1710, %v1573, -inf
        %v1778 = vmax.f32 %v1776, %v1777
        %v1779 = vsel %vm1710, %v1653, -inf
        %v1780 = vmax.f32 %v1778, %v1779
        %v1781 = vsel %vm1710, %v1416, -inf
        %v1782 = vsel %vm1710, %v1496, -inf
        %v1783 = vmax.f32 %v1781, %v1782
        %v1784 = vsel %vm1710, %v1576, -inf
        %v1785 = vmax.f32 %v1783, %v1784
        %v1786 = vsel %vm1710, %v1656, -inf
        %v1787 = vmax.f32 %v1785, %v1786
        %v1788 = vsel %vm1710, %v1418, -inf
        %v1789 = vsel %vm1710, %v1498, -inf
        %v1790 = vmax.f32 %v1788, %v1789
        %v1791 = vsel %vm1710, %v1578, -inf
        %v1792 = vmax.f32 %v1790, %v1791
        %v1793 = vsel %vm1710, %v1658, -inf
        %v1794 = vmax.f32 %v1792, %v1793
        %v1795 = vsel %vm1710, %v1421, -inf
        %v1796 = vsel %vm1710, %v1501, -inf
        %v1797 = vmax.f32 %v1795, %v1796
        %v1798 = vsel %vm1710, %v1581, -inf
        %v1799 = vmax.f32 %v1797, %v1798
        %v1800 = vsel %vm1710, %v1661, -inf
        %v1801 = vmax.f32 %v1799, %v1800
        %v1802 = vsel %vm1710, %v1423, -inf
        %v1803 = vsel %vm1710, %v1503, -inf
        %v1804 = vmax.f32 %v1802, %v1803
        %v1805 = vsel %vm1710, %v1583, -inf
        %v1806 = vmax.f32 %v1804, %v1805
        %v1807 = vsel %vm1710, %v1663, -inf
        %v1808 = vmax.f32 %v1806, %v1807
        %v1809 = vsel %vm1710, %v1426, -inf
        %v1810 = vsel %vm1710, %v1506, -inf
        %v1811 = vmax.f32 %v1809, %v1810
        %v1812 = vsel %vm1710, %v1586, -inf
        %v1813 = vmax.f32 %v1811, %v1812
        %v1814 = vsel %vm1710, %v1666, -inf
        %v1815 = vmax.f32 %v1813, %v1814
        %v1816 = vsel %vm1710, %v1428, -inf
        %v1817 = vsel %vm1710, %v1508, -inf
        %v1818 = vmax.f32 %v1816, %v1817
        %v1819 = vsel %vm1710, %v1588, -inf
        %v1820 = vmax.f32 %v1818, %v1819
        %v1821 = vsel %vm1710, %v1668, -inf
        %v1822 = vmax.f32 %v1820, %v1821
        %v1823 = vsel %vm1710, %v1431, -inf
        %v1824 = vsel %vm1710, %v1511, -inf
        %v1825 = vmax.f32 %v1823, %v1824
        %v1826 = vsel %vm1710, %v1591, -inf
        %v1827 = vmax.f32 %v1825, %v1826
        %v1828 = vsel %vm1710, %v1671, -inf
        %v1829 = vmax.f32 %v1827, %v1828
        %v1830 = vsel %vm1710, %v1433, -inf
        %v1831 = vsel %vm1710, %v1513, -inf
        %v1832 = vmax.f32 %v1830, %v1831
        %v1833 = vsel %vm1710, %v1593, -inf
        %v1834 = vmax.f32 %v1832, %v1833
        %v1835 = vsel %vm1710, %v1673, -inf
        %v1836 = vmax.f32 %v1834, %v1835
        %v1837 = vsel %vm1710, %v1436, -inf
        %v1838 = vsel %vm1710, %v1516, -inf
        %v1839 = vmax.f32 %v1837, %v1838
        %v1840 = vsel %vm1710, %v1596, -inf
        %v1841 = vmax.f32 %v1839, %v1840
        %v1842 = vsel %vm1710, %v1676, -inf
        %v1843 = vmax.f32 %v1841, %v1842
        %v1844 = vsel %vm1710, %v1438, -inf
        %v1845 = vsel %vm1710, %v1518, -inf
        %v1846 = vmax.f32 %v1844, %v1845
        %v1847 = vsel %vm1710, %v1598, -inf
        %v1848 = vmax.f32 %v1846, %v1847
        %v1849 = vsel %vm1710, %v1678, -inf
        %v1850 = vmax.f32 %v1848, %v1849
        %v1851 = vsel %vm1710, %v1441, -inf
        %v1852 = vsel %vm1710, %v1521, -inf
        %v1853 = vmax.f32 %v1851, %v1852
        %v1854 = vsel %vm1710, %v1601, -inf
        %v1855 = vmax.f32 %v1853, %v1854
        %v1856 = vsel %vm1710, %v1681, -inf
        %v1857 = vmax.f32 %v1855, %v1856
        %v1858 = vsel %vm1710, %v1443, -inf
        %v1859 = vsel %vm1710, %v1523, -inf
        %v1860 = vmax.f32 %v1858, %v1859
        %v1861 = vsel %vm1710, %v1603, -inf
        %v1862 = vmax.f32 %v1860, %v1861
        %v1863 = vsel %vm1710, %v1683, -inf
        %v1864 = vmax.f32 %v1862, %v1863
        %v1865 = vsel %vm1710, %v1446, -inf
        %v1866 = vsel %vm1710, %v1526, -inf
        %v1867 = vmax.f32 %v1865, %v1866
        %v1868 = vsel %vm1710, %v1606, -inf
        %v1869 = vmax.f32 %v1867, %v1868
        %v1870 = vsel %vm1710, %v1686, -inf
        %v1871 = vmax.f32 %v1869, %v1870
        %v1872 = vsel %vm1710, %v1448, -inf
        %v1873 = vsel %vm1710, %v1528, -inf
        %v1874 = vmax.f32 %v1872, %v1873
        %v1875 = vsel %vm1710, %v1608, -inf
        %v1876 = vmax.f32 %v1874, %v1875
        %v1877 = vsel %vm1710, %v1688, -inf
        %v1878 = vmax.f32 %v1876, %v1877
        %v1879 = vsel %vm1710, %v1451, -inf
        %v1880 = vsel %vm1710, %v1531, -inf
        %v1881 = vmax.f32 %v1879, %v1880
        %v1882 = vsel %vm1710, %v1611, -inf
        %v1883 = vmax.f32 %v1881, %v1882
        %v1884 = vsel %vm1710, %v1691, -inf
        %v1885 = vmax.f32 %v1883, %v1884
        %v1886 = vsel %vm1710, %v1453, -inf
        %v1887 = vsel %vm1710, %v1533, -inf
        %v1888 = vmax.f32 %v1886, %v1887
        %v1889 = vsel %vm1710, %v1613, -inf
        %v1890 = vmax.f32 %v1888, %v1889
        %v1891 = vsel %vm1710, %v1693, -inf
        %v1892 = vmax.f32 %v1890, %v1891
        %v1893 = vsel %vm1710, %v1456, -inf
        %v1894 = vsel %vm1710, %v1536, -inf
        %v1895 = vmax.f32 %v1893, %v1894
        %v1896 = vsel %vm1710, %v1616, -inf
        %v1897 = vmax.f32 %v1895, %v1896
        %v1898 = vsel %vm1710, %v1696, -inf
        %v1899 = vmax.f32 %v1897, %v1898
        %v1900 = vsel %vm1710, %v1458, -inf
        %v1901 = vsel %vm1710, %v1538, -inf
        %v1902 = vmax.f32 %v1900, %v1901
        %v1903 = vsel %vm1710, %v1618, -inf
        %v1904 = vmax.f32 %v1902, %v1903
        %v1905 = vsel %vm1710, %v1698, -inf
        %v1906 = vmax.f32 %v1904, %v1905
        %v1907 = vsel %vm1710, %v1461, -inf
        %v1908 = vsel %vm1710, %v1541, -inf
        %v1909 = vmax.f32 %v1907, %v1908
        %v1910 = vsel %vm1710, %v1621, -inf
        %v1911 = vmax.f32 %v1909, %v1910
        %v1912 = vsel %vm1710, %v1701, -inf
        %v1913 = vmax.f32 %v1911, %v1912
        %v1914 = vsel %vm1710, %v1463, -inf
        %v1915 = vsel %vm1710, %v1543, -inf
        %v1916 = vmax.f32 %v1914, %v1915
        %v1917 = vsel %vm1710, %v1623, -inf
        %v1918 = vmax.f32 %v1916, %v1917
        %v1919 = vsel %vm1710, %v1703, -inf
        %v1920 = vmax.f32 %v1918, %v1919
        %v1921 = vsel %vm1710, %v1466, -inf
        %v1922 = vsel %vm1710, %v1546, -inf
        %v1923 = vmax.f32 %v1921, %v1922
        %v1924 = vsel %vm1710, %v1626, -inf
        %v1925 = vmax.f32 %v1923, %v1924
        %v1926 = vsel %vm1710, %v1706, -inf
        %v1927 = vmax.f32 %v1925, %v1926
        %v1928 = vsel %vm1710, %v1468, -inf
        %v1929 = vsel %vm1710, %v1548, -inf
        %v1930 = vmax.f32 %v1928, %v1929
        %v1931 = vsel %vm1710, %v1628, -inf
        %v1932 = vmax.f32 %v1930, %v1931
        %v1933 = vsel %vm1710, %v1708, -inf
        %v1934 = vmax.f32 %v1932, %v1933
        %v1935 = vld [vmem:[%s2] sm:$0x1]
        %v1937 = vperm.slane %v1935, 0
        %v1939 = vadd.f32 %v1717, %v1937
        %v1940 = vadd.f32 %v1724, %v1937
        %v1941 = vadd.f32 %v1731, %v1937
        %v1942 = vadd.f32 %v1738, %v1937
        %v1943 = vadd.f32 %v1745, %v1937
        %v1944 = vadd.f32 %v1752, %v1937
        %v1945 = vadd.f32 %v1759, %v1937
        %v1946 = vadd.f32 %v1766, %v1937
        %v1947 = vadd.f32 %v1773, %v1937
        %v1948 = vadd.f32 %v1780, %v1937
        %v1949 = vadd.f32 %v1787, %v1937
        %v1950 = vadd.f32 %v1794, %v1937
        %v1951 = vadd.f32 %v1801, %v1937
        %v1952 = vadd.f32 %v1808, %v1937
        %v1953 = vadd.f32 %v1815, %v1937
        %v1954 = vadd.f32 %v1822, %v1937
        %v1955 = vadd.f32 %v1829, %v1937
        %v1956 = vadd.f32 %v1836, %v1937
        %v1957 = vadd.f32 %v1843, %v1937
        %v1958 = vadd.f32 %v1850, %v1937
        %v1959 = vadd.f32 %v1857, %v1937
        %v1960 = vadd.f32 %v1864, %v1937
        %v1961 = vadd.f32 %v1871, %v1937
        %v1962 = vadd.f32 %v1878, %v1937
        %v1963 = vadd.f32 %v1885, %v1937
        %v1964 = vadd.f32 %v1892, %v1937
        %v1965 = vadd.f32 %v1899, %v1937
        %v1966 = vadd.f32 %v1906, %v1937
        %v1967 = vadd.f32 %v1913, %v1937
        %v1968 = vadd.f32 %v1920, %v1937
        %v1969 = vadd.f32 %v1927, %v1937
        %v1970 = vadd.f32 %v1934, %v1937
        %v1971 = vmax.f32 %v1939, 0.0
        %v1972 = vmax.f32 %v1940, 0.0
        %v1973 = vmax.f32 %v1941, 0.0
        %v1974 = vmax.f32 %v1942, 0.0
        %v1975 = vmax.f32 %v1943, 0.0
        %v1976 = vmax.f32 %v1944, 0.0
        %v1977 = vmax.f32 %v1945, 0.0
        %v1978 = vmax.f32 %v1946, 0.0
        %v1979 = vmax.f32 %v1947, 0.0
        %v1980 = vmax.f32 %v1948, 0.0
        %v1981 = vmax.f32 %v1949, 0.0
        %v1982 = vmax.f32 %v1950, 0.0
        %v1983 = vmax.f32 %v1951, 0.0
        %v1984 = vmax.f32 %v1952, 0.0
        %v1985 = vmax.f32 %v1953, 0.0
        %v1986 = vmax.f32 %v1954, 0.0
        %v1987 = vmax.f32 %v1955, 0.0
        %v1988 = vmax.f32 %v1956, 0.0
        %v1989 = vmax.f32 %v1957, 0.0
        %v1990 = vmax.f32 %v1958, 0.0
        %v1991 = vmax.f32 %v1959, 0.0
        %v1992 = vmax.f32 %v1960, 0.0
        %v1993 = vmax.f32 %v1961, 0.0
        %v1994 = vmax.f32 %v1962, 0.0
        %v1995 = vmax.f32 %v1963, 0.0
        %v1996 = vmax.f32 %v1964, 0.0
        %v1997 = vmax.f32 %v1965, 0.0
        %v1998 = vmax.f32 %v1966, 0.0
        %v1999 = vmax.f32 %v1967, 0.0
        %v2000 = vmax.f32 %v1968, 0.0
        %v2001 = vmax.f32 %v1969, 0.0
        %v2002 = vmax.f32 %v1970, 0.0
        %v2003 = vpack.c.bf16 %v1971, %v1971
        %v2004 = vpack.c.bf16 %v1972, %v1972
        %v2005 = vpack.c.bf16 %v1973, %v1973
        %v2006 = vpack.c.bf16 %v1974, %v1974
        %v2007 = vpack.c.bf16 %v1975, %v1975
        %v2008 = vpack.c.bf16 %v1976, %v1976
        %v2009 = vpack.c.bf16 %v1977, %v1977
        %v2010 = vpack.c.bf16 %v1978, %v1978
        %v2011 = vpack.c.bf16 %v1979, %v1979
        %v2012 = vpack.c.bf16 %v1980, %v1980
        %v2013 = vpack.c.bf16 %v1981, %v1981
        %v2014 = vpack.c.bf16 %v1982, %v1982
        %v2015 = vpack.c.bf16 %v1983, %v1983
        %v2016 = vpack.c.bf16 %v1984, %v1984
        %v2017 = vpack.c.bf16 %v1985, %v1985
        %v2018 = vpack.c.bf16 %v1986, %v1986
        %v2019 = vpack.c.bf16 %v1987, %v1987
        %v2020 = vpack.c.bf16 %v1988, %v1988
        %v2021 = vpack.c.bf16 %v1989, %v1989
        %v2022 = vpack.c.bf16 %v1990, %v1990
        %v2023 = vpack.c.bf16 %v1991, %v1991
        %v2024 = vpack.c.bf16 %v1992, %v1992
        %v2025 = vpack.c.bf16 %v1993, %v1993
        %v2026 = vpack.c.bf16 %v1994, %v1994
        %v2027 = vpack.c.bf16 %v1995, %v1995
        %v2028 = vpack.c.bf16 %v1996, %v1996
        %v2029 = vpack.c.bf16 %v1997, %v1997
        %v2030 = vpack.c.bf16 %v1998, %v1998
        %v2031 = vpack.c.bf16 %v1999, %v1999
        %v2032 = vpack.c.bf16 %v2000, %v2000
        %v2033 = vpack.c.bf16 %v2001, %v2001
        %v2034 = vpack.c.bf16 %v2002, %v2002
        %vm2035 = vcmask 257024
        %2036 = vst.msk [vmem:[%s723] sm:$0xf] %vm2035, %v2003
        %2037 = vst.msk [vmem:[%s723 + $0x4] sm:$0xf] %vm2035, %v2004
        %2038 = vst.msk [vmem:[%s723 + $0x8] sm:$0xf] %vm2035, %v2005
        %2039 = vst.msk [vmem:[%s723 + $0xc] sm:$0xf] %vm2035, %v2006
        %2040 = vst.msk [vmem:[%s723 + $0x10] sm:$0xf] %vm2035, %v2007
        %2041 = vst.msk [vmem:[%s723 + $0x14] sm:$0xf] %vm2035, %v2008
        %2042 = vst.msk [vmem:[%s723 + $0x18] sm:$0xf] %vm2035, %v2009
        %2043 = vst.msk [vmem:[%s723 + $0x1c] sm:$0xf] %vm2035, %v2010
        %2044 = vst.msk [vmem:[%s723 + $0x20] sm:$0xf] %vm2035, %v2011
        %2045 = vst.msk [vmem:[%s723 + $0x24] sm:$0xf] %vm2035, %v2012
        %2046 = vst.msk [vmem:[%s723 + $0x28] sm:$0xf] %vm2035, %v2013
        %2047 = vst.msk [vmem:[%s723 + $0x2c] sm:$0xf] %vm2035, %v2014
        %2048 = vst.msk [vmem:[%s723 + $0x30] sm:$0xf] %vm2035, %v2015
        %2049 = vst.msk [vmem:[%s723 + $0x34] sm:$0xf] %vm2035, %v2016
        %2050 = vst.msk [vmem:[%s723 + $0x38] sm:$0xf] %vm2035, %v2017
        %2051 = vst.msk [vmem:[%s723 + $0x3c] sm:$0xf] %vm2035, %v2018
        %2052 = vst.msk [vmem:[%s723 + $0x40] sm:$0xf] %vm2035, %v2019
        %2053 = vst.msk [vmem:[%s723 + $0x44] sm:$0xf] %vm2035, %v2020
        %2054 = vst.msk [vmem:[%s723 + $0x48] sm:$0xf] %vm2035, %v2021
        %2055 = vst.msk [vmem:[%s723 + $0x4c] sm:$0xf] %vm2035, %v2022
        %2056 = vst.msk [vmem:[%s723 + $0x50] sm:$0xf] %vm2035, %v2023
        %2057 = vst.msk [vmem:[%s723 + $0x54] sm:$0xf] %vm2035, %v2024
        %2058 = vst.msk [vmem:[%s723 + $0x58] sm:$0xf] %vm2035, %v2025
        %2059 = vst.msk [vmem:[%s723 + $0x5c] sm:$0xf] %vm2035, %v2026
        %2060 = vst.msk [vmem:[%s723 + $0x60] sm:$0xf] %vm2035, %v2027
        %2061 = vst.msk [vmem:[%s723 + $0x64] sm:$0xf] %vm2035, %v2028
        %2062 = vst.msk [vmem:[%s723 + $0x68] sm:$0xf] %vm2035, %v2029
        %2063 = vst.msk [vmem:[%s723 + $0x6c] sm:$0xf] %vm2035, %v2030
        %2064 = vst.msk [vmem:[%s723 + $0x70] sm:$0xf] %vm2035, %v2031
        %2065 = vst.msk [vmem:[%s723 + $0x74] sm:$0xf] %vm2035, %v2032
        %2066 = vst.msk [vmem:[%s723 + $0x78] sm:$0xf] %vm2035, %v2033
        %2067 = vst.msk [vmem:[%s723 + $0x7c] sm:$0xf] %vm2035, %v2034
        %s2068 = smul.u32 32, %s14
        %p2069 = scmp.lt.s32.totalorder %s2068, 63
        %s2070 = scalar_select %p2069, %s2068, 63
        %s2071 = smul.addr %s2070, 4
        %s2072 = scalar_lea.vmem %s3, %s2071
        // Predicated region
        $region74: #{cnn_multilabel_forward.2} parent=68 // pred_check
          %p2073 = pneg %p100
        $region75: #{cnn_multilabel_forward.2} parent=68 // pred_check_branch
          %2075 = sbr.rel (%p2073) target = $region77
        $region76: #{cnn_multilabel_forward.2} parent=68 // pred_region
          %s2076 = smul.u32 32, %s14
        $region77: #{cnn_multilabel_forward.2} parent=68 // pred_fallthru
          _
      $region69: #{cnn_multilabel_forward.2} parent=5 // pred_fallthru
        _
      %p2077 = scmp.le.s32.totalorder 2, %s9
      // Predicated region
      $region78: #{cnn_multilabel_forward.2} parent=5 // pred_check
        %p2078 = pneg %p2077
      $region79: #{cnn_multilabel_forward.2} parent=5 // pred_check_branch
        %2080 = sbr.rel (%p2078) target = $region81
      $region80: #{cnn_multilabel_forward.2} parent=5 // pred_region
        %s2081 = ssub.s32 %s9, 2
        // Predicated region
        $region82: #{cnn_multilabel_forward.2} parent=80 // pred_check
          %p2082 = pneg %p106
        $region83: #{cnn_multilabel_forward.2} parent=80 // pred_check_branch
          %2084 = sbr.rel (%p2082) target = $region85
        $region84: #{cnn_multilabel_forward.2} parent=80 // pred_region
          %s2085 = smul.u32 32, %s15
          %p2086 = scmp.lt.s32.totalorder %s2085, 63
          %s2087 = scalar_select %p2086, %s2085, 63
          %s2088 = smul.addr %s2087, 4
          %s2089 = scalar_lea.vmem %s3, %s2088
        $region85: #{cnn_multilabel_forward.2} parent=80 // pred_fallthru
          _
      $region81: #{cnn_multilabel_forward.2} parent=5 // pred_fallthru
        _
    $region6: #{cnn_multilabel_forward.2} parent=1 // loop_footer
      %s13 = sadd.s32 1, %s9
    $region7: #{cnn_multilabel_forward.2} parent=1 // loop_footer_branch
      %8 = sbr.rel target = $region3
    $region8: #{cnn_multilabel_forward.2} parent=1 // loop_exit
      _

// kernel: cnn_multilabel_forward.3
$region0: #{cnn_multilabel_forward.3}
  #allocation0 [shape = 'u32[]', space=smem, size = 0x4, offset = 0x4, fixed_abs, tag = 'smem constant byte address 0x4 - core index']
  #allocation1 [shape = 'u32[72,128]{1,0:T(1,128)}', space=vmem, size = 0x9000, scoped, tag = 'internal scratch']
  %s0 = inlined_call_operand.vmem [shape: bf16[4,32,288], index: 0, kind: input, shape index: {}]
  %s1 = inlined_call_operand.vmem [shape: bf16[288,64], index: 1, kind: input, shape index: {}]
  %s2 = inlined_call_operand.vmem [shape: f32[1,64], index: 2, kind: input, shape index: {}]
  %s3 = inlined_call_operand.vmem [shape: bf16[9,64,128], index: 3, kind: input, shape index: {}]
  %s4 = inlined_call_operand.vmem [shape: f32[1,128], index: 4, kind: input, shape index: {}]
  %s5 = inlined_call_operand.vmem [shape: bf16[128,128], index: 5, kind: input, shape index: {}]
  %s6 = inlined_call_operand.vmem [shape: f32[1,128], index: 6, kind: input, shape index: {}]
  %s7 = inlined_call_operand.vmem [shape: bf16[128,64], index: 7, kind: input, shape index: {}]
  %s8 = inlined_call_operand.vmem [shape: f32[1,64], index: 8, kind: input, shape index: {}]
  %s9 = inlined_call_operand.vmem [shape: bf16[64,128], index: 9, kind: input, shape index: {}]
  %s10 = inlined_call_operand.vmem [shape: f32[1,128], index: 10, kind: input, shape index: {}]
  %s11 = inlined_call_operand.hbm [shape: f32[2,1,128], index: 11, kind: output, shape index: {}]
  %s12 = sld [smem:[#allocation0]]
  $region103: #{cnn_multilabel_forward.3} parent=0
    _
  %s14 = ssub.s32 1, %s12
  %s15 = scalar_select 0, %s14, %s12
  $region1: #{cnn_multilabel_forward.3} parent=0
    #allocation2 [shape = 'u8[98304]{0}', space=vmem, size = 0x18000, scoped, tag = 'input window, operand 0']
    #allocation3 [shape = 'u8[1024]{0}', space=vmem, size = 0x400, scoped, tag = 'output window, operand 0']
    #allocation4 [shape = 's32[2]{0}', space=sflag, size = 0x8, scoped, tag = 'scoped memory for cnn_multilabel_forward.3']
    %16 = vsyncpa [#allocation4], 0
    %s17 = scalar_lea.sflag [#allocation4], 1
    %18 = vsyncpa %s17, 0
    loop: start=0, step=1, limit=4
    $region2: #{cnn_multilabel_forward.3} parent=1 // loop_pre_header
      _
    $region3: #{cnn_multilabel_forward.3} parent=1 // loop_header
      %s20 = sphi 0, %s24
      %p21 = scmp.ge.s32.totalorder %s20, 4
      %s30 = sphi 0, %s32
      %s33 = sphi 0, %s30
      %s34 = sphi 0, %s33
      %s50 = sphi 0, %s34
      %s54 = sphi 0, %s54
      %s56 = sphi 0, %s54
      %s57 = sphi 0, %s56
      %s71 = sphi 0, %s57
      %s75 = sphi 0, %s75
      %s77 = sphi 0, %s75
      %s78 = sphi 0, %s77
      %s92 = sphi 0, %s78
      %s96 = sphi 0, %s96
      %s98 = sphi 0, %s96
      %s99 = sphi 0, %s98
      %s113 = sphi 0, %s99
      %s117 = sphi 0, %s117
      %s119 = sphi 0, %s117
      %s120 = sphi 0, %s119
      %s134 = sphi 0, %s120
      %s138 = sphi 0, %s138
      %s140 = sphi 0, %s138
      %s141 = sphi 0, %s140
      %s155 = sphi 0, %s141
      %s159 = sphi 0, %s159
      %s161 = sphi 0, %s159
      %s162 = sphi 0, %s161
      %s176 = sphi 0, %s162
      %s180 = sphi 0, %s180
      %s182 = sphi 0, %s180
      %s183 = sphi 0, %s182
      %s197 = sphi 0, %s183
      %s201 = sphi 0, %s201
      %s203 = sphi 0, %s201
      %s204 = sphi 0, %s203
      %s218 = sphi 0, %s204
      %s222 = sphi 0, %s222
      %s224 = sphi 0, %s222
      %s225 = sphi 0, %s224
      %s239 = sphi 0, %s225
      %s243 = sphi 0, %s243
      %s245 = sphi 0, %s243
      %s246 = sphi 0, %s245
      %s260 = sphi 0, %s246
      %s266 = sphi 0, %s268
      %s269 = sphi 0, %s266
      %s270 = sphi 0, %s269
      %s286 = sphi 0, %s270
    $region4: #{cnn_multilabel_forward.3} parent=1 // loop_header_branch
      %23 = sbr.rel (%p21) target = $region8
    $region5: #{cnn_multilabel_forward.3} parent=1 // loop_body
      %s25 = ssub.s32 %s20, 1
      %s26 = ssub.s32 %s20, 2
      %s27 = sadd.s32 %s20, 1
      %s28 = ssub.s32 %s20, %s27
      %p29 = scmp.eq.s32.totalorder %s28, 0
      %s31 = sadd.s32 %s30, 1
      %s32 = scalar_select %p29, %s30, %s31
      %p35 = pneg %p29
      %p36 = scmp.eq.s32.totalorder %s20, 1
      %p37 = por %p35, %p36
      %p38 = scmp.ne.s32.totalorder %s30, %s33
      %p39 = scmp.eq.s32.totalorder %s20, 0
      %p40 = por %p38, %p39
      %p41 = scmp.ne.s32.totalorder %s30, %s33
      %p42 = scmp.eq.s32.totalorder %s25, 1
      %p43 = por %p41, %p42
      %p44 = scmp.ne.s32.totalorder %s33, %s34
      %p45 = scmp.eq.s32.totalorder %s25, 0
      %p46 = por %p44, %p45
      %p47 = scmp.ne.s32.totalorder %s33, %s34
      %p48 = scmp.eq.s32.totalorder %s26, 1
      %p49 = por %p47, %p48
      %p51 = scmp.ne.s32.totalorder %s34, %s50
      %p52 = scmp.eq.s32.totalorder %s26, 0
      %p53 = por %p51, %p52
      %s55 = sadd.s32 %s54, 1
      %p58 = scmp.eq.s32.totalorder %s20, 1
      %p59 = scmp.ne.s32.totalorder %s54, %s56
      %p60 = scmp.eq.s32.totalorder %s20, 0
      %p61 = por %p59, %p60
      %p62 = scmp.ne.s32.totalorder %s54, %s56
      %p63 = scmp.eq.s32.totalorder %s25, 1
      %p64 = por %p62, %p63
      %p65 = scmp.ne.s32.totalorder %s56, %s57
      %p66 = scmp.eq.s32.totalorder %s25, 0
      %p67 = por %p65, %p66
      %p68 = scmp.ne.s32.totalorder %s56, %s57
      %p69 = scmp.eq.s32.totalorder %s26, 1
      %p70 = por %p68, %p69
      %p72 = scmp.ne.s32.totalorder %s57, %s71
      %p73 = scmp.eq.s32.totalorder %s26, 0
      %p74 = por %p72, %p73
      %s76 = sadd.s32 %s75, 1
      %p79 = scmp.eq.s32.totalorder %s20, 1
      %p80 = scmp.ne.s32.totalorder %s75, %s77
      %p81 = scmp.eq.s32.totalorder %s20, 0
      %p82 = por %p80, %p81
      %p83 = scmp.ne.s32.totalorder %s75, %s77
      %p84 = scmp.eq.s32.totalorder %s25, 1
      %p85 = por %p83, %p84
      %p86 = scmp.ne.s32.totalorder %s77, %s78
      %p87 = scmp.eq.s32.totalorder %s25, 0
      %p88 = por %p86, %p87
      %p89 = scmp.ne.s32.totalorder %s77, %s78
      %p90 = scmp.eq.s32.totalorder %s26, 1
      %p91 = por %p89, %p90
      %p93 = scmp.ne.s32.totalorder %s78, %s92
      %p94 = scmp.eq.s32.totalorder %s26, 0
      %p95 = por %p93, %p94
      %s97 = sadd.s32 %s96, 1
      %p100 = scmp.eq.s32.totalorder %s20, 1
      %p101 = scmp.ne.s32.totalorder %s96, %s98
      %p102 = scmp.eq.s32.totalorder %s20, 0
      %p103 = por %p101, %p102
      %p104 = scmp.ne.s32.totalorder %s96, %s98
      %p105 = scmp.eq.s32.totalorder %s25, 1
      %p106 = por %p104, %p105
      %p107 = scmp.ne.s32.totalorder %s98, %s99
      %p108 = scmp.eq.s32.totalorder %s25, 0
      %p109 = por %p107, %p108
      %p110 = scmp.ne.s32.totalorder %s98, %s99
      %p111 = scmp.eq.s32.totalorder %s26, 1
      %p112 = por %p110, %p111
      %p114 = scmp.ne.s32.totalorder %s99, %s113
      %p115 = scmp.eq.s32.totalorder %s26, 0
      %p116 = por %p114, %p115
      %s118 = sadd.s32 %s117, 1
      %p121 = scmp.eq.s32.totalorder %s20, 1
      %p122 = scmp.ne.s32.totalorder %s117, %s119
      %p123 = scmp.eq.s32.totalorder %s20, 0
      %p124 = por %p122, %p123
      %p125 = scmp.ne.s32.totalorder %s117, %s119
      %p126 = scmp.eq.s32.totalorder %s25, 1
      %p127 = por %p125, %p126
      %p128 = scmp.ne.s32.totalorder %s119, %s120
      %p129 = scmp.eq.s32.totalorder %s25, 0
      %p130 = por %p128, %p129
      %p131 = scmp.ne.s32.totalorder %s119, %s120
      %p132 = scmp.eq.s32.totalorder %s26, 1
      %p133 = por %p131, %p132
      %p135 = scmp.ne.s32.totalorder %s120, %s134
      %p136 = scmp.eq.s32.totalorder %s26, 0
      %p137 = por %p135, %p136
      %s139 = sadd.s32 %s138, 1
      %p142 = scmp.eq.s32.totalorder %s20, 1
      %p143 = scmp.ne.s32.totalorder %s138, %s140
      %p144 = scmp.eq.s32.totalorder %s20, 0
      %p145 = por %p143, %p144
      %p146 = scmp.ne.s32.totalorder %s138, %s140
      %p147 = scmp.eq.s32.totalorder %s25, 1
      %p148 = por %p146, %p147
      %p149 = scmp.ne.s32.totalorder %s140, %s141
      %p150 = scmp.eq.s32.totalorder %s25, 0
      %p151 = por %p149, %p150
      %p152 = scmp.ne.s32.totalorder %s140, %s141
      %p153 = scmp.eq.s32.totalorder %s26, 1
      %p154 = por %p152, %p153
      %p156 = scmp.ne.s32.totalorder %s141, %s155
      %p157 = scmp.eq.s32.totalorder %s26, 0
      %p158 = por %p156, %p157
      %s160 = sadd.s32 %s159, 1
      %p163 = scmp.eq.s32.totalorder %s20, 1
      %p164 = scmp.ne.s32.totalorder %s159, %s161
      %p165 = scmp.eq.s32.totalorder %s20, 0
      %p166 = por %p164, %p165
      %p167 = scmp.ne.s32.totalorder %s159, %s161
      %p168 = scmp.eq.s32.totalorder %s25, 1
      %p169 = por %p167, %p168
      %p170 = scmp.ne.s32.totalorder %s161, %s162
      %p171 = scmp.eq.s32.totalorder %s25, 0
      %p172 = por %p170, %p171
      %p173 = scmp.ne.s32.totalorder %s161, %s162
      %p174 = scmp.eq.s32.totalorder %s26, 1
      %p175 = por %p173, %p174
      %p177 = scmp.ne.s32.totalorder %s162, %s176
      %p178 = scmp.eq.s32.totalorder %s26, 0
      %p179 = por %p177, %p178
      %s181 = sadd.s32 %s180, 1
      %p184 = scmp.eq.s32.totalorder %s20, 1
      %p185 = scmp.ne.s32.totalorder %s180, %s182
      %p186 = scmp.eq.s32.totalorder %s20, 0
      %p187 = por %p185, %p186
      %p188 = scmp.ne.s32.totalorder %s180, %s182
      %p189 = scmp.eq.s32.totalorder %s25, 1
      %p190 = por %p188, %p189
      %p191 = scmp.ne.s32.totalorder %s182, %s183
      %p192 = scmp.eq.s32.totalorder %s25, 0
      %p193 = por %p191, %p192
      %p194 = scmp.ne.s32.totalorder %s182, %s183
      %p195 = scmp.eq.s32.totalorder %s26, 1
      %p196 = por %p194, %p195
      %p198 = scmp.ne.s32.totalorder %s183, %s197
      %p199 = scmp.eq.s32.totalorder %s26, 0
      %p200 = por %p198, %p199
      %s202 = sadd.s32 %s201, 1
      %p205 = scmp.eq.s32.totalorder %s20, 1
      %p206 = scmp.ne.s32.totalorder %s201, %s203
      %p207 = scmp.eq.s32.totalorder %s20, 0
      %p208 = por %p206, %p207
      %p209 = scmp.ne.s32.totalorder %s201, %s203
      %p210 = scmp.eq.s32.totalorder %s25, 1
      %p211 = por %p209, %p210
      %p212 = scmp.ne.s32.totalorder %s203, %s204
      %p213 = scmp.eq.s32.totalorder %s25, 0
      %p214 = por %p212, %p213
      %p215 = scmp.ne.s32.totalorder %s203, %s204
      %p216 = scmp.eq.s32.totalorder %s26, 1
      %p217 = por %p215, %p216
      %p219 = scmp.ne.s32.totalorder %s204, %s218
      %p220 = scmp.eq.s32.totalorder %s26, 0
      %p221 = por %p219, %p220
      %s223 = sadd.s32 %s222, 1
      %p226 = scmp.eq.s32.totalorder %s20, 1
      %p227 = scmp.ne.s32.totalorder %s222, %s224
      %p228 = scmp.eq.s32.totalorder %s20, 0
      %p229 = por %p227, %p228
      %p230 = scmp.ne.s32.totalorder %s222, %s224
      %p231 = scmp.eq.s32.totalorder %s25, 1
      %p232 = por %p230, %p231
      %p233 = scmp.ne.s32.totalorder %s224, %s225
      %p234 = scmp.eq.s32.totalorder %s25, 0
      %p235 = por %p233, %p234
      %p236 = scmp.ne.s32.totalorder %s224, %s225
      %p237 = scmp.eq.s32.totalorder %s26, 1
      %p238 = por %p236, %p237
      %p240 = scmp.ne.s32.totalorder %s225, %s239
      %p241 = scmp.eq.s32.totalorder %s26, 0
      %p242 = por %p240, %p241
      %s244 = sadd.s32 %s243, 1
      %p247 = scmp.eq.s32.totalorder %s20, 1
      %p248 = scmp.ne.s32.totalorder %s243, %s245
      %p249 = scmp.eq.s32.totalorder %s20, 0
      %p250 = por %p248, %p249
      %p251 = scmp.ne.s32.totalorder %s243, %s245
      %p252 = scmp.eq.s32.totalorder %s25, 1
      %p253 = por %p251, %p252
      %p254 = scmp.ne.s32.totalorder %s245, %s246
      %p255 = scmp.eq.s32.totalorder %s25, 0
      %p256 = por %p254, %p255
      %p257 = scmp.ne.s32.totalorder %s245, %s246
      %p258 = scmp.eq.s32.totalorder %s26, 1
      %p259 = por %p257, %p258
      %p261 = scmp.ne.s32.totalorder %s246, %s260
      %p262 = scmp.eq.s32.totalorder %s26, 0
      %p263 = por %p261, %p262
      %s264 = ssub.s32 %s20, %s27
      %p265 = scmp.eq.s32.totalorder %s264, 0
      %s267 = sadd.s32 %s266, 1
      %s268 = scalar_select %p265, %s266, %s267
      %p271 = pneg %p265
      %p272 = scmp.eq.s32.totalorder %s20, 1
      %p273 = por %p271, %p272
      %p274 = scmp.ne.s32.totalorder %s266, %s269
      %p275 = scmp.eq.s32.totalorder %s20, 0
      %p276 = por %p274, %p275
      %p277 = scmp.ne.s32.totalorder %s266, %s269
      %p278 = scmp.eq.s32.totalorder %s25, 1
      %p279 = por %p277, %p278
      %p280 = scmp.ne.s32.totalorder %s269, %s270
      %p281 = scmp.eq.s32.totalorder %s25, 0
      %p282 = por %p280, %p281
      %p283 = scmp.ne.s32.totalorder %s269, %s270
      %p284 = scmp.eq.s32.totalorder %s26, 1
      %p285 = por %p283, %p284
      %p287 = scmp.ne.s32.totalorder %s270, %s286
      %p288 = scmp.eq.s32.totalorder %s26, 0
      %p289 = por %p287, %p288
      %p290 = scmp.le.s32.totalorder 1, %s20
      %p291 = scmp.lt.s32.totalorder %s20, 3
      %p292 = pnand %p290, %p291
      %p293 = pneg %p292
      // Predicated region
      $region9: #{cnn_multilabel_forward.3} parent=5 // pred_check
        _
      $region10: #{cnn_multilabel_forward.3} parent=5 // pred_check_branch
        %295 = sbr.rel (%p292) target = $region12
      $region11: #{cnn_multilabel_forward.3} parent=5 // pred_region
        %s296 = ssub.s32 %s20, 1
        // Predicated region
        $region13: #{cnn_multilabel_forward.3} parent=11 // pred_check
          %p297 = pneg %p67
        $region14: #{cnn_multilabel_forward.3} parent=11 // pred_check_branch
          %299 = sbr.rel (%p297) target = $region16
        $region15: #{cnn_multilabel_forward.3} parent=11 // pred_region
          _
        $region16: #{cnn_multilabel_forward.3} parent=11 // pred_fallthru
          _
        // Predicated region
        $region17: #{cnn_multilabel_forward.3} parent=11 // pred_check
          %p300 = pneg %p88
        $region18: #{cnn_multilabel_forward.3} parent=11 // pred_check_branch
          %302 = sbr.rel (%p300) target = $region20
        $region19: #{cnn_multilabel_forward.3} parent=11 // pred_region
          _
        $region20: #{cnn_multilabel_forward.3} parent=11 // pred_fallthru
          _
        // Predicated region
        $region21: #{cnn_multilabel_forward.3} parent=11 // pred_check
          %p303 = pneg %p109
        $region22: #{cnn_multilabel_forward.3} parent=11 // pred_check_branch
          %305 = sbr.rel (%p303) target = $region24
        $region23: #{cnn_multilabel_forward.3} parent=11 // pred_region
          _
        $region24: #{cnn_multilabel_forward.3} parent=11 // pred_fallthru
          _
        // Predicated region
        $region25: #{cnn_multilabel_forward.3} parent=11 // pred_check
          %p306 = pneg %p130
        $region26: #{cnn_multilabel_forward.3} parent=11 // pred_check_branch
          %308 = sbr.rel (%p306) target = $region28
        $region27: #{cnn_multilabel_forward.3} parent=11 // pred_region
          _
        $region28: #{cnn_multilabel_forward.3} parent=11 // pred_fallthru
          _
        // Predicated region
        $region29: #{cnn_multilabel_forward.3} parent=11 // pred_check
          %p309 = pneg %p151
        $region30: #{cnn_multilabel_forward.3} parent=11 // pred_check_branch
          %311 = sbr.rel (%p309) target = $region32
        $region31: #{cnn_multilabel_forward.3} parent=11 // pred_region
          _
        $region32: #{cnn_multilabel_forward.3} parent=11 // pred_fallthru
          _
        // Predicated region
        $region33: #{cnn_multilabel_forward.3} parent=11 // pred_check
          %p312 = pneg %p172
        $region34: #{cnn_multilabel_forward.3} parent=11 // pred_check_branch
          %314 = sbr.rel (%p312) target = $region36
        $region35: #{cnn_multilabel_forward.3} parent=11 // pred_region
          _
        $region36: #{cnn_multilabel_forward.3} parent=11 // pred_fallthru
          _
        // Predicated region
        $region37: #{cnn_multilabel_forward.3} parent=11 // pred_check
          %p315 = pneg %p193
        $region38: #{cnn_multilabel_forward.3} parent=11 // pred_check_branch
          %317 = sbr.rel (%p315) target = $region40
        $region39: #{cnn_multilabel_forward.3} parent=11 // pred_region
          _
        $region40: #{cnn_multilabel_forward.3} parent=11 // pred_fallthru
          _
        // Predicated region
        $region41: #{cnn_multilabel_forward.3} parent=11 // pred_check
          %p318 = pneg %p214
        $region42: #{cnn_multilabel_forward.3} parent=11 // pred_check_branch
          %320 = sbr.rel (%p318) target = $region44
        $region43: #{cnn_multilabel_forward.3} parent=11 // pred_region
          _
        $region44: #{cnn_multilabel_forward.3} parent=11 // pred_fallthru
          _
        // Predicated region
        $region45: #{cnn_multilabel_forward.3} parent=11 // pred_check
          %p321 = pneg %p235
        $region46: #{cnn_multilabel_forward.3} parent=11 // pred_check_branch
          %323 = sbr.rel (%p321) target = $region48
        $region47: #{cnn_multilabel_forward.3} parent=11 // pred_region
          _
        $region48: #{cnn_multilabel_forward.3} parent=11 // pred_fallthru
          _
        // Predicated region
        $region49: #{cnn_multilabel_forward.3} parent=11 // pred_check
          %p324 = pneg %p256
        $region50: #{cnn_multilabel_forward.3} parent=11 // pred_check_branch
          %326 = sbr.rel (%p324) target = $region52
        $region51: #{cnn_multilabel_forward.3} parent=11 // pred_region
          _
        $region52: #{cnn_multilabel_forward.3} parent=11 // pred_fallthru
          _
      $region12: #{cnn_multilabel_forward.3} parent=5 // pred_fallthru
        _
      %p327 = scmp.lt.s32.totalorder %s20, 2
      // Predicated region
      $region53: #{cnn_multilabel_forward.3} parent=5 // pred_check
        %p328 = pneg %p327
      $region54: #{cnn_multilabel_forward.3} parent=5 // pred_check_branch
        %330 = sbr.rel (%p328) target = $region56
      $region55: #{cnn_multilabel_forward.3} parent=5 // pred_region
        // Predicated region
        $region57: #{cnn_multilabel_forward.3} parent=55 // pred_check
          %p331 = pneg %p40
        $region58: #{cnn_multilabel_forward.3} parent=55 // pred_check_branch
          %333 = sbr.rel (%p331) target = $region60
        $region59: #{cnn_multilabel_forward.3} parent=55 // pred_region
          %s334 = sand.u32 %s30, 1
          %s335 = sand.u32 %s30, 1
          %s336 = smul.addr %s335, 96
          %s337 = scalar_lea.vmem [#allocation2], %s336
          %s338 = smul.u32 2, %s20
          %s339 = smul.addr %s338, 3
          %s340 = smul.addr %s339, 4
          %s341 = scalar_lea.vmem %s0, %s340
          // Predicated region
          $region61: #{cnn_multilabel_forward.3} parent=59 // pred_check
            _
          $region62: #{cnn_multilabel_forward.3} parent=59 // pred_check_branch
            %343 = sbr.rel (0) target = $region64
          $region63: #{cnn_multilabel_forward.3} parent=59 // pred_region
            // Predicated region
            $region65: #{cnn_multilabel_forward.3} parent=63 // pred_check
              _
            $region66: #{cnn_multilabel_forward.3} parent=63 // pred_check_branch
              %345 = sbr.rel (0) target = $region68
            $region67: #{cnn_multilabel_forward.3} parent=63 // pred_region
              %s346 = scalar_lea.vmem %s341, 8
              %s347 = scalar_lea.vmem %s337, 8 [#allocation2]
              loop: start=0, step=1, limit=1
              $region69: #{cnn_multilabel_forward.3} parent=67 // loop_pre_header
                _
              $region70: #{cnn_multilabel_forward.3} parent=67 // loop_header
                %s349 = sphi 0, %s353
                %p350 = scmp.ge.s32.totalorder %s349, 1
                %s354 = sphi %s341, %s341
                %s355 = sphi %s337, %s337
              $region71: #{cnn_multilabel_forward.3} parent=67 // loop_header_branch
                %352 = sbr.rel (%p350) target = $region75
              $region72: #{cnn_multilabel_forward.3} parent=67 // loop_body
                %v356 = vld [vmem:[%s354] sm:$0xff]
                %357 = vst [vmem:[%s355] sm:$0xff] %v356
                %v358 = vld [vmem:[%s354 + $0xc] sm:$0xff]
                %359 = vst [vmem:[%s355 + $0xc] sm:$0xff] %v358
                %v360 = vld [vmem:[%s354 + $0x30] sm:$0xff]
                %361 = vst [vmem:[%s355 + $0x18] sm:$0xff] %v360
                %v362 = vld [vmem:[%s354 + $0x3c] sm:$0xff]
                %363 = vst [vmem:[%s355 + $0x24] sm:$0xff] %v362
                %v364 = vld [vmem:[%s354 + $0x60] sm:$0xff]
                %365 = vst [vmem:[%s355 + $0x30] sm:$0xff] %v364
                %v366 = vld [vmem:[%s354 + $0x6c] sm:$0xff]
                %367 = vst [vmem:[%s355 + $0x3c] sm:$0xff] %v366
                %v368 = vld [vmem:[%s354 + $0x90] sm:$0xff]
                %369 = vst [vmem:[%s355 + $0x48] sm:$0xff] %v368
                %v370 = vld [vmem:[%s354 + $0x9c] sm:$0xff]
                %371 = vst [vmem:[%s355 + $0x54] sm:$0xff] %v370
              $region73: #{cnn_multilabel_forward.3} parent=67 // loop_footer
                %s353 = sadd.s32 1, %s349
              $region74: #{cnn_multilabel_forward.3} parent=67 // loop_footer_branch
                %348 = sbr.rel target = $region70
              $region75: #{cnn_multilabel_forward.3} parent=67 // loop_exit
                _
              %s373 = ssub.s32 16, 1
              loop: start=0, step=1, limit=1
              $region76: #{cnn_multilabel_forward.3} parent=67 // loop_pre_header
                _
              $region77: #{cnn_multilabel_forward.3} parent=67 // loop_header
                %s375 = sphi 0, %s379
                %p376 = scmp.ge.s32.totalorder %s375, 1
                %s380 = sphi %s346, %s346
                %s381 = sphi %s347, %s347
              $region78: #{cnn_multilabel_forward.3} parent=67 // loop_header_branch
                %378 = sbr.rel (%p376) target = $region82
              $region79: #{cnn_multilabel_forward.3} parent=67 // loop_body
                %v382 = vld [vmem:[%s380] sm:%s373]
                %383 = vst [vmem:[%s381] sm:%s373] %v382
                %v384 = vld [vmem:[%s380 + $0xc] sm:%s373]
                %385 = vst [vmem:[%s381 + $0xc] sm:%s373] %v384
                %v386 = vld [vmem:[%s380 + $0x30] sm:%s373]
                %387 = vst [vmem:[%s381 + $0x18] sm:%s373] %v386
                %v388 = vld [vmem:[%s380 + $0x3c] sm:%s373]
                %389 = vst [vmem:[%s381 + $0x24] sm:%s373] %v388
                %v390 = vld [vmem:[%s380 + $0x60] sm:%s373]
                %391 = vst [vmem:[%s381 + $0x30] sm:%s373] %v390
                %v392 = vld [vmem:[%s380 + $0x6c] sm:%s373]
                %393 = vst [vmem:[%s381 + $0x3c] sm:%s373] %v392
                %v394 = vld [vmem:[%s380 + $0x90] sm:%s373]
                %395 = vst [vmem:[%s381 + $0x48] sm:%s373] %v394
                %v396 = vld [vmem:[%s380 + $0x9c] sm:%s373]
                %397 = vst [vmem:[%s381 + $0x54] sm:%s373] %v396
              $region80: #{cnn_multilabel_forward.3} parent=67 // loop_footer
                %s379 = sadd.s32 1, %s375
              $region81: #{cnn_multilabel_forward.3} parent=67 // loop_footer_branch
                %374 = sbr.rel target = $region77
              $region82: #{cnn_multilabel_forward.3} parent=67 // loop_exit
                _
            $region68: #{cnn_multilabel_forward.3} parent=63 // pred_fallthru
              _
          $region64: #{cnn_multilabel_forward.3} parent=59 // pred_fallthru
            _
          %398 = vnop
        $region60: #{cnn_multilabel_forward.3} parent=55 // pred_fallthru
          _
      $region56: #{cnn_multilabel_forward.3} parent=5 // pred_fallthru
        _
      %p399 = scmp.le.s32.totalorder 1, %s20
      %p400 = scmp.lt.s32.totalorder %s20, 3
      %p401 = pnand %p399, %p400
      %p402 = pneg %p401
      // Predicated region
      $region83: #{cnn_multilabel_forward.3} parent=5 // pred_check
        _
      $region84: #{cnn_multilabel_forward.3} parent=5 // pred_check_branch
        %404 = sbr.rel (%p401) target = $region86
      $region85: #{cnn_multilabel_forward.3} parent=5 // pred_region
        %s405 = ssub.s32 %s20, 1
        %s406 = sand.u32 %s33, 1
        %s407 = sand.u32 %s33, 1
        %s408 = smul.addr %s407, 96
        %s409 = scalar_lea.vmem [#allocation2], %s408
        // Predicated region
        $region87: #{cnn_multilabel_forward.3} parent=85 // pred_check
          %p410 = pneg %p46
        $region88: #{cnn_multilabel_forward.3} parent=85 // pred_check_branch
          %412 = sbr.rel (%p410) target = $region90
        $region89: #{cnn_multilabel_forward.3} parent=85 // pred_region
          _
        $region90: #{cnn_multilabel_forward.3} parent=85 // pred_fallthru
          _
        %s413 = sand.u32 %s33, 1
        %s414 = sand.u32 %s33, 1
        %s415 = smul.addr %s414, 96
        %s416 = scalar_lea.vmem [#allocation2], %s415
        %p417 = pneg %p46
        %p418 = pneg %p43
        %p419 = pneg %p67
        %p420 = pneg %p64
        %p421 = pneg %p88
        %p422 = pneg %p85
        %p423 = pneg %p109
        %p424 = pneg %p106
        %p425 = pneg %p130
        %p426 = pneg %p127
        %p427 = pneg %p151
        %p428 = pneg %p148
        %p429 = pneg %p172
        %p430 = pneg %p169
        %p431 = pneg %p193
        %p432 = pneg %p190
        %p433 = pneg %p214
        %p434 = pneg %p211
        %p435 = pneg %p235
        %p436 = pneg %p232
        %p437 = pneg %p256
        %p438 = pneg %p253
        %p439 = pneg %p282
        %p440 = pneg %p279
        %s441 = sand.u32 %s269, 1
        %s442 = scalar_lea.sflag [#allocation4], %s441
        %s443 = sand.u32 %s269, 1
        %s444 = scalar_lea.vmem [#allocation3], %s443
        %s445 = smul.u32 2, %s25
        %v447 = vld [vmem:[%s409] sm:$0xff]
        %v448 = vld [vmem:[%s409 + $0x8] sm:$0xf]
        %v449 = vld [vmem:[%s409 + $0xc] sm:$0xff]
        %v450 = vld [vmem:[%s409 + $0x14] sm:$0xf]
        %v451 = vld [vmem:[%s409 + $0x18] sm:$0xff]
        %v452 = vld [vmem:[%s409 + $0x20] sm:$0xf]
        %v453 = vld [vmem:[%s409 + $0x24] sm:$0xff]
        %v454 = vld [vmem:[%s409 + $0x2c] sm:$0xf]
        %v455 = vld [vmem:[%s409 + $0x30] sm:$0xff]
        %v456 = vld [vmem:[%s409 + $0x38] sm:$0xf]
        %v457 = vld [vmem:[%s409 + $0x3c] sm:$0xff]
        %v458 = vld [vmem:[%s409 + $0x44] sm:$0xf]
        %v459 = vld [vmem:[%s409 + $0x48] sm:$0xff]
        %v460 = vld [vmem:[%s409 + $0x50] sm:$0xf]
        %v461 = vld [vmem:[%s409 + $0x54] sm:$0xff]
        %v462 = vld [vmem:[%s409 + $0x5c] sm:$0xf]
        %v463 = vld [vmem:[%s1] sm:$0xf]
        %v464 = vld [vmem:[%s1 + $0x4] sm:$0xf]
        %v465 = vld [vmem:[%s1 + $0x8] sm:$0xf]
        %v466 = vld [vmem:[%s1 + $0xc] sm:$0xf]
        %v467 = vld [vmem:[%s1 + $0x10] sm:$0xf]
        %v468 = vld [vmem:[%s1 + $0x14] sm:$0xf]
        %v469 = vld [vmem:[%s1 + $0x18] sm:$0xf]
        %v470 = vld [vmem:[%s1 + $0x1c] sm:$0xf]
        %v471 = vld [vmem:[%s1 + $0x20] sm:$0xf]
        %v472 = vld [vmem:[%s1 + $0x24] sm:$0xf]
        %v473 = vld [vmem:[%s1 + $0x28] sm:$0xf]
        %v474 = vld [vmem:[%s1 + $0x2c] sm:$0xf]
        %v475 = vld [vmem:[%s1 + $0x30] sm:$0xf]
        %v476 = vld [vmem:[%s1 + $0x34] sm:$0xf]
        %v477 = vld [vmem:[%s1 + $0x38] sm:$0xf]
        %v478 = vld [vmem:[%s1 + $0x3c] sm:$0xf]
        %v479 = vld [vmem:[%s1 + $0x40] sm:$0xf]
        %v480 = vld [vmem:[%s1 + $0x44] sm:$0xf]
        %v481 = vld [vmem:[%s1 + $0x48] sm:$0xf]
        %v482 = vld [vmem:[%s1 + $0x4c] sm:$0xf]
        %v483 = vld [vmem:[%s1 + $0x50] sm:$0xf]
        %v484 = vld [vmem:[%s1 + $0x54] sm:$0xf]
        %v485 = vld [vmem:[%s1 + $0x58] sm:$0xf]
        %v486 = vld [vmem:[%s1 + $0x5c] sm:$0xf]
        %v487 = vld [vmem:[%s1 + $0x60] sm:$0xf]
        %v488 = vld [vmem:[%s1 + $0x64] sm:$0xf]
        %v489 = vld [vmem:[%s1 + $0x68] sm:$0xf]
        %v490 = vld [vmem:[%s1 + $0x6c] sm:$0xf]
        %v491 = vld [vmem:[%s1 + $0x70] sm:$0xf]
        %v492 = vld [vmem:[%s1 + $0x74] sm:$0xf]
        %v493 = vld [vmem:[%s1 + $0x78] sm:$0xf]
        %v494 = vld [vmem:[%s1 + $0x7c] sm:$0xf]
        %v495 = vld [vmem:[%s1 + $0x80] sm:$0xf]
        %v496 = vld [vmem:[%s1 + $0x84] sm:$0xf]
        %v497 = vld [vmem:[%s1 + $0x88] sm:$0xf]
        %v498 = vld [vmem:[%s1 + $0x8c] sm:$0xf]
        %v515 = vunpack.c.l.b16 %v447
        %v516 = vunpack.c.h.b16 %v447
        %v517 = vunpack.c.l.b16 %v448
        %v518 = vunpack.c.l.b16 %v449
        %v519 = vunpack.c.h.b16 %v449
        %v520 = vunpack.c.l.b16 %v450
        %v521 = vunpack.c.l.b16 %v451
        %v522 = vunpack.c.h.b16 %v451
        %v523 = vunpack.c.l.b16 %v452
        %v524 = vunpack.c.l.b16 %v453
        %v525 = vunpack.c.h.b16 %v453
        %v526 = vunpack.c.l.b16 %v454
        %v527 = vunpack.c.l.b16 %v455
        %v528 = vunpack.c.h.b16 %v455
        %v529 = vunpack.c.l.b16 %v456
        %v530 = vunpack.c.l.b16 %v457
        %v531 = vunpack.c.h.b16 %v457
        %v532 = vunpack.c.l.b16 %v458
        %v533 = vunpack.c.l.b16 %v459
        %v534 = vunpack.c.h.b16 %v459
        %v535 = vunpack.c.l.b16 %v460
        %v536 = vunpack.c.l.b16 %v461
        %v537 = vunpack.c.h.b16 %v461
        %v538 = vunpack.c.l.b16 %v462
        %v539 = vpack.c.b16 %v518, %v515
        %v540 = vpack.c.b16 %v519, %v516
        %v541 = vpack.c.b16 %v520, %v517
        %v542 = vpack.c.b16 %v524, %v521
        %v543 = vpack.c.b16 %v525, %v522
        %v544 = vpack.c.b16 %v526, %v523
        %v545 = vpack.c.b16 %v530, %v527
        %v546 = vpack.c.b16 %v531, %v528
        %v547 = vpack.c.b16 %v532, %v529
        %v548 = vpack.c.b16 %v536, %v533
        %v549 = vpack.c.b16 %v537, %v534
        %v550 = vpack.c.b16 %v538, %v535
        %v595 = vunpack.c.l.b16 %v463
        %v596 = vunpack.c.l.b16 %v464
        %v597 = vunpack.c.l.b16 %v465
        %v598 = vunpack.c.l.b16 %v466
        %v599 = vunpack.c.l.b16 %v467
        %v600 = vunpack.c.l.b16 %v468
        %v601 = vunpack.c.l.b16 %v469
        %v602 = vunpack.c.l.b16 %v470
        %v603 = vunpack.c.l.b16 %v471
        %v604 = vunpack.c.l.b16 %v472
        %v605 = vunpack.c.l.b16 %v473
        %v606 = vunpack.c.l.b16 %v474
        %v607 = vunpack.c.l.b16 %v475
        %v608 = vunpack.c.l.b16 %v476
        %v609 = vunpack.c.l.b16 %v477
        %v610 = vunpack.c.l.b16 %v478
        %v611 = vunpack.c.l.b16 %v479
        %v612 = vunpack.c.l.b16 %v480
        %v613 = vunpack.c.l.b16 %v481
        %v614 = vunpack.c.l.b16 %v482
        %v615 = vunpack.c.l.b16 %v483
        %v616 = vunpack.c.l.b16 %v484
        %v617 = vunpack.c.l.b16 %v485
        %v618 = vunpack.c.l.b16 %v486
        %v619 = vunpack.c.l.b16 %v487
        %v620 = vunpack.c.l.b16 %v488
        %v621 = vunpack.c.l.b16 %v489
        %v622 = vunpack.c.l.b16 %v490
        %v623 = vunpack.c.l.b16 %v491
        %v624 = vunpack.c.l.b16 %v492
        %v625 = vunpack.c.l.b16 %v493
        %v626 = vunpack.c.l.b16 %v494
        %v627 = vunpack.c.l.b16 %v495
        %v628 = vunpack.c.l.b16 %v496
        %v629 = vunpack.c.l.b16 %v497
        %v630 = vunpack.c.l.b16 %v498
        %v631 = vpack.c.b16 %v596, %v595
        %v632 = vpack.c.b16 %v598, %v597
        %v633 = vpack.c.b16 %v600, %v599
        %v634 = vpack.c.b16 %v602, %v601
        %v635 = vpack.c.b16 %v604, %v603
        %v636 = vpack.c.b16 %v606, %v605
        %v637 = vpack.c.b16 %v608, %v607
        %v638 = vpack.c.b16 %v610, %v609
        %v639 = vpack.c.b16 %v612, %v611
        %v640 = vpack.c.b16 %v614, %v613
        %v641 = vpack.c.b16 %v616, %v615
        %v642 = vpack.c.b16 %v618, %v617
        %v643 = vpack.c.b16 %v620, %v619
        %v644 = vpack.c.b16 %v622, %v621
        %v645 = vpack.c.b16 %v624, %v623
        %v646 = vpack.c.b16 %v626, %v625
        %v647 = vpack.c.b16 %v628, %v627
        %v648 = vpack.c.b16 %v630, %v629
        %vm667 = vcmask 261120
        %v669 = vsel %vm667, %v541, 0
        %v672 = vsel %vm667, %v544, 0
        %v675 = vsel %vm667, %v547, 0
        %v678 = vsel %vm667, %v550, 0
        %680 = vmatpush.bf16.msra.mxu0 %v638
        %681 = vmatpush.bf16.msra.mxu0 %v637
        %682 = vmatpush.bf16.msra.mxu0 %v636
        %683 = vmatpush.bf16.msra.mxu0 %v635
        %684 = vmatpush.bf16.msra.mxu0 %v634
        %685 = vmatpush.bf16.msra.mxu0 %v633
        %686 = vmatpush.bf16.msra.mxu0 %v632
        %687 = vmatpush.bf16.msra.mxu0 %v631
        %688 = vmatmul.bf16.gmra.mxu0 %v539
        %v689 = vpop.f32.mrf.mxu0
        %v690 = vadd.f32 0.0, %v689
        %v691 = vpop.f32.mrf.mxu0
        %v692 = vadd.f32 0.0, %v691
        %693 = vmatmul.bf16.gmra.mxu0 %v542
        %v694 = vpop.f32.mrf.mxu0
        %v695 = vadd.f32 0.0, %v694
        %v696 = vpop.f32.mrf.mxu0
        %v697 = vadd.f32 0.0, %v696
        %698 = vmatmul.bf16.gmra.mxu0 %v545
        %v699 = vpop.f32.mrf.mxu0
        %v700 = vadd.f32 0.0, %v699
        %v701 = vpop.f32.mrf.mxu0
        %v702 = vadd.f32 0.0, %v701
        %703 = vmatmul.bf16.gmra.mxu0 %v548
        %v704 = vpop.f32.mrf.mxu0
        %v705 = vadd.f32 0.0, %v704
        %v706 = vpop.f32.mrf.mxu0
        %v707 = vadd.f32 0.0, %v706
        %708 = vdwg.mxu0
        %709 = vmatpush.bf16.msra.mxu0 %v646
        %710 = vmatpush.bf16.msra.mxu0 %v645
        %711 = vmatpush.bf16.msra.mxu0 %v644
        %712 = vmatpush.bf16.msra.mxu0 %v643
        %713 = vmatpush.bf16.msra.mxu0 %v642
        %714 = vmatpush.bf16.msra.mxu0 %v641
        %715 = vmatpush.bf16.msra.mxu0 %v640
        %716 = vmatpush.bf16.msra.mxu0 %v639
        %717 = vmatmul.bf16.gmra.mxu0 %v540
        %v718 = vpop.f32.mrf.mxu0
        %v719 = vadd.f32 %v690, %v718
        %v720 = vpop.f32.mrf.mxu0
        %v721 = vadd.f32 %v692, %v720
        %722 = vmatmul.bf16.gmra.mxu0 %v543
        %v723 = vpop.f32.mrf.mxu0
        %v724 = vadd.f32 %v695, %v723
        %v725 = vpop.f32.mrf.mxu0
        %v726 = vadd.f32 %v697, %v725
        %727 = vmatmul.bf16.gmra.mxu0 %v546
        %v728 = vpop.f32.mrf.mxu0
        %v729 = vadd.f32 %v700, %v728
        %v730 = vpop.f32.mrf.mxu0
        %v731 = vadd.f32 %v702, %v730
        %732 = vmatmul.bf16.gmra.mxu0 %v549
        %v733 = vpop.f32.mrf.mxu0
        %v734 = vadd.f32 %v705, %v733
        %v735 = vpop.f32.mrf.mxu0
        %v736 = vadd.f32 %v707, %v735
        %737 = vdwg.mxu0
        %738 = vmatpush.bf16.msra.mxu0 0
        %739 = vmatpush.bf16.msra.mxu0 0
        %740 = vmatpush.bf16.msra.mxu0 0
        %741 = vmatpush.bf16.msra.mxu0 0
        %742 = vmatpush.bf16.msra.mxu0 0
        %743 = vmatpush.bf16.msra.mxu0 0
        %744 = vmatpush.bf16.msra.mxu0 %v648
        %745 = vmatpush.bf16.msra.mxu0 %v647
        %746 = vmatmul.bf16.gmra.mxu0 %v669
        %v747 = vpop.f32.mrf.mxu0
        %v748 = vadd.f32 %v719, %v747
        %v749 = vpop.f32.mrf.mxu0
        %v750 = vadd.f32 %v721, %v749
        %751 = vmatmul.bf16.gmra.mxu0 %v672
        %v752 = vpop.f32.mrf.mxu0
        %v753 = vadd.f32 %v724, %v752
        %v754 = vpop.f32.mrf.mxu0
        %v755 = vadd.f32 %v726, %v754
        %756 = vmatmul.bf16.gmra.mxu0 %v675
        %v757 = vpop.f32.mrf.mxu0
        %v758 = vadd.f32 %v729, %v757
        %v759 = vpop.f32.mrf.mxu0
        %v760 = vadd.f32 %v731, %v759
        %761 = vmatmul.bf16.gmra.mxu0 %v678
        %v762 = vpop.f32.mrf.mxu0
        %v763 = vadd.f32 %v734, %v762
        %v764 = vpop.f32.mrf.mxu0
        %v765 = vadd.f32 %v736, %v764
        %766 = vdwg.mxu0
        %vm767 = vcmask 523264
        %v768 = vsel %vm767, %v748, -inf
        %v769 = vsel %vm767, %v753, -inf
        %v770 = vsel %vm767, %v758, -inf
        %v771 = vmax.f32 %v768, %v770
        %v772 = vsel %vm767, %v763, -inf
        %v773 = vmax.f32 %v769, %v772
        %v774 = vmax.f32 %v771, %v773
        %v775 = vsel %vm767, %v750, -inf
        %v776 = vsel %vm767, %v755, -inf
        %v777 = vsel %vm767, %v760, -inf
        %v778 = vmax.f32 %v775, %v777
        %v779 = vsel %vm767, %v765, -inf
        %v780 = vmax.f32 %v776, %v779
        %v781 = vmax.f32 %v778, %v780
        %v782 = vld [vmem:[%s2] sm:$0x1]
        %v784 = vperm.slane %v782, 0
        %v786 = vadd.f32 %v774, %v784
        %v787 = vadd.f32 %v781, %v784
        %v788 = vmax.f32 %v786, 0.0
        %v789 = vmax.f32 %v787, 0.0
        %v790 = vpack.c.bf16 %v788, %v788
        %v791 = vpack.c.bf16 %v789, %v789
        %v792 = vld [vmem:[%s3] sm:$0xf]
        %v793 = vld [vmem:[%s3 + $0x4] sm:$0xf]
        %v794 = vld [vmem:[%s3 + $0x8] sm:$0xf]
        %v795 = vld [vmem:[%s3 + $0xc] sm:$0xf]
        %v796 = vld [vmem:[%s3 + $0x10] sm:$0xf]
        %v797 = vld [vmem:[%s3 + $0x14] sm:$0xf]
        %v798 = vld [vmem:[%s3 + $0x18] sm:$0xf]
        %v799 = vld [vmem:[%s3 + $0x1c] sm:$0xf]
        %s800 = scalar_lea.vmem %s3, 32
        %v801 = vld [vmem:[%s800] sm:$0xf]
        %v802 = vld [vmem:[%s800 + $0x4] sm:$0xf]
        %v803 = vld [vmem:[%s800 + $0x8] sm:$0xf]
        %v804 = vld [vmem:[%s800 + $0xc] sm:$0xf]
        %v805 = vld [vmem:[%s800 + $0x10] sm:$0xf]
        %v806 = vld [vmem:[%s800 + $0x14] sm:$0xf]
        %v807 = vld [vmem:[%s800 + $0x18] sm:$0xf]
        %v808 = vld [vmem:[%s800 + $0x1c] sm:$0xf]
        %s809 = scalar_lea.vmem %s3, 64
        %v810 = vld [vmem:[%s809] sm:$0xf]
        %v811 = vld [vmem:[%s809 + $0x4] sm:$0xf]
        %v812 = vld [vmem:[%s809 + $0x8] sm:$0xf]
        %v813 = vld [vmem:[%s809 + $0xc] sm:$0xf]
        %v814 = vld [vmem:[%s809 + $0x10] sm:$0xf]
        %v815 = vld [vmem:[%s809 + $0x14] sm:$0xf]
        %v816 = vld [vmem:[%s809 + $0x18] sm:$0xf]
        %v817 = vld [vmem:[%s809 + $0x1c] sm:$0xf]
        %s818 = scalar_lea.vmem %s3, 96
        %v819 = vld [vmem:[%s818] sm:$0xf]
        %v820 = vld [vmem:[%s818 + $0x4] sm:$0xf]
        %v821 = vld [vmem:[%s818 + $0x8] sm:$0xf]
        %v822 = vld [vmem:[%s818 + $0xc] sm:$0xf]
        %v823 = vld [vmem:[%s818 + $0x10] sm:$0xf]
        %v824 = vld [vmem:[%s818 + $0x14] sm:$0xf]
        %v825 = vld [vmem:[%s818 + $0x18] sm:$0xf]
        %v826 = vld [vmem:[%s818 + $0x1c] sm:$0xf]
        %s827 = scalar_lea.vmem %s3, 128
        %v828 = vld [vmem:[%s827] sm:$0xf]
        %v829 = vld [vmem:[%s827 + $0x4] sm:$0xf]
        %v830 = vld [vmem:[%s827 + $0x8] sm:$0xf]
        %v831 = vld [vmem:[%s827 + $0xc] sm:$0xf]
        %v832 = vld [vmem:[%s827 + $0x10] sm:$0xf]
        %v833 = vld [vmem:[%s827 + $0x14] sm:$0xf]
        %v834 = vld [vmem:[%s827 + $0x18] sm:$0xf]
        %v835 = vld [vmem:[%s827 + $0x1c] sm:$0xf]
        %s836 = scalar_lea.vmem %s3, 160
        %v837 = vld [vmem:[%s836] sm:$0xf]
        %v838 = vld [vmem:[%s836 + $0x4] sm:$0xf]
        %v839 = vld [vmem:[%s836 + $0x8] sm:$0xf]
        %v840 = vld [vmem:[%s836 + $0xc] sm:$0xf]
        %v841 = vld [vmem:[%s836 + $0x10] sm:$0xf]
        %v842 = vld [vmem:[%s836 + $0x14] sm:$0xf]
        %v843 = vld [vmem:[%s836 + $0x18] sm:$0xf]
        %v844 = vld [vmem:[%s836 + $0x1c] sm:$0xf]
        %s845 = scalar_lea.vmem %s3, 192
        %v846 = vld [vmem:[%s845] sm:$0xf]
        %v847 = vld [vmem:[%s845 + $0x4] sm:$0xf]
        %v848 = vld [vmem:[%s845 + $0x8] sm:$0xf]
        %v849 = vld [vmem:[%s845 + $0xc] sm:$0xf]
        %v850 = vld [vmem:[%s845 + $0x10] sm:$0xf]
        %v851 = vld [vmem:[%s845 + $0x14] sm:$0xf]
        %v852 = vld [vmem:[%s845 + $0x18] sm:$0xf]
        %v853 = vld [vmem:[%s845 + $0x1c] sm:$0xf]
        %s854 = scalar_lea.vmem %s3, 224
        %v855 = vld [vmem:[%s854] sm:$0xf]
        %v856 = vld [vmem:[%s854 + $0x4] sm:$0xf]
        %v857 = vld [vmem:[%s854 + $0x8] sm:$0xf]
        %v858 = vld [vmem:[%s854 + $0xc] sm:$0xf]
        %v859 = vld [vmem:[%s854 + $0x10] sm:$0xf]
        %v860 = vld [vmem:[%s854 + $0x14] sm:$0xf]
        %v861 = vld [vmem:[%s854 + $0x18] sm:$0xf]
        %v862 = vld [vmem:[%s854 + $0x1c] sm:$0xf]
        %s863 = scalar_lea.vmem %s3, 256
        %v864 = vld [vmem:[%s863] sm:$0xf]
        %v865 = vld [vmem:[%s863 + $0x4] sm:$0xf]
        %v866 = vld [vmem:[%s863 + $0x8] sm:$0xf]
        %v867 = vld [vmem:[%s863 + $0xc] sm:$0xf]
        %v868 = vld [vmem:[%s863 + $0x10] sm:$0xf]
        %v869 = vld [vmem:[%s863 + $0x14] sm:$0xf]
        %v870 = vld [vmem:[%s863 + $0x18] sm:$0xf]
        %v871 = vld [vmem:[%s863 + $0x1c] sm:$0xf]
        %v873 = vunpack.c.l.b16 %v790
        %v874 = vpack.c.b16 %v873, %v873
        %v876 = vshrl.u32 %v874, 16
        %v886 = vunpack.c.l.b16 %v837
        %v887 = vunpack.c.l.b16 %v838
        %v888 = vunpack.c.l.b16 %v839
        %v889 = vunpack.c.l.b16 %v840
        %v890 = vunpack.c.l.b16 %v841
        %v891 = vunpack.c.l.b16 %v842
        %v892 = vunpack.c.l.b16 %v843
        %v893 = vunpack.c.l.b16 %v844
        %v894 = vpack.c.b16 %v887, %v886
        %v895 = vpack.c.b16 %v889, %v888
        %v896 = vpack.c.b16 %v891, %v890
        %v897 = vpack.c.b16 %v893, %v892
        %v903 = vsel %vm767, %v876, 0
        %905 = vmatpush.bf16.msra.mxu0 0
        %906 = vmatpush.bf16.msra.mxu0 0
        %907 = vmatpush.bf16.msra.mxu0 0
        %908 = vmatpush.bf16.msra.mxu0 0
        %909 = vmatpush.bf16.msra.mxu0 %v897
        %910 = vmatpush.bf16.msra.mxu0 %v896
        %911 = vmatpush.bf16.msra.mxu0 %v895
        %912 = vmatpush.bf16.msra.mxu0 %v894
        %913 = vmatmul.bf16.gmra.mxu0 %v903
        %v914 = vpop.f32.mrf.mxu0
        %v915 = vadd.f32 0.0, %v914
        %v916 = vpop.f32.mrf.mxu0
        %917 = vdwg.mxu0
        %v926 = vunpack.c.l.b16 %v828
        %v927 = vunpack.c.l.b16 %v829
        %v928 = vunpack.c.l.b16 %v830
        %v929 = vunpack.c.l.b16 %v831
        %v930 = vunpack.c.l.b16 %v832
        %v931 = vunpack.c.l.b16 %v833
        %v932 = vunpack.c.l.b16 %v834
        %v933 = vunpack.c.l.b16 %v835
        %v934 = vpack.c.b16 %v927, %v926
        %v935 = vpack.c.b16 %v929, %v928
        %v936 = vpack.c.b16 %v931, %v930
        %v937 = vpack.c.b16 %v933, %v932
        %v943 = vsel %vm767, %v790, 0
        %945 = vmatpush.bf16.msra.mxu0 0
        %946 = vmatpush.bf16.msra.mxu0 0
        %947 = vmatpush.bf16.msra.mxu0 0
        %948 = vmatpush.bf16.msra.mxu0 0
        %949 = vmatpush.bf16.msra.mxu0 %v937
        %950 = vmatpush.bf16.msra.mxu0 %v936
        %951 = vmatpush.bf16.msra.mxu0 %v935
        %952 = vmatpush.bf16.msra.mxu0 %v934
        %953 = vmatmul.bf16.gmra.mxu0 %v943
        %v954 = vpop.f32.mrf.mxu0
        %v955 = vadd.f32 %v915, %v954
        %v956 = vpop.f32.mrf.mxu0
        %957 = vdwg.mxu0
        %v958 = vrot.slane %v874, 2
        %v967 = vunpack.c.l.b16 %v855
        %v968 = vunpack.c.l.b16 %v856
        %v969 = vunpack.c.l.b16 %v857
        %v970 = vunpack.c.l.b16 %v858
        %v971 = vunpack.c.l.b16 %v859
        %v972 = vunpack.c.l.b16 %v860
        %v973 = vunpack.c.l.b16 %v861
        %v974 = vunpack.c.l.b16 %v862
        %v975 = vpack.c.b16 %v968, %v967
        %v976 = vpack.c.b16 %v970, %v969
        %v977 = vpack.c.b16 %v972, %v971
        %v978 = vpack.c.b16 %v974, %v973
        %v984 = vsel %vm767, %v958, 0
        %986 = vmatpush.bf16.msra.mxu0 0
        %987 = vmatpush.bf16.msra.mxu0 0
        %988 = vmatpush.bf16.msra.mxu0 0
        %989 = vmatpush.bf16.msra.mxu0 0
        %990 = vmatpush.bf16.msra.mxu0 %v978
        %991 = vmatpush.bf16.msra.mxu0 %v977
        %992 = vmatpush.bf16.msra.mxu0 %v976
        %993 = vmatpush.bf16.msra.mxu0 %v975
        %994 = vmatmul.bf16.gmra.mxu0 %v984
        %v995 = vpop.f32.mrf.mxu0
        %v996 = vadd.f32 0.0, %v995
        %v997 = vpop.f32.mrf.mxu0
        %998 = vdwg.mxu0
        %v999 = vadd.f32 %v955, %v996
        %v1000 = vrot.slane %v876, 2
        %v1009 = vunpack.c.l.b16 %v864
        %v1010 = vunpack.c.l.b16 %v865
        %v1011 = vunpack.c.l.b16 %v866
        %v1012 = vunpack.c.l.b16 %v867
        %v1013 = vunpack.c.l.b16 %v868
        %v1014 = vunpack.c.l.b16 %v869
        %v1015 = vunpack.c.l.b16 %v870
        %v1016 = vunpack.c.l.b16 %v871
        %v1017 = vpack.c.b16 %v1010, %v1009
        %v1018 = vpack.c.b16 %v1012, %v1011
        %v1019 = vpack.c.b16 %v1014, %v1013
        %v1020 = vpack.c.b16 %v1016, %v1015
        %v1026 = vsel %vm767, %v1000, 0
        %1028 = vmatpush.bf16.msra.mxu0 0
        %1029 = vmatpush.bf16.msra.mxu0 0
        %1030 = vmatpush.bf16.msra.mxu0 0
        %1031 = vmatpush.bf16.msra.mxu0 0
        %1032 = vmatpush.bf16.msra.mxu0 %v1020
        %1033 = vmatpush.bf16.msra.mxu0 %v1019
        %1034 = vmatpush.bf16.msra.mxu0 %v1018
        %1035 = vmatpush.bf16.msra.mxu0 %v1017
        %1036 = vmatmul.bf16.gmra.mxu0 %v1026
        %v1037 = vpop.f32.mrf.mxu0
        %v1038 = vadd.f32 0.0, %v1037
        %v1039 = vpop.f32.mrf.mxu0
        %1040 = vdwg.mxu0
        %v1041 = vadd.f32 %v999, %v1038
        %v1042 = vrot.slane %v874, 1
        %v1044 = vsel %vm767, %v1042, 0
        %1046 = vmatpush.bf16.msra.mxu0 0
        %1047 = vmatpush.bf16.msra.mxu0 0
        %1048 = vmatpush.bf16.msra.mxu0 0
        %1049 = vmatpush.bf16.msra.mxu0 0
        %1050 = vmatpush.bf16.msra.mxu0 %v937
        %1051 = vmatpush.bf16.msra.mxu0 %v936
        %1052 = vmatpush.bf16.msra.mxu0 %v935
        %1053 = vmatpush.bf16.msra.mxu0 %v934
        %1054 = vmatmul.bf16.gmra.mxu0 %v1044
        %v1055 = vpop.f32.mrf.mxu0
        %v1056 = vadd.f32 0.0, %v1055
        %v1057 = vpop.f32.mrf.mxu0
        %1058 = vdwg.mxu0
        %v1067 = vunpack.c.l.b16 %v819
        %v1068 = vunpack.c.l.b16 %v820
        %v1069 = vunpack.c.l.b16 %v821
        %v1070 = vunpack.c.l.b16 %v822
        %v1071 = vunpack.c.l.b16 %v823
        %v1072 = vunpack.c.l.b16 %v824
        %v1073 = vunpack.c.l.b16 %v825
        %v1074 = vunpack.c.l.b16 %v826
        %v1075 = vpack.c.b16 %v1068, %v1067
        %v1076 = vpack.c.b16 %v1070, %v1069
        %v1077 = vpack.c.b16 %v1072, %v1071
        %v1078 = vpack.c.b16 %v1074, %v1073
        %1083 = vmatpush.bf16.msra.mxu0 0
        %1084 = vmatpush.bf16.msra.mxu0 0
        %1085 = vmatpush.bf16.msra.mxu0 0
        %1086 = vmatpush.bf16.msra.mxu0 0
        %1087 = vmatpush.bf16.msra.mxu0 %v1078
        %1088 = vmatpush.bf16.msra.mxu0 %v1077
        %1089 = vmatpush.bf16.msra.mxu0 %v1076
        %1090 = vmatpush.bf16.msra.mxu0 %v1075
        %1091 = vmatmul.bf16.gmra.mxu0 %v903
        %v1092 = vpop.f32.mrf.mxu0
        %v1093 = vadd.f32 %v1056, %v1092
        %v1094 = vpop.f32.mrf.mxu0
        %1095 = vdwg.mxu0
        %v1096 = vrot.slane %v876, 1
        %v1098 = vsel %vm767, %v1096, 0
        %1100 = vmatpush.bf16.msra.mxu0 0
        %1101 = vmatpush.bf16.msra.mxu0 0
        %1102 = vmatpush.bf16.msra.mxu0 0
        %1103 = vmatpush.bf16.msra.mxu0 0
        %1104 = vmatpush.bf16.msra.mxu0 %v897
        %1105 = vmatpush.bf16.msra.mxu0 %v896
        %1106 = vmatpush.bf16.msra.mxu0 %v895
        %1107 = vmatpush.bf16.msra.mxu0 %v894
        %1108 = vmatmul.bf16.gmra.mxu0 %v1098
        %v1109 = vpop.f32.mrf.mxu0
        %v1110 = vadd.f32 0.0, %v1109
        %v1111 = vpop.f32.mrf.mxu0
        %1112 = vdwg.mxu0
        %v1113 = vadd.f32 %v1093, %v1110
        %v1122 = vunpack.c.l.b16 %v846
        %v1123 = vunpack.c.l.b16 %v847
        %v1124 = vunpack.c.l.b16 %v848
        %v1125 = vunpack.c.l.b16 %v849
        %v1126 = vunpack.c.l.b16 %v850
        %v1127 = vunpack.c.l.b16 %v851
        %v1128 = vunpack.c.l.b16 %v852
        %v1129 = vunpack.c.l.b16 %v853
        %v1130 = vpack.c.b16 %v1123, %v1122
        %v1131 = vpack.c.b16 %v1125, %v1124
        %v1132 = vpack.c.b16 %v1127, %v1126
        %v1133 = vpack.c.b16 %v1129, %v1128
        %1138 = vmatpush.bf16.msra.mxu0 0
        %1139 = vmatpush.bf16.msra.mxu0 0
        %1140 = vmatpush.bf16.msra.mxu0 0
        %1141 = vmatpush.bf16.msra.mxu0 0
        %1142 = vmatpush.bf16.msra.mxu0 %v1133
        %1143 = vmatpush.bf16.msra.mxu0 %v1132
        %1144 = vmatpush.bf16.msra.mxu0 %v1131
        %1145 = vmatpush.bf16.msra.mxu0 %v1130
        %1146 = vmatmul.bf16.gmra.mxu0 %v1026
        %v1147 = vpop.f32.mrf.mxu0
        %v1148 = vadd.f32 0.0, %v1147
        %v1149 = vpop.f32.mrf.mxu0
        %1150 = vdwg.mxu0
        %v1151 = vadd.f32 %v1113, %v1148
        %v1152 = vrot.slane %v874, 3
        %v1154 = vsel %vm767, %v1152, 0
        %1156 = vmatpush.bf16.msra.mxu0 0
        %1157 = vmatpush.bf16.msra.mxu0 0
        %1158 = vmatpush.bf16.msra.mxu0 0
        %1159 = vmatpush.bf16.msra.mxu0 0
        %1160 = vmatpush.bf16.msra.mxu0 %v978
        %1161 = vmatpush.bf16.msra.mxu0 %v977
        %1162 = vmatpush.bf16.msra.mxu0 %v976
        %1163 = vmatpush.bf16.msra.mxu0 %v975
        %1164 = vmatmul.bf16.gmra.mxu0 %v1154
        %v1165 = vpop.f32.mrf.mxu0
        %v1166 = vadd.f32 0.0, %v1165
        %v1167 = vpop.f32.mrf.mxu0
        %1168 = vdwg.mxu0
        %v1169 = vadd.f32 %v1151, %v1166
        %v1170 = vrot.slane %v876, 3
        %v1172 = vsel %vm767, %v1170, 0
        %1174 = vmatpush.bf16.msra.mxu0 0
        %1175 = vmatpush.bf16.msra.mxu0 0
        %1176 = vmatpush.bf16.msra.mxu0 0
        %1177 = vmatpush.bf16.msra.mxu0 0
        %1178 = vmatpush.bf16.msra.mxu0 %v1020
        %1179 = vmatpush.bf16.msra.mxu0 %v1019
        %1180 = vmatpush.bf16.msra.mxu0 %v1018
        %1181 = vmatpush.bf16.msra.mxu0 %v1017
        %1182 = vmatmul.bf16.gmra.mxu0 %v1172
        %v1183 = vpop.f32.mrf.mxu0
        %v1184 = vadd.f32 0.0, %v1183
        %v1185 = vpop.f32.mrf.mxu0
        %1186 = vdwg.mxu0
        %v1187 = vadd.f32 %v1169, %v1184
        %v1188 = vmax.f32 %v1041, %v1187
        %v1197 = vunpack.c.l.b16 %v810
        %v1198 = vunpack.c.l.b16 %v811
        %v1199 = vunpack.c.l.b16 %v812
        %v1200 = vunpack.c.l.b16 %v813
        %v1201 = vunpack.c.l.b16 %v814
        %v1202 = vunpack.c.l.b16 %v815
        %v1203 = vunpack.c.l.b16 %v816
        %v1204 = vunpack.c.l.b16 %v817
        %v1205 = vpack.c.b16 %v1198, %v1197
        %v1206 = vpack.c.b16 %v1200, %v1199
        %v1207 = vpack.c.b16 %v1202, %v1201
        %v1208 = vpack.c.b16 %v1204, %v1203
        %1213 = vmatpush.bf16.msra.mxu0 0
        %1214 = vmatpush.bf16.msra.mxu0 0
        %1215 = vmatpush.bf16.msra.mxu0 0
        %1216 = vmatpush.bf16.msra.mxu0 0
        %1217 = vmatpush.bf16.msra.mxu0 %v1208
        %1218 = vmatpush.bf16.msra.mxu0 %v1207
        %1219 = vmatpush.bf16.msra.mxu0 %v1206
        %1220 = vmatpush.bf16.msra.mxu0 %v1205
        %1221 = vmatmul.bf16.gmra.mxu0 %v1026
        %v1222 = vpop.f32.mrf.mxu0
        %v1223 = vadd.f32 0.0, %v1222
        %v1224 = vpop.f32.mrf.mxu0
        %1225 = vdwg.mxu0
        %v1234 = vunpack.c.l.b16 %v801
        %v1235 = vunpack.c.l.b16 %v802
        %v1236 = vunpack.c.l.b16 %v803
        %v1237 = vunpack.c.l.b16 %v804
        %v1238 = vunpack.c.l.b16 %v805
        %v1239 = vunpack.c.l.b16 %v806
        %v1240 = vunpack.c.l.b16 %v807
        %v1241 = vunpack.c.l.b16 %v808
        %v1242 = vpack.c.b16 %v1235, %v1234
        %v1243 = vpack.c.b16 %v1237, %v1236
        %v1244 = vpack.c.b16 %v1239, %v1238
        %v1245 = vpack.c.b16 %v1241, %v1240
        %1250 = vmatpush.bf16.msra.mxu0 0
        %1251 = vmatpush.bf16.msra.mxu0 0
        %1252 = vmatpush.bf16.msra.mxu0 0
        %1253 = vmatpush.bf16.msra.mxu0 0
        %1254 = vmatpush.bf16.msra.mxu0 %v1245
        %1255 = vmatpush.bf16.msra.mxu0 %v1244
        %1256 = vmatpush.bf16.msra.mxu0 %v1243
        %1257 = vmatpush.bf16.msra.mxu0 %v1242
        %1258 = vmatmul.bf16.gmra.mxu0 %v984
        %v1259 = vpop.f32.mrf.mxu0
        %v1260 = vadd.f32 %v1223, %v1259
        %v1261 = vpop.f32.mrf.mxu0
        %1262 = vdwg.mxu0
        %v1264 = vsel %vm767, %v791, 0
        %1266 = vmatpush.bf16.msra.mxu0 0
        %1267 = vmatpush.bf16.msra.mxu0 0
        %1268 = vmatpush.bf16.msra.mxu0 0
        %1269 = vmatpush.bf16.msra.mxu0 0
        %1270 = vmatpush.bf16.msra.mxu0 %v937
        %1271 = vmatpush.bf16.msra.mxu0 %v936
        %1272 = vmatpush.bf16.msra.mxu0 %v935
        %1273 = vmatpush.bf16.msra.mxu0 %v934
        %1274 = vmatmul.bf16.gmra.mxu0 %v1264
        %v1275 = vpop.f32.mrf.mxu0
        %v1276 = vadd.f32 0.0, %v1275
        %v1277 = vpop.f32.mrf.mxu0
        %1278 = vdwg.mxu0
        %v1279 = vadd.f32 %v1260, %v1276
        %v1281 = vunpack.c.l.b16 %v791
        %v1282 = vpack.c.b16 %v1281, %v1281
        %v1284 = vshrl.u32 %v1282, 16
        %v1287 = vsel %vm767, %v1284, 0
        %1289 = vmatpush.bf16.msra.mxu0 0
        %1290 = vmatpush.bf16.msra.mxu0 0
        %1291 = vmatpush.bf16.msra.mxu0 0
        %1292 = vmatpush.bf16.msra.mxu0 0
        %1293 = vmatpush.bf16.msra.mxu0 %v897
        %1294 = vmatpush.bf16.msra.mxu0 %v896
        %1295 = vmatpush.bf16.msra.mxu0 %v895
        %1296 = vmatpush.bf16.msra.mxu0 %v894
        %1297 = vmatmul.bf16.gmra.mxu0 %v1287
        %v1298 = vpop.f32.mrf.mxu0
        %v1299 = vadd.f32 0.0, %v1298
        %v1300 = vpop.f32.mrf.mxu0
        %1301 = vdwg.mxu0
        %v1302 = vadd.f32 %v1279, %v1299
        %v1303 = vrot.slane %v1282, 2
        %v1305 = vsel %vm767, %v1303, 0
        %1307 = vmatpush.bf16.msra.mxu0 0
        %1308 = vmatpush.bf16.msra.mxu0 0
        %1309 = vmatpush.bf16.msra.mxu0 0
        %1310 = vmatpush.bf16.msra.mxu0 0
        %1311 = vmatpush.bf16.msra.mxu0 %v978
        %1312 = vmatpush.bf16.msra.mxu0 %v977
        %1313 = vmatpush.bf16.msra.mxu0 %v976
        %1314 = vmatpush.bf16.msra.mxu0 %v975
        %1315 = vmatmul.bf16.gmra.mxu0 %v1305
        %v1316 = vpop.f32.mrf.mxu0
        %v1317 = vadd.f32 0.0, %v1316
        %v1318 = vpop.f32.mrf.mxu0
        %1319 = vdwg.mxu0
        %v1320 = vadd.f32 %v1302, %v1317
        %v1321 = vrot.slane %v1284, 2
        %v1323 = vsel %vm767, %v1321, 0
        %1325 = vmatpush.bf16.msra.mxu0 0
        %1326 = vmatpush.bf16.msra.mxu0 0
        %1327 = vmatpush.bf16.msra.mxu0 0
        %1328 = vmatpush.bf16.msra.mxu0 0
        %1329 = vmatpush.bf16.msra.mxu0 %v1020
        %1330 = vmatpush.bf16.msra.mxu0 %v1019
        %1331 = vmatpush.bf16.msra.mxu0 %v1018
        %1332 = vmatpush.bf16.msra.mxu0 %v1017
        %1333 = vmatmul.bf16.gmra.mxu0 %v1323
        %v1334 = vpop.f32.mrf.mxu0
        %v1335 = vadd.f32 0.0, %v1334
        %v1336 = vpop.f32.mrf.mxu0
        %1337 = vdwg.mxu0
        %v1338 = vadd.f32 %v1320, %v1335
        %v1339 = vmax.f32 %v1188, %v1338
        %1340 = vmatpush.bf16.msra.mxu0 0
        %1341 = vmatpush.bf16.msra.mxu0 0
        %1342 = vmatpush.bf16.msra.mxu0 0
        %1343 = vmatpush.bf16.msra.mxu0 0
        %1344 = vmatpush.bf16.msra.mxu0 %v1245
        %1345 = vmatpush.bf16.msra.mxu0 %v1244
        %1346 = vmatpush.bf16.msra.mxu0 %v1243
        %1347 = vmatpush.bf16.msra.mxu0 %v1242
        %1348 = vmatmul.bf16.gmra.mxu0 %v1154
        %v1349 = vpop.f32.mrf.mxu0
        %v1350 = vadd.f32 0.0, %v1349
        %v1351 = vpop.f32.mrf.mxu0
        %1352 = vdwg.mxu0
        %v1361 = vunpack.c.l.b16 %v792
        %v1362 = vunpack.c.l.b16 %v793
        %v1363 = vunpack.c.l.b16 %v794
        %v1364 = vunpack.c.l.b16 %v795
        %v1365 = vunpack.c.l.b16 %v796
        %v1366 = vunpack.c.l.b16 %v797
        %v1367 = vunpack.c.l.b16 %v798
        %v1368 = vunpack.c.l.b16 %v799
        %v1369 = vpack.c.b16 %v1362, %v1361
        %v1370 = vpack.c.b16 %v1364, %v1363
        %v1371 = vpack.c.b16 %v1366, %v1365
        %v1372 = vpack.c.b16 %v1368, %v1367
        %1377 = vmatpush.bf16.msra.mxu0 0
        %1378 = vmatpush.bf16.msra.mxu0 0
        %1379 = vmatpush.bf16.msra.mxu0 0
        %1380 = vmatpush.bf16.msra.mxu0 0
        %1381 = vmatpush.bf16.msra.mxu0 %v1372
        %1382 = vmatpush.bf16.msra.mxu0 %v1371
        %1383 = vmatpush.bf16.msra.mxu0 %v1370
        %1384 = vmatpush.bf16.msra.mxu0 %v1369
        %1385 = vmatmul.bf16.gmra.mxu0 %v1026
        %v1386 = vpop.f32.mrf.mxu0
        %v1387 = vadd.f32 %v1350, %v1386
        %v1388 = vpop.f32.mrf.mxu0
        %1389 = vdwg.mxu0
        %1390 = vmatpush.bf16.msra.mxu0 0
        %1391 = vmatpush.bf16.msra.mxu0 0
        %1392 = vmatpush.bf16.msra.mxu0 0
        %1393 = vmatpush.bf16.msra.mxu0 0
        %1394 = vmatpush.bf16.msra.mxu0 %v1208
        %1395 = vmatpush.bf16.msra.mxu0 %v1207
        %1396 = vmatpush.bf16.msra.mxu0 %v1206
        %1397 = vmatpush.bf16.msra.mxu0 %v1205
        %1398 = vmatmul.bf16.gmra.mxu0 %v1172
        %v1399 = vpop.f32.mrf.mxu0
        %v1400 = vadd.f32 0.0, %v1399
        %v1401 = vpop.f32.mrf.mxu0
        %1402 = vdwg.mxu0
        %v1403 = vadd.f32 %v1387, %v1400
        %1404 = vmatpush.bf16.msra.mxu0 0
        %1405 = vmatpush.bf16.msra.mxu0 0
        %1406 = vmatpush.bf16.msra.mxu0 0
        %1407 = vmatpush.bf16.msra.mxu0 0
        %1408 = vmatpush.bf16.msra.mxu0 %v1078
        %1409 = vmatpush.bf16.msra.mxu0 %v1077
        %1410 = vmatpush.bf16.msra.mxu0 %v1076
        %1411 = vmatpush.bf16.msra.mxu0 %v1075
        %1412 = vmatmul.bf16.gmra.mxu0 %v1287
        %v1413 = vpop.f32.mrf.mxu0
        %v1414 = vadd.f32 0.0, %v1413
        %v1415 = vpop.f32.mrf.mxu0
        %1416 = vdwg.mxu0
        %v1417 = vadd.f32 %v1403, %v1414
        %v1418 = vrot.slane %v1282, 1
        %v1420 = vsel %vm767, %v1418, 0
        %1422 = vmatpush.bf16.msra.mxu0 0
        %1423 = vmatpush.bf16.msra.mxu0 0
        %1424 = vmatpush.bf16.msra.mxu0 0
        %1425 = vmatpush.bf16.msra.mxu0 0
        %1426 = vmatpush.bf16.msra.mxu0 %v937
        %1427 = vmatpush.bf16.msra.mxu0 %v936
        %1428 = vmatpush.bf16.msra.mxu0 %v935
        %1429 = vmatpush.bf16.msra.mxu0 %v934
        %1430 = vmatmul.bf16.gmra.mxu0 %v1420
        %v1431 = vpop.f32.mrf.mxu0
        %v1432 = vadd.f32 0.0, %v1431
        %v1433 = vpop.f32.mrf.mxu0
        %1434 = vdwg.mxu0
        %v1435 = vadd.f32 %v1417, %v1432
        %v1436 = vrot.slane %v1284, 1
        %v1438 = vsel %vm767, %v1436, 0
        %1440 = vmatpush.bf16.msra.mxu0 0
        %1441 = vmatpush.bf16.msra.mxu0 0
        %1442 = vmatpush.bf16.msra.mxu0 0
        %1443 = vmatpush.bf16.msra.mxu0 0
        %1444 = vmatpush.bf16.msra.mxu0 %v897
        %1445 = vmatpush.bf16.msra.mxu0 %v896
        %1446 = vmatpush.bf16.msra.mxu0 %v895
        %1447 = vmatpush.bf16.msra.mxu0 %v894
        %1448 = vmatmul.bf16.gmra.mxu0 %v1438
        %v1449 = vpop.f32.mrf.mxu0
        %v1450 = vadd.f32 0.0, %v1449
        %v1451 = vpop.f32.mrf.mxu0
        %1452 = vdwg.mxu0
        %v1453 = vadd.f32 %v1435, %v1450
        %1454 = vmatpush.bf16.msra.mxu0 0
        %1455 = vmatpush.bf16.msra.mxu0 0
        %1456 = vmatpush.bf16.msra.mxu0 0
        %1457 = vmatpush.bf16.msra.mxu0 0
        %1458 = vmatpush.bf16.msra.mxu0 %v1133
        %1459 = vmatpush.bf16.msra.mxu0 %v1132
        %1460 = vmatpush.bf16.msra.mxu0 %v1131
        %1461 = vmatpush.bf16.msra.mxu0 %v1130
        %1462 = vmatmul.bf16.gmra.mxu0 %v1323
        %v1463 = vpop.f32.mrf.mxu0
        %v1464 = vadd.f32 0.0, %v1463
        %v1465 = vpop.f32.mrf.mxu0
        %1466 = vdwg.mxu0
        %v1467 = vadd.f32 %v1453, %v1464
        %v1468 = vrot.slane %v1282, 3
        %v1470 = vsel %vm767, %v1468, 0
        %1472 = vmatpush.bf16.msra.mxu0 0
        %1473 = vmatpush.bf16.msra.mxu0 0
        %1474 = vmatpush.bf16.msra.mxu0 0
        %1475 = vmatpush.bf16.msra.mxu0 0
        %1476 = vmatpush.bf16.msra.mxu0 %v978
        %1477 = vmatpush.bf16.msra.mxu0 %v977
        %1478 = vmatpush.bf16.msra.mxu0 %v976
        %1479 = vmatpush.bf16.msra.mxu0 %v975
        %1480 = vmatmul.bf16.gmra.mxu0 %v1470
        %v1481 = vpop.f32.mrf.mxu0
        %v1482 = vadd.f32 0.0, %v1481
        %v1483 = vpop.f32.mrf.mxu0
        %1484 = vdwg.mxu0
        %v1485 = vadd.f32 %v1467, %v1482
        %v1486 = vrot.slane %v1284, 3
        %v1488 = vsel %vm767, %v1486, 0
        %1490 = vmatpush.bf16.msra.mxu0 0
        %1491 = vmatpush.bf16.msra.mxu0 0
        %1492 = vmatpush.bf16.msra.mxu0 0
        %1493 = vmatpush.bf16.msra.mxu0 0
        %1494 = vmatpush.bf16.msra.mxu0 %v1020
        %1495 = vmatpush.bf16.msra.mxu0 %v1019
        %1496 = vmatpush.bf16.msra.mxu0 %v1018
        %1497 = vmatpush.bf16.msra.mxu0 %v1017
        %1498 = vmatmul.bf16.gmra.mxu0 %v1488
        %v1499 = vpop.f32.mrf.mxu0
        %v1500 = vadd.f32 0.0, %v1499
        %v1501 = vpop.f32.mrf.mxu0
        %1502 = vdwg.mxu0
        %v1503 = vadd.f32 %v1485, %v1500
        %v1504 = vmax.f32 %v1339, %v1503
        %v1505 = vld [vmem:[%s4] sm:$0x1]
        %v1506 = vadd.f32 %v1504, %v1505
        %v1507 = vmax.f32 %v1506, 0.0
        %v1508 = vpack.c.bf16 %v1507, %v1507
        %v1509 = vld [vmem:[%s5] sm:$0xf]
        %v1510 = vld [vmem:[%s5 + $0x4] sm:$0xf]
        %v1511 = vld [vmem:[%s5 + $0x8] sm:$0xf]
        %v1512 = vld [vmem:[%s5 + $0xc] sm:$0xf]
        %v1513 = vld [vmem:[%s5 + $0x10] sm:$0xf]
        %v1514 = vld [vmem:[%s5 + $0x14] sm:$0xf]
        %v1515 = vld [vmem:[%s5 + $0x18] sm:$0xf]
        %v1516 = vld [vmem:[%s5 + $0x1c] sm:$0xf]
        %v1517 = vld [vmem:[%s5 + $0x20] sm:$0xf]
        %v1518 = vld [vmem:[%s5 + $0x24] sm:$0xf]
        %v1519 = vld [vmem:[%s5 + $0x28] sm:$0xf]
        %v1520 = vld [vmem:[%s5 + $0x2c] sm:$0xf]
        %v1521 = vld [vmem:[%s5 + $0x30] sm:$0xf]
        %v1522 = vld [vmem:[%s5 + $0x34] sm:$0xf]
        %v1523 = vld [vmem:[%s5 + $0x38] sm:$0xf]
        %v1524 = vld [vmem:[%s5 + $0x3c] sm:$0xf]
        %v1525 = vld [vmem:[%s6] sm:$0x1]
        %v1542 = vunpack.c.l.b16 %v1509
        %v1543 = vunpack.c.l.b16 %v1510
        %v1544 = vunpack.c.l.b16 %v1511
        %v1545 = vunpack.c.l.b16 %v1512
        %v1546 = vunpack.c.l.b16 %v1513
        %v1547 = vunpack.c.l.b16 %v1514
        %v1548 = vunpack.c.l.b16 %v1515
        %v1549 = vunpack.c.l.b16 %v1516
        %v1550 = vunpack.c.l.b16 %v1517
        %v1551 = vunpack.c.l.b16 %v1518
        %v1552 = vunpack.c.l.b16 %v1519
        %v1553 = vunpack.c.l.b16 %v1520
        %v1554 = vunpack.c.l.b16 %v1521
        %v1555 = vunpack.c.l.b16 %v1522
        %v1556 = vunpack.c.l.b16 %v1523
        %v1557 = vunpack.c.l.b16 %v1524
        %v1558 = vpack.c.b16 %v1543, %v1542
        %v1559 = vpack.c.b16 %v1545, %v1544
        %v1560 = vpack.c.b16 %v1547, %v1546
        %v1561 = vpack.c.b16 %v1549, %v1548
        %v1562 = vpack.c.b16 %v1551, %v1550
        %v1563 = vpack.c.b16 %v1553, %v1552
        %v1564 = vpack.c.b16 %v1555, %v1554
        %v1565 = vpack.c.b16 %v1557, %v1556
        %1574 = vmatpush.bf16.msra.mxu0 %v1565
        %1575 = vmatpush.bf16.msra.mxu0 %v1564
        %1576 = vmatpush.bf16.msra.mxu0 %v1563
        %1577 = vmatpush.bf16.msra.mxu0 %v1562
        %1578 = vmatpush.bf16.msra.mxu0 %v1561
        %1579 = vmatpush.bf16.msra.mxu0 %v1560
        %1580 = vmatpush.bf16.msra.mxu0 %v1559
        %1581 = vmatpush.bf16.msra.mxu0 %v1558
        %1582 = vmatmul.bf16.gmra.mxu0 %v1508
        %v1583 = vpop.f32.mrf.mxu0
        %v1584 = vadd.f32 %v1525, %v1583
        %v1585 = vpop.f32.mrf.mxu0
        %1586 = vdwg.mxu0
        %v1587 = vmax.f32 %v1584, 0.0
        %v1588 = vpack.c.bf16 %v1587, %v1587
        %v1589 = vld [vmem:[%s7] sm:$0xf]
        %v1590 = vld [vmem:[%s7 + $0x4] sm:$0xf]
        %v1591 = vld [vmem:[%s7 + $0x8] sm:$0xf]
        %v1592 = vld [vmem:[%s7 + $0xc] sm:$0xf]
        %v1593 = vld [vmem:[%s7 + $0x10] sm:$0xf]
        %v1594 = vld [vmem:[%s7 + $0x14] sm:$0xf]
        %v1595 = vld [vmem:[%s7 + $0x18] sm:$0xf]
        %v1596 = vld [vmem:[%s7 + $0x1c] sm:$0xf]
        %v1597 = vld [vmem:[%s7 + $0x20] sm:$0xf]
        %v1598 = vld [vmem:[%s7 + $0x24] sm:$0xf]
        %v1599 = vld [vmem:[%s7 + $0x28] sm:$0xf]
        %v1600 = vld [vmem:[%s7 + $0x2c] sm:$0xf]
        %v1601 = vld [vmem:[%s7 + $0x30] sm:$0xf]
        %v1602 = vld [vmem:[%s7 + $0x34] sm:$0xf]
        %v1603 = vld [vmem:[%s7 + $0x38] sm:$0xf]
        %v1604 = vld [vmem:[%s7 + $0x3c] sm:$0xf]
        %v1605 = vld [vmem:[%s8] sm:$0x1]
        %v1622 = vunpack.c.l.b16 %v1589
        %v1623 = vunpack.c.l.b16 %v1590
        %v1624 = vunpack.c.l.b16 %v1591
        %v1625 = vunpack.c.l.b16 %v1592
        %v1626 = vunpack.c.l.b16 %v1593
        %v1627 = vunpack.c.l.b16 %v1594
        %v1628 = vunpack.c.l.b16 %v1595
        %v1629 = vunpack.c.l.b16 %v1596
        %v1630 = vunpack.c.l.b16 %v1597
        %v1631 = vunpack.c.l.b16 %v1598
        %v1632 = vunpack.c.l.b16 %v1599
        %v1633 = vunpack.c.l.b16 %v1600
        %v1634 = vunpack.c.l.b16 %v1601
        %v1635 = vunpack.c.l.b16 %v1602
        %v1636 = vunpack.c.l.b16 %v1603
        %v1637 = vunpack.c.l.b16 %v1604
        %v1638 = vpack.c.b16 %v1623, %v1622
        %v1639 = vpack.c.b16 %v1625, %v1624
        %v1640 = vpack.c.b16 %v1627, %v1626
        %v1641 = vpack.c.b16 %v1629, %v1628
        %v1642 = vpack.c.b16 %v1631, %v1630
        %v1643 = vpack.c.b16 %v1633, %v1632
        %v1644 = vpack.c.b16 %v1635, %v1634
        %v1645 = vpack.c.b16 %v1637, %v1636
        %1654 = vmatpush.bf16.msra.mxu0 %v1645
        %1655 = vmatpush.bf16.msra.mxu0 %v1644
        %1656 = vmatpush.bf16.msra.mxu0 %v1643
        %1657 = vmatpush.bf16.msra.mxu0 %v1642
        %1658 = vmatpush.bf16.msra.mxu0 %v1641
        %1659 = vmatpush.bf16.msra.mxu0 %v1640
        %1660 = vmatpush.bf16.msra.mxu0 %v1639
        %1661 = vmatpush.bf16.msra.mxu0 %v1638
        %1662 = vmatmul.bf16.gmra.mxu0 %v1588
        %v1663 = vpop.f32.mrf.mxu0
        %v1664 = vadd.f32 %v1605, %v1663
        %v1665 = vpop.f32.mrf.mxu0
        %1666 = vdwg.mxu0
        %v1667 = vmax.f32 %v1664, 0.0
        %v1668 = vpack.c.bf16 %v1667, %v1667
        %v1669 = vld [vmem:[%s9] sm:$0xf]
        %v1670 = vld [vmem:[%s9 + $0x4] sm:$0xf]
        %v1671 = vld [vmem:[%s9 + $0x8] sm:$0xf]
        %v1672 = vld [vmem:[%s9 + $0xc] sm:$0xf]
        %v1673 = vld [vmem:[%s9 + $0x10] sm:$0xf]
        %v1674 = vld [vmem:[%s9 + $0x14] sm:$0xf]
        %v1675 = vld [vmem:[%s9 + $0x18] sm:$0xf]
        %v1676 = vld [vmem:[%s9 + $0x1c] sm:$0xf]
        %v1677 = vld [vmem:[%s10] sm:$0x1]
        %v1686 = vunpack.c.l.b16 %v1669
        %v1687 = vunpack.c.l.b16 %v1670
        %v1688 = vunpack.c.l.b16 %v1671
        %v1689 = vunpack.c.l.b16 %v1672
        %v1690 = vunpack.c.l.b16 %v1673
        %v1691 = vunpack.c.l.b16 %v1674
        %v1692 = vunpack.c.l.b16 %v1675
        %v1693 = vunpack.c.l.b16 %v1676
        %v1694 = vpack.c.b16 %v1687, %v1686
        %v1695 = vpack.c.b16 %v1689, %v1688
        %v1696 = vpack.c.b16 %v1691, %v1690
        %v1697 = vpack.c.b16 %v1693, %v1692
        %v1703 = vsel %vm767, %v1668, 0
        %1705 = vmatpush.bf16.msra.mxu0 0
        %1706 = vmatpush.bf16.msra.mxu0 0
        %1707 = vmatpush.bf16.msra.mxu0 0
        %1708 = vmatpush.bf16.msra.mxu0 0
        %1709 = vmatpush.bf16.msra.mxu0 %v1697
        %1710 = vmatpush.bf16.msra.mxu0 %v1696
        %1711 = vmatpush.bf16.msra.mxu0 %v1695
        %1712 = vmatpush.bf16.msra.mxu0 %v1694
        %1713 = vmatmul.bf16.gmra.mxu0 %v1703
        %v1714 = vpop.f32.mrf.mxu0
        %v1715 = vadd.f32 %v1677, %v1714
        %v1716 = vpop.f32.mrf.mxu0
        %1717 = vdwg.mxu0
        %1718 = vst [vmem:[%s444] sm:$0x1] %v1715
        %s1719 = sand.u32 %s269, 1
        %s1720 = scalar_lea.sflag [#allocation4], %s1719
        %s1721 = sand.u32 %s269, 1
        %s1722 = scalar_lea.vmem [#allocation3], %s1721
        // Predicated region
        $region91: #{cnn_multilabel_forward.3} parent=85 // pred_check
          %p1723 = pneg %p279
        $region92: #{cnn_multilabel_forward.3} parent=85 // pred_check_branch
          %1725 = sbr.rel (%p1723) target = $region94
        $region93: #{cnn_multilabel_forward.3} parent=85 // pred_region
          %1727 = vsyncadd %s1720, 0
          %s1728 = scalar_lea.hbm %s11, %s25
          %s1730 = sshll.u32 %s1722, 4
          %s1731 = int_to_ptr.vmem [resolvable:$true] %s1730
          %s1732 = sshll.u32 %s1728, 4
          %s1733 = int_to_ptr.hbm [resolvable:$true] %s1732
          %1735 = dma.vmem_to_hbm [thread:$0]  %s1731, 16, %s1733, %s1720
        $region94: #{cnn_multilabel_forward.3} parent=85 // pred_fallthru
          _
      $region86: #{cnn_multilabel_forward.3} parent=5 // pred_fallthru
        _
      %p1736 = scmp.le.s32.totalorder 2, %s20
      // Predicated region
      $region95: #{cnn_multilabel_forward.3} parent=5 // pred_check
        %p1737 = pneg %p1736
      $region96: #{cnn_multilabel_forward.3} parent=5 // pred_check_branch
        %1739 = sbr.rel (%p1737) target = $region98
      $region97: #{cnn_multilabel_forward.3} parent=5 // pred_region
        %s1740 = ssub.s32 %s20, 2
        // Predicated region
        $region99: #{cnn_multilabel_forward.3} parent=97 // pred_check
          %p1741 = pneg %p285
        $region100: #{cnn_multilabel_forward.3} parent=97 // pred_check_branch
          %1743 = sbr.rel (%p1741) target = $region102
        $region101: #{cnn_multilabel_forward.3} parent=97 // pred_region
          %s1744 = sand.u32 %s270, 1
          %s1745 = scalar_lea.sflag [#allocation4], %s1744
          %s1746 = sand.u32 %s270, 1
          %s1747 = scalar_lea.vmem [#allocation3], %s1746
          %1749 = dma.done %s1745, 16
        $region102: #{cnn_multilabel_forward.3} parent=97 // pred_fallthru
          _
      $region98: #{cnn_multilabel_forward.3} parent=5 // pred_fallthru
        _
    $region6: #{cnn_multilabel_forward.3} parent=1 // loop_footer
      %s24 = sadd.s32 1, %s20
    $region7: #{cnn_multilabel_forward.3} parent=1 // loop_footer_branch
      %19 = sbr.rel target = $region3
    $region8: #{cnn_multilabel_forward.3} parent=1 // loop_exit
      _
    %1750 = vsyncpa [#allocation4], 1
    %s1751 = scalar_lea.sflag [#allocation4], 1
    %1752 = vsyncpa %s1751, 1

</llo_original>
